<compile_context>
chip_gen: v7x
topology: tpu7x:2x2x1
jax: 0.10.0
libtpu: 0.0.40
codegen_flags: <defaults>
</compile_context>

<pallas_src>
import functools
import math

import jax
import jax.numpy as jnp
from jax.experimental import pallas as pl
from jax.experimental.pallas import tpu as pltpu


def _mha_kernel(x_ref, wqkv_ref, wout_ref, bout_ref, o_ref, qkv_ref, oslab_ref,
                *, heads, hd_pad, matmul_dtype):
    bb, n, dim = x_ref.shape                    # block: bb batch elems, full seq, full dim
    M = bb * n
    Hsec = heads * hd_pad                       # width of each packed Q / K / V section
    mm = jnp.float32 if matmul_dtype is None else matmul_dtype

    # (bb, n, dim) -> (bb*n, dim): merges leading dims only (free, no lane change).
    xm = x_ref[...].reshape(M, dim).astype(mm)

    # Fused QKV projection (to_qkv, bias-free). Softmax scale is folded into the Q
    # columns in the wrapper. Cast ONCE to the matmul dtype and park the slab in VMEM
    # scratch so the head loop only keeps one head's slices live in vregs at a time.
    qkv_ref[...] = jnp.dot(xm, wqkv_ref[...],
                           preferred_element_type=jnp.float32).astype(mm)

    # Head loop: every column offset is a multiple of hd_pad (128-lane aligned), so the
    # slices / slab stores are unmasked and need no lane relayout.
    # TODO(synk): switch to lax.fori_loop with 128-aligned pl.ds offsets if head counts
    # grow large enough for the unrolled loop to bloat the program.
    for h in range(heads):
        c0 = h * hd_pad
        q_h = qkv_ref[:, 0 * Hsec + c0: 0 * Hsec + c0 + hd_pad].reshape(bb, n, hd_pad)
        k_h = qkv_ref[:, 1 * Hsec + c0: 1 * Hsec + c0 + hd_pad].reshape(bb, n, hd_pad)
        v_h = qkv_ref[:, 2 * Hsec + c0: 2 * Hsec + c0 + hd_pad].reshape(bb, n, hd_pad)

        # Scores (scale already folded into Q weights). Zero pad-columns contribute 0.
        dots = jnp.einsum('bqd,bkd->bqk', q_h, k_h,
                          preferred_element_type=jnp.float32)       # (bb, n, n) f32

        # Softmax over keys in f32 (v5e's VPU/EUP are f32-only); divide replaced by an
        # EUP approx reciprocal applied AFTER attn@V (n*hd multiplies instead of n*n).
        m_ = jnp.max(dots, axis=-1, keepdims=True)
        p = jnp.exp(dots - m_)
        inv = pl.reciprocal(jnp.sum(p, axis=-1, keepdims=True), approx=True)

        o_h = jnp.einsum('bqk,bkd->bqd', p.astype(mm), v_h,
                         preferred_element_type=jnp.float32)        # (bb, n, hd_pad) f32

        # 128-lane-aligned store of this head's block into the output slab.
        oslab_ref[:, c0:c0 + hd_pad] = (o_h * inv).reshape(M, hd_pad)

    # Single full-K output projection (to_out Linear) + bias.
    # TODO(synk): nn.Dropout(p=0.1) is identity here (eval-mode forward).
    y = jnp.dot(oslab_ref[...].astype(mm), wout_ref[...],
                preferred_element_type=jnp.float32)
    y = y + bout_ref[...]
    o_ref[...] = y.reshape(bb, n, dim).astype(o_ref.dtype)


def _pack_weights_head_major(w_qkv, w_out, b_out, *, heads, head_dim, hd_pad,
                             scale, matmul_dtype):
    """Repack weights head-major with per-head 128-lane padding; fold the softmax scale."""
    dim = w_out.shape[0]
    mm = jnp.float32 if matmul_dtype is None else matmul_dtype

    wq = w_qkv[:, :dim] * scale                 # fold dim**-0.5 into Q columns (free)
    wk = w_qkv[:, dim:2 * dim]
    wv = w_qkv[:, 2 * dim:]

    def pad_heads(w):                           # (dim, dim) -> (dim, heads*hd_pad)
        w = w.reshape(dim, heads, head_dim)
        w = jnp.pad(w, ((0, 0), (0, 0), (0, hd_pad - head_dim)))
        return w.reshape(dim, heads * hd_pad)

    w_qkv_hm = jnp.concatenate([pad_heads(wq), pad_heads(wk), pad_heads(wv)], axis=-1)

    w_out_pad = w_out.reshape(heads, head_dim, dim)
    w_out_pad = jnp.pad(w_out_pad, ((0, 0), (0, hd_pad - head_dim), (0, 0)))
    w_out_pad = w_out_pad.reshape(heads * hd_pad, dim)

    return (w_qkv_hm.astype(mm), w_out_pad.astype(mm),
            b_out.reshape(1, dim).astype(jnp.float32))


def _vmem_capacity_bytes():
    try:
        return int(pltpu.get_tpu_info().vmem_capacity_bytes)
    except Exception:
        return 64 * 1024 * 1024                 # conservative: v7x per-TensorCore VMEM


def multi_head_attention(x, w_qkv, w_out, b_out, *, heads,
                         matmul_dtype=jnp.bfloat16, target_rows=None):
    """MultiHeadAttention forward.

    x: (b, n, dim); w_qkv: (dim, 3*dim); w_out: (dim, dim); b_out: (dim,).
    matmul_dtype: dtype of MXU operands (default bf16 — native fast path on all
    generations; softmax / bias stay f32). Pass None for a pure-f32 validation path.
    Passing x already in bf16 end-to-end additionally halves the activation DMA.
    """
    b, n, dim = x.shape
    assert dim % heads == 0, "dim must be divisible by heads"
    head_dim = dim // heads
    hd_pad = ((head_dim + 127) // 128) * 128    # per-head lane padding (128-aligned)
    scale = dim ** (-0.5)                       # NOTE: module scales by dim**-0.5 (full dim)
    mm = jnp.float32 if matmul_dtype is None else matmul_dtype
    mm_bytes = jnp.dtype(mm).itemsize
    x_bytes = jnp.dtype(x.dtype).itemsize

    w_qkv_hm, w_out_pad, b_out2d = _pack_weights_head_major(
        w_qkv, w_out, b_out, heads=heads, head_dim=head_dim, hd_pad=hd_pad,
        scale=scale, matmul_dtype=matmul_dtype)

    # --- per-generation sizing (v5e/v6e: 128 MiB VMEM; v7x: 64 MiB per TensorCore) ---
    vmem_cap = _vmem_capacity_bytes()
    vmem_limit = max(16 * 1024 * 1024, min(int(vmem_cap * 0.75), 100 * 1024 * 1024))
    if target_rows is None:
        target_rows = 512 if vmem_cap >= 100 * 1024 * 1024 else 256

    # Fold batch into the matmul M dimension: bb batch elements per grid step.
    bb = max(1, min(b, target_rows // max(n, 1)))
    if b >= 2:
        bb = min(bb, b // 2)      # keep >= 2 grid steps so v7x megacore can shard the axis
    bb = max(bb, 1)
    while b % bb:
        bb -= 1

    def _step_bytes(bb_):
        M = bb_ * n
        return (2 * M * dim * x_bytes                         # double-buffered in blocks
                + 2 * M * dim * x_bytes                       # double-buffered out blocks
                + M * 3 * heads * hd_pad * mm_bytes           # fused QKV scratch slab
                + M * heads * hd_pad * 4                      # per-head output slab (f32)
                + 2 * M * n * 4                               # transient scores / probs
                + 4 * dim * heads * hd_pad * mm_bytes)        # resident packed weights

    while bb > 1 and _step_bytes(bb) > int(vmem_limit * 0.6):
        bb -= 1
        while b % bb:
            bb -= 1
    grid = (b // bb,)

    kernel = functools.partial(_mha_kernel, heads=heads, hd_pad=hd_pad,
                               matmul_dtype=matmul_dtype)

    return pl.pallas_call(
        kernel,
        out_shape=jax.ShapeDtypeStruct((b, n, dim), x.dtype),
        grid_spec=pltpu.PrefetchScalarGridSpec(
            num_scalar_prefetch=0,
            grid=grid,
            in_specs=[
                # activations: one batch-block per grid step
                pl.BlockSpec((bb, n, dim), lambda i: (i, 0, 0)),
                # resident packed weights / bias: whole array in VMEM, single copy
                pl.BlockSpec(memory_space=pltpu.MemorySpace.VMEM),   # w_qkv (head-major)
                pl.BlockSpec(memory_space=pltpu.MemorySpace.VMEM),   # w_out (row-padded)
                pl.BlockSpec(memory_space=pltpu.MemorySpace.VMEM),   # b_out
            ],
            out_specs=pl.BlockSpec((bb, n, dim), lambda i: (i, 0, 0)),
            scratch_shapes=[
                pltpu.VMEM((bb * n, 3 * heads * hd_pad), mm),            # fused QKV slab
                pltpu.VMEM((bb * n, heads * hd_pad), jnp.float32),       # per-head outputs
            ],
        ),
        compiler_params=pltpu.CompilerParams(
            dimension_semantics=("parallel",),     # batch blocks: megacore-parallel on v7x
            vmem_limit_bytes=vmem_limit,
        ),
    )(x, w_qkv_hm, w_out_pad, b_out2d)


def reference_mha(x, w_qkv, w_out, b_out, *, heads):
    """Plain-JAX reproduction of the PyTorch forward for verification."""
    b, n, dim = x.shape
    d = dim // heads
    scale = dim ** (-0.5)
    qkv = x @ w_qkv                                             # (b, n, 3*dim)
    q, k, v = jnp.split(qkv, 3, axis=-1)

    def to_heads(t):
        return jnp.transpose(t.reshape(b, n, heads, d), (0, 2, 1, 3))   # (b, h, n, d)

    q, k, v = map(to_heads, (q, k, v))
    dots = jnp.einsum('bhqd,bhkd->bhqk', q, k) * scale
    attn = jax.nn.softmax(dots, axis=-1)
    out = jnp.einsum('bhqk,bhkd->bhqd', attn, v)
    out = jnp.transpose(out, (0, 2, 1, 3)).reshape(b, n, dim)
    return out @ w_out + b_out


if __name__ == "__main__":
    # Small shapes consistent with the module: batch=2, seq=8, dim=32, heads=8.
    B, N, DIM, HEADS = 2, 8, 32, 8

    key = jax.random.PRNGKey(0)
    kx, kqkv, kout, kb = jax.random.split(key, 4)

    # Deterministic parameter init (mimicking nn.Linear's kaiming-uniform bounds).
    bound = 1.0 / math.sqrt(DIM)
    x = jax.random.normal(kx, (B, N, DIM), dtype=jnp.float32)
    w_qkv = jax.random.uniform(kqkv, (DIM, 3 * DIM), jnp.float32, -bound, bound)
    w_out = jax.random.uniform(kout, (DIM, DIM), jnp.float32, -bound, bound)
    b_out = jax.random.uniform(kb, (DIM,), jnp.float32, -bound, bound)

    y_ref = reference_mha(x, w_qkv, w_out, b_out, heads=HEADS)

    # f32-operand path: tight check (only the approx EUP reciprocal deviates).
    y_f32 = multi_head_attention(x, w_qkv, w_out, b_out, heads=HEADS, matmul_dtype=None)
    y_f32 = jax.block_until_ready(y_f32)
    assert y_f32.shape == (B, N, DIM)
    assert jnp.allclose(y_f32, y_ref, atol=2e-3, rtol=2e-3), "f32 path mismatch vs reference"

    # Default bf16-MXU-operand path (recommended on v5e/v6e/v7x): validated, looser tol.
    y_bf16 = multi_head_attention(x, w_qkv, w_out, b_out, heads=HEADS)
    y_bf16 = jax.block_until_ready(y_bf16)
    assert y_bf16.shape == (B, N, DIM)
    assert bool(jnp.all(jnp.isfinite(y_bf16)))
    assert jnp.allclose(y_bf16, y_ref, atol=5e-2, rtol=5e-2), "bf16 path mismatch vs reference"

    print("KERNEL_OK")
</pallas_src>

<mosaic_0001>
module attributes {stable_mosaic.version = 11 : i64} {
  func.func @_mha_kernel(%arg0: i32, %arg1: memref<1x8x32xf32, #tpu.memory_space<vmem>>, %arg2: memref<32x3072xf32, #tpu.memory_space<vmem>>, %arg3: memref<1024x32xf32, #tpu.memory_space<vmem>>, %arg4: memref<1x32xf32, #tpu.memory_space<vmem>>, %arg5: memref<1x8x32xf32, #tpu.memory_space<vmem>>, %arg6: memref<8x3072xf32, #tpu.memory_space<vmem>>, %arg7: memref<8x1024xf32, #tpu.memory_space<vmem>>) attributes {dimension_semantics = [#tpu.dimension_semantics<parallel>], iteration_bounds = array<i64: 2>, scalar_prefetch = 0 : i64, scratch_operands = 2 : i64, tpu.core_type = #tpu.core_type<tc>, window_params = [{transform_indices = @transform_0, window_bounds = array<i64: 1, 8, 32>}, {pipeline_mode = #tpu.pipeline_mode<synchronous>, transform_indices = @transform_1, window_bounds = array<i64: 32, 3072>}, {pipeline_mode = #tpu.pipeline_mode<synchronous>, transform_indices = @transform_2, window_bounds = array<i64: 1024, 32>}, {pipeline_mode = #tpu.pipeline_mode<synchronous>, transform_indices = @transform_3, window_bounds = array<i64: 1, 32>}, {transform_indices = @transform_4, window_bounds = array<i64: 1, 8, 32>}]} {
    %c0 = arith.constant 0 : index
    %c0_0 = arith.constant 0 : index
    %c0_1 = arith.constant 0 : index
    %0 = vector.load %arg1[%c0, %c0_0, %c0_1] : memref<1x8x32xf32, #tpu.memory_space<vmem>>, vector<1x8x32xf32>
    %1 = vector.shape_cast %0 : vector<1x8x32xf32> to vector<8x32xf32>
    %c0_2 = arith.constant 0 : index
    %c0_3 = arith.constant 0 : index
    %2 = vector.load %arg2[%c0_2, %c0_3] : memref<32x3072xf32, #tpu.memory_space<vmem>>, vector<32x3072xf32>
    %cst = arith.constant dense<0.000000e+00> : vector<8x3072xf32>
    %3 = tpu.matmul %1, %2, %cst {dimension_numbers = #tpu.dot_dimension_numbers<[1], [0], [0], [1], [0, 0, 1, 1], [], []>} : vector<8x32xf32>, vector<32x3072xf32>, vector<8x3072xf32> -> vector<8x3072xf32>
    %c0_4 = arith.constant 0 : index
    %c0_5 = arith.constant 0 : index
    %4 = vector.load %arg6[%c0_4, %c0_5] : memref<8x3072xf32, #tpu.memory_space<vmem>>, vector<8x3072xf32>
    tpu.vector_store %arg6[%c0_4, %c0_5], %3 {strides = array<i32>} : memref<8x3072xf32, #tpu.memory_space<vmem>>, vector<8x3072xf32>,
    %c0_6 = arith.constant 0 : index
    %c0_7 = arith.constant 0 : index
    %5 = vector.load %arg6[%c0_6, %c0_7] : memref<8x3072xf32, #tpu.memory_space<vmem>>, vector<8x128xf32>
    %6 = vector.shape_cast %5 : vector<8x128xf32> to vector<1x8x128xf32>
    %c0_8 = arith.constant 0 : index
    %c1024 = arith.constant 1024 : index
    %7 = vector.load %arg6[%c0_8, %c1024] : memref<8x3072xf32, #tpu.memory_space<vmem>>, vector<8x128xf32>
    %8 = vector.shape_cast %7 : vector<8x128xf32> to vector<1x8x128xf32>
    %c0_9 = arith.constant 0 : index
    %c2048 = arith.constant 2048 : index
    %9 = vector.load %arg6[%c0_9, %c2048] : memref<8x3072xf32, #tpu.memory_space<vmem>>, vector<8x128xf32>
    %10 = vector.shape_cast %9 : vector<8x128xf32> to vector<1x8x128xf32>
    "tpu.trace_start"() <{level = 10 : i32, message = "bqd,bkd->bqk"}> : () -> ()
    %cst_10 = arith.constant dense<0.000000e+00> : vector<1x8x8xf32>
    %11 = tpu.matmul %6, %8, %cst_10 {dimension_numbers = #tpu.dot_dimension_numbers<[2], [2], [1], [1], [0, 0, 0, 1, 1, 1], [0], [0]>} : vector<1x8x128xf32>, vector<1x8x128xf32>, vector<1x8x8xf32> -> vector<1x8x8xf32>
    "tpu.trace_stop"() : () -> ()
    %cst_11 = arith.constant dense<0xFF800000> : vector<1x8xf32>
    %12 = vector.multi_reduction <maximumf>, %11, %cst_11 [2] : vector<1x8x8xf32> to vector<1x8xf32>
    %13 = vector.shape_cast %12 : vector<1x8xf32> to vector<1x8x1xf32>
    %14 = vector.broadcast %13 : vector<1x8x1xf32> to vector<1x8x8xf32>
    %15 = arith.subf %11, %14 : vector<1x8x8xf32>
    %16 = math.exp %15 : vector<1x8x8xf32>
    %cst_12 = arith.constant dense<0.000000e+00> : vector<1x8xf32>
    %17 = vector.multi_reduction <add>, %16, %cst_12 [2] : vector<1x8x8xf32> to vector<1x8xf32>
    %18 = vector.shape_cast %17 : vector<1x8xf32> to vector<1x8x1xf32>
    %19 = tpu.reciprocal %18 {approx = true} : vector<1x8x1xf32> -> vector<1x8x1xf32>
    "tpu.trace_start"() <{level = 10 : i32, message = "bqk,bkd->bqd"}> : () -> ()
    %cst_13 = arith.constant dense<0.000000e+00> : vector<1x8x128xf32>
    %20 = tpu.matmul %16, %10, %cst_13 {dimension_numbers = #tpu.dot_dimension_numbers<[2], [1], [1], [2], [0, 0, 0, 1, 1, 2], [0], [0]>} : vector<1x8x8xf32>, vector<1x8x128xf32>, vector<1x8x128xf32> -> vector<1x8x128xf32>
    "tpu.trace_stop"() : () -> ()
    %21 = vector.broadcast %19 : vector<1x8x1xf32> to vector<1x8x128xf32>
    %22 = arith.mulf %20, %21 : vector<1x8x128xf32>
    %23 = vector.shape_cast %22 : vector<1x8x128xf32> to vector<8x128xf32>
    %c0_14 = arith.constant 0 : index
    %c0_15 = arith.constant 0 : index
    %24 = vector.load %arg7[%c0_14, %c0_15] : memref<8x1024xf32, #tpu.memory_space<vmem>>, vector<8x128xf32>
    tpu.vector_store %arg7[%c0_14, %c0_15], %23 {strides = array<i32>} : memref<8x1024xf32, #tpu.memory_space<vmem>>, vector<8x128xf32>,
    %c0_16 = arith.constant 0 : index
    %c128 = arith.constant 128 : index
    %25 = vector.load %arg6[%c0_16, %c128] : memref<8x3072xf32, #tpu.memory_space<vmem>>, vector<8x128xf32>
    %26 = vector.shape_cast %25 : vector<8x128xf32> to vector<1x8x128xf32>
    %c0_17 = arith.constant 0 : index
    %c1152 = arith.constant 1152 : index
    %27 = vector.load %arg6[%c0_17, %c1152] : memref<8x3072xf32, #tpu.memory_space<vmem>>, vector<8x128xf32>
    %28 = vector.shape_cast %27 : vector<8x128xf32> to vector<1x8x128xf32>
    %c0_18 = arith.constant 0 : index
    %c2176 = arith.constant 2176 : index
    %29 = vector.load %arg6[%c0_18, %c2176] : memref<8x3072xf32, #tpu.memory_space<vmem>>, vector<8x128xf32>
    %30 = vector.shape_cast %29 : vector<8x128xf32> to vector<1x8x128xf32>
    "tpu.trace_start"() <{level = 10 : i32, message = "bqd,bkd->bqk"}> : () -> ()
    %cst_19 = arith.constant dense<0.000000e+00> : vector<1x8x8xf32>
    %31 = tpu.matmul %26, %28, %cst_19 {dimension_numbers = #tpu.dot_dimension_numbers<[2], [2], [1], [1], [0, 0, 0, 1, 1, 1], [0], [0]>} : vector<1x8x128xf32>, vector<1x8x128xf32>, vector<1x8x8xf32> -> vector<1x8x8xf32>
    "tpu.trace_stop"() : () -> ()
    %cst_20 = arith.constant dense<0xFF800000> : vector<1x8xf32>
    %32 = vector.multi_reduction <maximumf>, %31, %cst_20 [2] : vector<1x8x8xf32> to vector<1x8xf32>
    %33 = vector.shape_cast %32 : vector<1x8xf32> to vector<1x8x1xf32>
    %34 = vector.broadcast %33 : vector<1x8x1xf32> to vector<1x8x8xf32>
    %35 = arith.subf %31, %34 : vector<1x8x8xf32>
    %36 = math.exp %35 : vector<1x8x8xf32>
    %cst_21 = arith.constant dense<0.000000e+00> : vector<1x8xf32>
    %37 = vector.multi_reduction <add>, %36, %cst_21 [2] : vector<1x8x8xf32> to vector<1x8xf32>
    %38 = vector.shape_cast %37 : vector<1x8xf32> to vector<1x8x1xf32>
    %39 = tpu.reciprocal %38 {approx = true} : vector<1x8x1xf32> -> vector<1x8x1xf32>
    "tpu.trace_start"() <{level = 10 : i32, message = "bqk,bkd->bqd"}> : () -> ()
    %cst_22 = arith.constant dense<0.000000e+00> : vector<1x8x128xf32>
    %40 = tpu.matmul %36, %30, %cst_22 {dimension_numbers = #tpu.dot_dimension_numbers<[2], [1], [1], [2], [0, 0, 0, 1, 1, 2], [0], [0]>} : vector<1x8x8xf32>, vector<1x8x128xf32>, vector<1x8x128xf32> -> vector<1x8x128xf32>
    "tpu.trace_stop"() : () -> ()
    %41 = vector.broadcast %39 : vector<1x8x1xf32> to vector<1x8x128xf32>
    %42 = arith.mulf %40, %41 : vector<1x8x128xf32>
    %43 = vector.shape_cast %42 : vector<1x8x128xf32> to vector<8x128xf32>
    %c0_23 = arith.constant 0 : index
    %c128_24 = arith.constant 128 : index
    %44 = vector.load %arg7[%c0_23, %c128_24] : memref<8x1024xf32, #tpu.memory_space<vmem>>, vector<8x128xf32>
    tpu.vector_store %arg7[%c0_23, %c128_24], %43 {strides = array<i32>} : memref<8x1024xf32, #tpu.memory_space<vmem>>, vector<8x128xf32>,
    %c0_25 = arith.constant 0 : index
    %c256 = arith.constant 256 : index
    %45 = vector.load %arg6[%c0_25, %c256] : memref<8x3072xf32, #tpu.memory_space<vmem>>, vector<8x128xf32>
    %46 = vector.shape_cast %45 : vector<8x128xf32> to vector<1x8x128xf32>
    %c0_26 = arith.constant 0 : index
    %c1280 = arith.constant 1280 : index
    %47 = vector.load %arg6[%c0_26, %c1280] : memref<8x3072xf32, #tpu.memory_space<vmem>>, vector<8x128xf32>
    %48 = vector.shape_cast %47 : vector<8x128xf32> to vector<1x8x128xf32>
    %c0_27 = arith.constant 0 : index
    %c2304 = arith.constant 2304 : index
    %49 = vector.load %arg6[%c0_27, %c2304] : memref<8x3072xf32, #tpu.memory_space<vmem>>, vector<8x128xf32>
    %50 = vector.shape_cast %49 : vector<8x128xf32> to vector<1x8x128xf32>
    "tpu.trace_start"() <{level = 10 : i32, message = "bqd,bkd->bqk"}> : () -> ()
    %cst_28 = arith.constant dense<0.000000e+00> : vector<1x8x8xf32>
    %51 = tpu.matmul %46, %48, %cst_28 {dimension_numbers = #tpu.dot_dimension_numbers<[2], [2], [1], [1], [0, 0, 0, 1, 1, 1], [0], [0]>} : vector<1x8x128xf32>, vector<1x8x128xf32>, vector<1x8x8xf32> -> vector<1x8x8xf32>
    "tpu.trace_stop"() : () -> ()
    %cst_29 = arith.constant dense<0xFF800000> : vector<1x8xf32>
    %52 = vector.multi_reduction <maximumf>, %51, %cst_29 [2] : vector<1x8x8xf32> to vector<1x8xf32>
    %53 = vector.shape_cast %52 : vector<1x8xf32> to vector<1x8x1xf32>
    %54 = vector.broadcast %53 : vector<1x8x1xf32> to vector<1x8x8xf32>
    %55 = arith.subf %51, %54 : vector<1x8x8xf32>
    %56 = math.exp %55 : vector<1x8x8xf32>
    %cst_30 = arith.constant dense<0.000000e+00> : vector<1x8xf32>
    %57 = vector.multi_reduction <add>, %56, %cst_30 [2] : vector<1x8x8xf32> to vector<1x8xf32>
    %58 = vector.shape_cast %57 : vector<1x8xf32> to vector<1x8x1xf32>
    %59 = tpu.reciprocal %58 {approx = true} : vector<1x8x1xf32> -> vector<1x8x1xf32>
    "tpu.trace_start"() <{level = 10 : i32, message = "bqk,bkd->bqd"}> : () -> ()
    %cst_31 = arith.constant dense<0.000000e+00> : vector<1x8x128xf32>
    %60 = tpu.matmul %56, %50, %cst_31 {dimension_numbers = #tpu.dot_dimension_numbers<[2], [1], [1], [2], [0, 0, 0, 1, 1, 2], [0], [0]>} : vector<1x8x8xf32>, vector<1x8x128xf32>, vector<1x8x128xf32> -> vector<1x8x128xf32>
    "tpu.trace_stop"() : () -> ()
    %61 = vector.broadcast %59 : vector<1x8x1xf32> to vector<1x8x128xf32>
    %62 = arith.mulf %60, %61 : vector<1x8x128xf32>
    %63 = vector.shape_cast %62 : vector<1x8x128xf32> to vector<8x128xf32>
    %c0_32 = arith.constant 0 : index
    %c256_33 = arith.constant 256 : index
    %64 = vector.load %arg7[%c0_32, %c256_33] : memref<8x1024xf32, #tpu.memory_space<vmem>>, vector<8x128xf32>
    tpu.vector_store %arg7[%c0_32, %c256_33], %63 {strides = array<i32>} : memref<8x1024xf32, #tpu.memory_space<vmem>>, vector<8x128xf32>,
    %c0_34 = arith.constant 0 : index
    %c384 = arith.constant 384 : index
    %65 = vector.load %arg6[%c0_34, %c384] : memref<8x3072xf32, #tpu.memory_space<vmem>>, vector<8x128xf32>
    %66 = vector.shape_cast %65 : vector<8x128xf32> to vector<1x8x128xf32>
    %c0_35 = arith.constant 0 : index
    %c1408 = arith.constant 1408 : index
    %67 = vector.load %arg6[%c0_35, %c1408] : memref<8x3072xf32, #tpu.memory_space<vmem>>, vector<8x128xf32>
    %68 = vector.shape_cast %67 : vector<8x128xf32> to vector<1x8x128xf32>
    %c0_36 = arith.constant 0 : index
    %c2432 = arith.constant 2432 : index
    %69 = vector.load %arg6[%c0_36, %c2432] : memref<8x3072xf32, #tpu.memory_space<vmem>>, vector<8x128xf32>
    %70 = vector.shape_cast %69 : vector<8x128xf32> to vector<1x8x128xf32>
    "tpu.trace_start"() <{level = 10 : i32, message = "bqd,bkd->bqk"}> : () -> ()
    %cst_37 = arith.constant dense<0.000000e+00> : vector<1x8x8xf32>
    %71 = tpu.matmul %66, %68, %cst_37 {dimension_numbers = #tpu.dot_dimension_numbers<[2], [2], [1], [1], [0, 0, 0, 1, 1, 1], [0], [0]>} : vector<1x8x128xf32>, vector<1x8x128xf32>, vector<1x8x8xf32> -> vector<1x8x8xf32>
    "tpu.trace_stop"() : () -> ()
    %cst_38 = arith.constant dense<0xFF800000> : vector<1x8xf32>
    %72 = vector.multi_reduction <maximumf>, %71, %cst_38 [2] : vector<1x8x8xf32> to vector<1x8xf32>
    %73 = vector.shape_cast %72 : vector<1x8xf32> to vector<1x8x1xf32>
    %74 = vector.broadcast %73 : vector<1x8x1xf32> to vector<1x8x8xf32>
    %75 = arith.subf %71, %74 : vector<1x8x8xf32>
    %76 = math.exp %75 : vector<1x8x8xf32>
    %cst_39 = arith.constant dense<0.000000e+00> : vector<1x8xf32>
    %77 = vector.multi_reduction <add>, %76, %cst_39 [2] : vector<1x8x8xf32> to vector<1x8xf32>
    %78 = vector.shape_cast %77 : vector<1x8xf32> to vector<1x8x1xf32>
    %79 = tpu.reciprocal %78 {approx = true} : vector<1x8x1xf32> -> vector<1x8x1xf32>
    "tpu.trace_start"() <{level = 10 : i32, message = "bqk,bkd->bqd"}> : () -> ()
    %cst_40 = arith.constant dense<0.000000e+00> : vector<1x8x128xf32>
    %80 = tpu.matmul %76, %70, %cst_40 {dimension_numbers = #tpu.dot_dimension_numbers<[2], [1], [1], [2], [0, 0, 0, 1, 1, 2], [0], [0]>} : vector<1x8x8xf32>, vector<1x8x128xf32>, vector<1x8x128xf32> -> vector<1x8x128xf32>
    "tpu.trace_stop"() : () -> ()
    %81 = vector.broadcast %79 : vector<1x8x1xf32> to vector<1x8x128xf32>
    %82 = arith.mulf %80, %81 : vector<1x8x128xf32>
    %83 = vector.shape_cast %82 : vector<1x8x128xf32> to vector<8x128xf32>
    %c0_41 = arith.constant 0 : index
    %c384_42 = arith.constant 384 : index
    %84 = vector.load %arg7[%c0_41, %c384_42] : memref<8x1024xf32, #tpu.memory_space<vmem>>, vector<8x128xf32>
    tpu.vector_store %arg7[%c0_41, %c384_42], %83 {strides = array<i32>} : memref<8x1024xf32, #tpu.memory_space<vmem>>, vector<8x128xf32>,
    %c0_43 = arith.constant 0 : index
    %c512 = arith.constant 512 : index
    %85 = vector.load %arg6[%c0_43, %c512] : memref<8x3072xf32, #tpu.memory_space<vmem>>, vector<8x128xf32>
    %86 = vector.shape_cast %85 : vector<8x128xf32> to vector<1x8x128xf32>
    %c0_44 = arith.constant 0 : index
    %c1536 = arith.constant 1536 : index
    %87 = vector.load %arg6[%c0_44, %c1536] : memref<8x3072xf32, #tpu.memory_space<vmem>>, vector<8x128xf32>
    %88 = vector.shape_cast %87 : vector<8x128xf32> to vector<1x8x128xf32>
    %c0_45 = arith.constant 0 : index
    %c2560 = arith.constant 2560 : index
    %89 = vector.load %arg6[%c0_45, %c2560] : memref<8x3072xf32, #tpu.memory_space<vmem>>, vector<8x128xf32>
    %90 = vector.shape_cast %89 : vector<8x128xf32> to vector<1x8x128xf32>
    "tpu.trace_start"() <{level = 10 : i32, message = "bqd,bkd->bqk"}> : () -> ()
    %cst_46 = arith.constant dense<0.000000e+00> : vector<1x8x8xf32>
    %91 = tpu.matmul %86, %88, %cst_46 {dimension_numbers = #tpu.dot_dimension_numbers<[2], [2], [1], [1], [0, 0, 0, 1, 1, 1], [0], [0]>} : vector<1x8x128xf32>, vector<1x8x128xf32>, vector<1x8x8xf32> -> vector<1x8x8xf32>
    "tpu.trace_stop"() : () -> ()
    %cst_47 = arith.constant dense<0xFF800000> : vector<1x8xf32>
    %92 = vector.multi_reduction <maximumf>, %91, %cst_47 [2] : vector<1x8x8xf32> to vector<1x8xf32>
    %93 = vector.shape_cast %92 : vector<1x8xf32> to vector<1x8x1xf32>
    %94 = vector.broadcast %93 : vector<1x8x1xf32> to vector<1x8x8xf32>
    %95 = arith.subf %91, %94 : vector<1x8x8xf32>
    %96 = math.exp %95 : vector<1x8x8xf32>
    %cst_48 = arith.constant dense<0.000000e+00> : vector<1x8xf32>
    %97 = vector.multi_reduction <add>, %96, %cst_48 [2] : vector<1x8x8xf32> to vector<1x8xf32>
    %98 = vector.shape_cast %97 : vector<1x8xf32> to vector<1x8x1xf32>
    %99 = tpu.reciprocal %98 {approx = true} : vector<1x8x1xf32> -> vector<1x8x1xf32>
    "tpu.trace_start"() <{level = 10 : i32, message = "bqk,bkd->bqd"}> : () -> ()
    %cst_49 = arith.constant dense<0.000000e+00> : vector<1x8x128xf32>
    %100 = tpu.matmul %96, %90, %cst_49 {dimension_numbers = #tpu.dot_dimension_numbers<[2], [1], [1], [2], [0, 0, 0, 1, 1, 2], [0], [0]>} : vector<1x8x8xf32>, vector<1x8x128xf32>, vector<1x8x128xf32> -> vector<1x8x128xf32>
    "tpu.trace_stop"() : () -> ()
    %101 = vector.broadcast %99 : vector<1x8x1xf32> to vector<1x8x128xf32>
    %102 = arith.mulf %100, %101 : vector<1x8x128xf32>
    %103 = vector.shape_cast %102 : vector<1x8x128xf32> to vector<8x128xf32>
    %c0_50 = arith.constant 0 : index
    %c512_51 = arith.constant 512 : index
    %104 = vector.load %arg7[%c0_50, %c512_51] : memref<8x1024xf32, #tpu.memory_space<vmem>>, vector<8x128xf32>
    tpu.vector_store %arg7[%c0_50, %c512_51], %103 {strides = array<i32>} : memref<8x1024xf32, #tpu.memory_space<vmem>>, vector<8x128xf32>,
    %c0_52 = arith.constant 0 : index
    %c640 = arith.constant 640 : index
    %105 = vector.load %arg6[%c0_52, %c640] : memref<8x3072xf32, #tpu.memory_space<vmem>>, vector<8x128xf32>
    %106 = vector.shape_cast %105 : vector<8x128xf32> to vector<1x8x128xf32>
    %c0_53 = arith.constant 0 : index
    %c1664 = arith.constant 1664 : index
    %107 = vector.load %arg6[%c0_53, %c1664] : memref<8x3072xf32, #tpu.memory_space<vmem>>, vector<8x128xf32>
    %108 = vector.shape_cast %107 : vector<8x128xf32> to vector<1x8x128xf32>
    %c0_54 = arith.constant 0 : index
    %c2688 = arith.constant 2688 : index
    %109 = vector.load %arg6[%c0_54, %c2688] : memref<8x3072xf32, #tpu.memory_space<vmem>>, vector<8x128xf32>
    %110 = vector.shape_cast %109 : vector<8x128xf32> to vector<1x8x128xf32>
    "tpu.trace_start"() <{level = 10 : i32, message = "bqd,bkd->bqk"}> : () -> ()
    %cst_55 = arith.constant dense<0.000000e+00> : vector<1x8x8xf32>
    %111 = tpu.matmul %106, %108, %cst_55 {dimension_numbers = #tpu.dot_dimension_numbers<[2], [2], [1], [1], [0, 0, 0, 1, 1, 1], [0], [0]>} : vector<1x8x128xf32>, vector<1x8x128xf32>, vector<1x8x8xf32> -> vector<1x8x8xf32>
    "tpu.trace_stop"() : () -> ()
    %cst_56 = arith.constant dense<0xFF800000> : vector<1x8xf32>
    %112 = vector.multi_reduction <maximumf>, %111, %cst_56 [2] : vector<1x8x8xf32> to vector<1x8xf32>
    %113 = vector.shape_cast %112 : vector<1x8xf32> to vector<1x8x1xf32>
    %114 = vector.broadcast %113 : vector<1x8x1xf32> to vector<1x8x8xf32>
    %115 = arith.subf %111, %114 : vector<1x8x8xf32>
    %116 = math.exp %115 : vector<1x8x8xf32>
    %cst_57 = arith.constant dense<0.000000e+00> : vector<1x8xf32>
    %117 = vector.multi_reduction <add>, %116, %cst_57 [2] : vector<1x8x8xf32> to vector<1x8xf32>
    %118 = vector.shape_cast %117 : vector<1x8xf32> to vector<1x8x1xf32>
    %119 = tpu.reciprocal %118 {approx = true} : vector<1x8x1xf32> -> vector<1x8x1xf32>
    "tpu.trace_start"() <{level = 10 : i32, message = "bqk,bkd->bqd"}> : () -> ()
    %cst_58 = arith.constant dense<0.000000e+00> : vector<1x8x128xf32>
    %120 = tpu.matmul %116, %110, %cst_58 {dimension_numbers = #tpu.dot_dimension_numbers<[2], [1], [1], [2], [0, 0, 0, 1, 1, 2], [0], [0]>} : vector<1x8x8xf32>, vector<1x8x128xf32>, vector<1x8x128xf32> -> vector<1x8x128xf32>
    "tpu.trace_stop"() : () -> ()
    %121 = vector.broadcast %119 : vector<1x8x1xf32> to vector<1x8x128xf32>
    %122 = arith.mulf %120, %121 : vector<1x8x128xf32>
    %123 = vector.shape_cast %122 : vector<1x8x128xf32> to vector<8x128xf32>
    %c0_59 = arith.constant 0 : index
    %c640_60 = arith.constant 640 : index
    %124 = vector.load %arg7[%c0_59, %c640_60] : memref<8x1024xf32, #tpu.memory_space<vmem>>, vector<8x128xf32>
    tpu.vector_store %arg7[%c0_59, %c640_60], %123 {strides = array<i32>} : memref<8x1024xf32, #tpu.memory_space<vmem>>, vector<8x128xf32>,
    %c0_61 = arith.constant 0 : index
    %c768 = arith.constant 768 : index
    %125 = vector.load %arg6[%c0_61, %c768] : memref<8x3072xf32, #tpu.memory_space<vmem>>, vector<8x128xf32>
    %126 = vector.shape_cast %125 : vector<8x128xf32> to vector<1x8x128xf32>
    %c0_62 = arith.constant 0 : index
    %c1792 = arith.constant 1792 : index
    %127 = vector.load %arg6[%c0_62, %c1792] : memref<8x3072xf32, #tpu.memory_space<vmem>>, vector<8x128xf32>
    %128 = vector.shape_cast %127 : vector<8x128xf32> to vector<1x8x128xf32>
    %c0_63 = arith.constant 0 : index
    %c2816 = arith.constant 2816 : index
    %129 = vector.load %arg6[%c0_63, %c2816] : memref<8x3072xf32, #tpu.memory_space<vmem>>, vector<8x128xf32>
    %130 = vector.shape_cast %129 : vector<8x128xf32> to vector<1x8x128xf32>
    "tpu.trace_start"() <{level = 10 : i32, message = "bqd,bkd->bqk"}> : () -> ()
    %cst_64 = arith.constant dense<0.000000e+00> : vector<1x8x8xf32>
    %131 = tpu.matmul %126, %128, %cst_64 {dimension_numbers = #tpu.dot_dimension_numbers<[2], [2], [1], [1], [0, 0, 0, 1, 1, 1], [0], [0]>} : vector<1x8x128xf32>, vector<1x8x128xf32>, vector<1x8x8xf32> -> vector<1x8x8xf32>
    "tpu.trace_stop"() : () -> ()
    %cst_65 = arith.constant dense<0xFF800000> : vector<1x8xf32>
    %132 = vector.multi_reduction <maximumf>, %131, %cst_65 [2] : vector<1x8x8xf32> to vector<1x8xf32>
    %133 = vector.shape_cast %132 : vector<1x8xf32> to vector<1x8x1xf32>
    %134 = vector.broadcast %133 : vector<1x8x1xf32> to vector<1x8x8xf32>
    %135 = arith.subf %131, %134 : vector<1x8x8xf32>
    %136 = math.exp %135 : vector<1x8x8xf32>
    %cst_66 = arith.constant dense<0.000000e+00> : vector<1x8xf32>
    %137 = vector.multi_reduction <add>, %136, %cst_66 [2] : vector<1x8x8xf32> to vector<1x8xf32>
    %138 = vector.shape_cast %137 : vector<1x8xf32> to vector<1x8x1xf32>
    %139 = tpu.reciprocal %138 {approx = true} : vector<1x8x1xf32> -> vector<1x8x1xf32>
    "tpu.trace_start"() <{level = 10 : i32, message = "bqk,bkd->bqd"}> : () -> ()
    %cst_67 = arith.constant dense<0.000000e+00> : vector<1x8x128xf32>
    %140 = tpu.matmul %136, %130, %cst_67 {dimension_numbers = #tpu.dot_dimension_numbers<[2], [1], [1], [2], [0, 0, 0, 1, 1, 2], [0], [0]>} : vector<1x8x8xf32>, vector<1x8x128xf32>, vector<1x8x128xf32> -> vector<1x8x128xf32>
    "tpu.trace_stop"() : () -> ()
    %141 = vector.broadcast %139 : vector<1x8x1xf32> to vector<1x8x128xf32>
    %142 = arith.mulf %140, %141 : vector<1x8x128xf32>
    %143 = vector.shape_cast %142 : vector<1x8x128xf32> to vector<8x128xf32>
    %c0_68 = arith.constant 0 : index
    %c768_69 = arith.constant 768 : index
    %144 = vector.load %arg7[%c0_68, %c768_69] : memref<8x1024xf32, #tpu.memory_space<vmem>>, vector<8x128xf32>
    tpu.vector_store %arg7[%c0_68, %c768_69], %143 {strides = array<i32>} : memref<8x1024xf32, #tpu.memory_space<vmem>>, vector<8x128xf32>,
    %c0_70 = arith.constant 0 : index
    %c896 = arith.constant 896 : index
    %145 = vector.load %arg6[%c0_70, %c896] : memref<8x3072xf32, #tpu.memory_space<vmem>>, vector<8x128xf32>
    %146 = vector.shape_cast %145 : vector<8x128xf32> to vector<1x8x128xf32>
    %c0_71 = arith.constant 0 : index
    %c1920 = arith.constant 1920 : index
    %147 = vector.load %arg6[%c0_71, %c1920] : memref<8x3072xf32, #tpu.memory_space<vmem>>, vector<8x128xf32>
    %148 = vector.shape_cast %147 : vector<8x128xf32> to vector<1x8x128xf32>
    %c0_72 = arith.constant 0 : index
    %c2944 = arith.constant 2944 : index
    %149 = vector.load %arg6[%c0_72, %c2944] : memref<8x3072xf32, #tpu.memory_space<vmem>>, vector<8x128xf32>
    %150 = vector.shape_cast %149 : vector<8x128xf32> to vector<1x8x128xf32>
    "tpu.trace_start"() <{level = 10 : i32, message = "bqd,bkd->bqk"}> : () -> ()
    %cst_73 = arith.constant dense<0.000000e+00> : vector<1x8x8xf32>
    %151 = tpu.matmul %146, %148, %cst_73 {dimension_numbers = #tpu.dot_dimension_numbers<[2], [2], [1], [1], [0, 0, 0, 1, 1, 1], [0], [0]>} : vector<1x8x128xf32>, vector<1x8x128xf32>, vector<1x8x8xf32> -> vector<1x8x8xf32>
    "tpu.trace_stop"() : () -> ()
    %cst_74 = arith.constant dense<0xFF800000> : vector<1x8xf32>
    %152 = vector.multi_reduction <maximumf>, %151, %cst_74 [2] : vector<1x8x8xf32> to vector<1x8xf32>
    %153 = vector.shape_cast %152 : vector<1x8xf32> to vector<1x8x1xf32>
    %154 = vector.broadcast %153 : vector<1x8x1xf32> to vector<1x8x8xf32>
    %155 = arith.subf %151, %154 : vector<1x8x8xf32>
    %156 = math.exp %155 : vector<1x8x8xf32>
    %cst_75 = arith.constant dense<0.000000e+00> : vector<1x8xf32>
    %157 = vector.multi_reduction <add>, %156, %cst_75 [2] : vector<1x8x8xf32> to vector<1x8xf32>
    %158 = vector.shape_cast %157 : vector<1x8xf32> to vector<1x8x1xf32>
    %159 = tpu.reciprocal %158 {approx = true} : vector<1x8x1xf32> -> vector<1x8x1xf32>
    "tpu.trace_start"() <{level = 10 : i32, message = "bqk,bkd->bqd"}> : () -> ()
    %cst_76 = arith.constant dense<0.000000e+00> : vector<1x8x128xf32>
    %160 = tpu.matmul %156, %150, %cst_76 {dimension_numbers = #tpu.dot_dimension_numbers<[2], [1], [1], [2], [0, 0, 0, 1, 1, 2], [0], [0]>} : vector<1x8x8xf32>, vector<1x8x128xf32>, vector<1x8x128xf32> -> vector<1x8x128xf32>
    "tpu.trace_stop"() : () -> ()
    %161 = vector.broadcast %159 : vector<1x8x1xf32> to vector<1x8x128xf32>
    %162 = arith.mulf %160, %161 : vector<1x8x128xf32>
    %163 = vector.shape_cast %162 : vector<1x8x128xf32> to vector<8x128xf32>
    %c0_77 = arith.constant 0 : index
    %c896_78 = arith.constant 896 : index
    %164 = vector.load %arg7[%c0_77, %c896_78] : memref<8x1024xf32, #tpu.memory_space<vmem>>, vector<8x128xf32>
    tpu.vector_store %arg7[%c0_77, %c896_78], %163 {strides = array<i32>} : memref<8x1024xf32, #tpu.memory_space<vmem>>, vector<8x128xf32>,
    %c0_79 = arith.constant 0 : index
    %c0_80 = arith.constant 0 : index
    %165 = vector.load %arg7[%c0_79, %c0_80] : memref<8x1024xf32, #tpu.memory_space<vmem>>, vector<8x1024xf32>
    %c0_81 = arith.constant 0 : index
    %c0_82 = arith.constant 0 : index
    %166 = vector.load %arg3[%c0_81, %c0_82] : memref<1024x32xf32, #tpu.memory_space<vmem>>, vector<1024x32xf32>
    %cst_83 = arith.constant dense<0.000000e+00> : vector<8x32xf32>
    %167 = tpu.matmul %165, %166, %cst_83 {dimension_numbers = #tpu.dot_dimension_numbers<[1], [0], [0], [1], [0, 0, 1, 1], [], []>} : vector<8x1024xf32>, vector<1024x32xf32>, vector<8x32xf32> -> vector<8x32xf32>
    %c0_84 = arith.constant 0 : index
    %c0_85 = arith.constant 0 : index
    %168 = vector.load %arg4[%c0_84, %c0_85] : memref<1x32xf32, #tpu.memory_space<vmem>>, vector<1x32xf32>
    %169 = vector.broadcast %168 : vector<1x32xf32> to vector<8x32xf32>
    %170 = arith.addf %167, %169 : vector<8x32xf32>
    %171 = vector.shape_cast %170 : vector<8x32xf32> to vector<1x8x32xf32>
    %c0_86 = arith.constant 0 : index
    %c0_87 = arith.constant 0 : index
    %c0_88 = arith.constant 0 : index
    %172 = vector.load %arg5[%c0_86, %c0_87, %c0_88] : memref<1x8x32xf32, #tpu.memory_space<vmem>>, vector<1x8x32xf32>
    tpu.vector_store %arg5[%c0_86, %c0_87, %c0_88], %171 {strides = array<i32>} : memref<1x8x32xf32, #tpu.memory_space<vmem>>, vector<1x8x32xf32>,
    return
  }
  func.func @transform_0(%arg0: i32) -> (i32, i32, i32) {
    %c0_i32 = arith.constant 0 : i32
    %c0_i32_0 = arith.constant 0 : i32
    %c0_i32_1 = arith.constant 0 : i32
    return %arg0, %c0_i32, %c0_i32_0 : i32, i32, i32
  }
  func.func @transform_1(%arg0: i32) -> (i32, i32) {
    %c0_i32 = arith.constant 0 : i32
    %c0_i32_0 = arith.constant 0 : i32
    %c0_i32_1 = arith.constant 0 : i32
    return %c0_i32, %c0_i32_0 : i32, i32
  }
  func.func @transform_2(%arg0: i32) -> (i32, i32) {
    %c0_i32 = arith.constant 0 : i32
    %c0_i32_0 = arith.constant 0 : i32
    %c0_i32_1 = arith.constant 0 : i32
    return %c0_i32, %c0_i32_0 : i32, i32
  }
  func.func @transform_3(%arg0: i32) -> (i32, i32) {
    %c0_i32 = arith.constant 0 : i32
    %c0_i32_0 = arith.constant 0 : i32
    %c0_i32_1 = arith.constant 0 : i32
    return %c0_i32, %c0_i32_0 : i32, i32
  }
  func.func @transform_4(%arg0: i32) -> (i32, i32, i32) {
    %c0_i32 = arith.constant 0 : i32
    %c0_i32_0 = arith.constant 0 : i32
    %c0_i32_1 = arith.constant 0 : i32
    return %arg0, %c0_i32, %c0_i32_0 : i32, i32, i32
  }
}

</mosaic_0001>

<llo_original>
// kernel: tpu_custom_call.1
$region0: #{tpu_custom_call.1}
  #allocation0 [shape = 'u32[]', space=smem, size = 0x4, offset = 0x4, fixed_abs, tag = 'smem constant byte address 0x4 - core index']
  #allocation1 [shape = 'u32[144,128]{1,0:T(1,128)}', space=vmem, size = 0x12000, scoped, tag = 'internal scratch']
  #allocation2 [shape = 'f32[8,3072]{1,0:T(8,128)}', space=vmem, size = 0x18000, scoped, tag = 'scratch operand']
  #allocation3 [shape = 'f32[8,1024]{1,0:T(8,128)}', space=vmem, size = 0x8000, scoped, tag = 'scratch operand']
  %s0 = inlined_call_operand.vmem [shape: f32[2,8,32], index: 0, kind: input, shape index: {}]
  %s1 = inlined_call_operand.vmem [shape: f32[32,3072], index: 1, kind: input, shape index: {}]
  %s2 = inlined_call_operand.vmem [shape: f32[1024,32], index: 2, kind: input, shape index: {}]
  %s3 = inlined_call_operand.vmem [shape: f32[1,32], index: 3, kind: input, shape index: {}]
  %s4 = inlined_call_operand.hbm [shape: f32[2,8,32], index: 4, kind: output, shape index: {}]
  %s5 = sld [smem:[#allocation0]]
  $region49: #{tpu_custom_call.1} parent=0
    _
  %s7 = ssub.s32 1, %s5
  %s8 = scalar_select 0, %s7, %s5
  $region1: #{tpu_custom_call.1} parent=0
    #allocation4 [shape = 'u8[8192]{0}', space=vmem, size = 0x2000, scoped, tag = 'output window, operand 0']
    #allocation5 [shape = 's32[2]{0}', space=sflag, size = 0x8, scoped, tag = 'scoped memory for tpu_custom_call.1']
    %9 = vsyncpa [#allocation5], 0
    %s10 = scalar_lea.sflag [#allocation5], 1
    %11 = vsyncpa %s10, 0
    loop: start=0, step=1, limit=4
    $region2: #{tpu_custom_call.1} parent=1 // loop_pre_header
      _
    $region3: #{tpu_custom_call.1} parent=1 // loop_header
      %s13 = sphi 0, %s17
      %p14 = scmp.ge.s32.totalorder %s13, 4
      %s23 = sphi 0, %s25
      %s26 = sphi 0, %s23
      %s27 = sphi 0, %s26
      %s43 = sphi 0, %s27
      %s47 = sphi 0, %s47
      %s49 = sphi 0, %s47
      %s50 = sphi 0, %s49
      %s64 = sphi 0, %s50
      %s68 = sphi 0, %s68
      %s70 = sphi 0, %s68
      %s71 = sphi 0, %s70
      %s85 = sphi 0, %s71
      %s89 = sphi 0, %s89
      %s91 = sphi 0, %s89
      %s92 = sphi 0, %s91
      %s106 = sphi 0, %s92
      %s112 = sphi 0, %s114
      %s115 = sphi 0, %s112
      %s116 = sphi 0, %s115
      %s132 = sphi 0, %s116
    $region4: #{tpu_custom_call.1} parent=1 // loop_header_branch
      %16 = sbr.rel (%p14) target = $region8
    $region5: #{tpu_custom_call.1} parent=1 // loop_body
      %s18 = ssub.s32 %s13, 1
      %s19 = ssub.s32 %s13, 2
      %s20 = sadd.s32 %s13, 1
      %s21 = ssub.s32 %s13, %s20
      %p22 = scmp.eq.s32.totalorder %s21, 0
      %s24 = sadd.s32 %s23, 1
      %s25 = scalar_select %p22, %s23, %s24
      %p28 = pneg %p22
      %p29 = scmp.eq.s32.totalorder %s13, 1
      %p30 = por %p28, %p29
      %p31 = scmp.ne.s32.totalorder %s23, %s26
      %p32 = scmp.eq.s32.totalorder %s13, 0
      %p33 = por %p31, %p32
      %p34 = scmp.ne.s32.totalorder %s23, %s26
      %p35 = scmp.eq.s32.totalorder %s18, 1
      %p36 = por %p34, %p35
      %p37 = scmp.ne.s32.totalorder %s26, %s27
      %p38 = scmp.eq.s32.totalorder %s18, 0
      %p39 = por %p37, %p38
      %p40 = scmp.ne.s32.totalorder %s26, %s27
      %p41 = scmp.eq.s32.totalorder %s19, 1
      %p42 = por %p40, %p41
      %p44 = scmp.ne.s32.totalorder %s27, %s43
      %p45 = scmp.eq.s32.totalorder %s19, 0
      %p46 = por %p44, %p45
      %s48 = sadd.s32 %s47, 1
      %p51 = scmp.eq.s32.totalorder %s13, 1
      %p52 = scmp.ne.s32.totalorder %s47, %s49
      %p53 = scmp.eq.s32.totalorder %s13, 0
      %p54 = por %p52, %p53
      %p55 = scmp.ne.s32.totalorder %s47, %s49
      %p56 = scmp.eq.s32.totalorder %s18, 1
      %p57 = por %p55, %p56
      %p58 = scmp.ne.s32.totalorder %s49, %s50
      %p59 = scmp.eq.s32.totalorder %s18, 0
      %p60 = por %p58, %p59
      %p61 = scmp.ne.s32.totalorder %s49, %s50
      %p62 = scmp.eq.s32.totalorder %s19, 1
      %p63 = por %p61, %p62
      %p65 = scmp.ne.s32.totalorder %s50, %s64
      %p66 = scmp.eq.s32.totalorder %s19, 0
      %p67 = por %p65, %p66
      %s69 = sadd.s32 %s68, 1
      %p72 = scmp.eq.s32.totalorder %s13, 1
      %p73 = scmp.ne.s32.totalorder %s68, %s70
      %p74 = scmp.eq.s32.totalorder %s13, 0
      %p75 = por %p73, %p74
      %p76 = scmp.ne.s32.totalorder %s68, %s70
      %p77 = scmp.eq.s32.totalorder %s18, 1
      %p78 = por %p76, %p77
      %p79 = scmp.ne.s32.totalorder %s70, %s71
      %p80 = scmp.eq.s32.totalorder %s18, 0
      %p81 = por %p79, %p80
      %p82 = scmp.ne.s32.totalorder %s70, %s71
      %p83 = scmp.eq.s32.totalorder %s19, 1
      %p84 = por %p82, %p83
      %p86 = scmp.ne.s32.totalorder %s71, %s85
      %p87 = scmp.eq.s32.totalorder %s19, 0
      %p88 = por %p86, %p87
      %s90 = sadd.s32 %s89, 1
      %p93 = scmp.eq.s32.totalorder %s13, 1
      %p94 = scmp.ne.s32.totalorder %s89, %s91
      %p95 = scmp.eq.s32.totalorder %s13, 0
      %p96 = por %p94, %p95
      %p97 = scmp.ne.s32.totalorder %s89, %s91
      %p98 = scmp.eq.s32.totalorder %s18, 1
      %p99 = por %p97, %p98
      %p100 = scmp.ne.s32.totalorder %s91, %s92
      %p101 = scmp.eq.s32.totalorder %s18, 0
      %p102 = por %p100, %p101
      %p103 = scmp.ne.s32.totalorder %s91, %s92
      %p104 = scmp.eq.s32.totalorder %s19, 1
      %p105 = por %p103, %p104
      %p107 = scmp.ne.s32.totalorder %s92, %s106
      %p108 = scmp.eq.s32.totalorder %s19, 0
      %p109 = por %p107, %p108
      %s110 = ssub.s32 %s13, %s20
      %p111 = scmp.eq.s32.totalorder %s110, 0
      %s113 = sadd.s32 %s112, 1
      %s114 = scalar_select %p111, %s112, %s113
      %p117 = pneg %p111
      %p118 = scmp.eq.s32.totalorder %s13, 1
      %p119 = por %p117, %p118
      %p120 = scmp.ne.s32.totalorder %s112, %s115
      %p121 = scmp.eq.s32.totalorder %s13, 0
      %p122 = por %p120, %p121
      %p123 = scmp.ne.s32.totalorder %s112, %s115
      %p124 = scmp.eq.s32.totalorder %s18, 1
      %p125 = por %p123, %p124
      %p126 = scmp.ne.s32.totalorder %s115, %s116
      %p127 = scmp.eq.s32.totalorder %s18, 0
      %p128 = por %p126, %p127
      %p129 = scmp.ne.s32.totalorder %s115, %s116
      %p130 = scmp.eq.s32.totalorder %s19, 1
      %p131 = por %p129, %p130
      %p133 = scmp.ne.s32.totalorder %s116, %s132
      %p134 = scmp.eq.s32.totalorder %s19, 0
      %p135 = por %p133, %p134
      %p136 = scmp.le.s32.totalorder 1, %s13
      %p137 = scmp.lt.s32.totalorder %s13, 3
      %p138 = pnand %p136, %p137
      %p139 = pneg %p138
      // Predicated region
      $region9: #{tpu_custom_call.1} parent=5 // pred_check
        _
      $region10: #{tpu_custom_call.1} parent=5 // pred_check_branch
        %141 = sbr.rel (%p138) target = $region12
      $region11: #{tpu_custom_call.1} parent=5 // pred_region
        %s142 = ssub.s32 %s13, 1
        // Predicated region
        $region13: #{tpu_custom_call.1} parent=11 // pred_check
          %p143 = pneg %p60
        $region14: #{tpu_custom_call.1} parent=11 // pred_check_branch
          %145 = sbr.rel (%p143) target = $region16
        $region15: #{tpu_custom_call.1} parent=11 // pred_region
          _
        $region16: #{tpu_custom_call.1} parent=11 // pred_fallthru
          _
        // Predicated region
        $region17: #{tpu_custom_call.1} parent=11 // pred_check
          %p146 = pneg %p81
        $region18: #{tpu_custom_call.1} parent=11 // pred_check_branch
          %148 = sbr.rel (%p146) target = $region20
        $region19: #{tpu_custom_call.1} parent=11 // pred_region
          _
        $region20: #{tpu_custom_call.1} parent=11 // pred_fallthru
          _
        // Predicated region
        $region21: #{tpu_custom_call.1} parent=11 // pred_check
          %p149 = pneg %p102
        $region22: #{tpu_custom_call.1} parent=11 // pred_check_branch
          %151 = sbr.rel (%p149) target = $region24
        $region23: #{tpu_custom_call.1} parent=11 // pred_region
          _
        $region24: #{tpu_custom_call.1} parent=11 // pred_fallthru
          _
      $region12: #{tpu_custom_call.1} parent=5 // pred_fallthru
        _
      %p152 = scmp.lt.s32.totalorder %s13, 2
      // Predicated region
      $region25: #{tpu_custom_call.1} parent=5 // pred_check
        %p153 = pneg %p152
      $region26: #{tpu_custom_call.1} parent=5 // pred_check_branch
        %155 = sbr.rel (%p153) target = $region28
      $region27: #{tpu_custom_call.1} parent=5 // pred_region
        // Predicated region
        $region29: #{tpu_custom_call.1} parent=27 // pred_check
          %p156 = pneg %p33
        $region30: #{tpu_custom_call.1} parent=27 // pred_check_branch
          %158 = sbr.rel (%p156) target = $region32
        $region31: #{tpu_custom_call.1} parent=27 // pred_region
          %p159 = scmp.lt.s32.totalorder %s13, 1
          %s160 = scalar_select %p159, %s13, 1
          %s161 = smul.addr %s160, 8
          %s162 = scalar_lea.vmem %s0, %s161
        $region32: #{tpu_custom_call.1} parent=27 // pred_fallthru
          _
      $region28: #{tpu_custom_call.1} parent=5 // pred_fallthru
        _
      %p163 = scmp.le.s32.totalorder 1, %s13
      %p164 = scmp.lt.s32.totalorder %s13, 3
      %p165 = pnand %p163, %p164
      %p166 = pneg %p165
      // Predicated region
      $region33: #{tpu_custom_call.1} parent=5 // pred_check
        _
      $region34: #{tpu_custom_call.1} parent=5 // pred_check_branch
        %168 = sbr.rel (%p165) target = $region36
      $region35: #{tpu_custom_call.1} parent=5 // pred_region
        %s169 = ssub.s32 %s13, 1
        %p170 = scmp.lt.s32.totalorder %s18, 1
        %s171 = scalar_select %p170, %s18, 1
        %s172 = smul.addr %s171, 8
        %s173 = scalar_lea.vmem %s0, %s172
        %p174 = pneg %p39
        %p175 = pneg %p36
        %p176 = pneg %p60
        %p177 = pneg %p57
        %p178 = pneg %p81
        %p179 = pneg %p78
        %p180 = pneg %p102
        %p181 = pneg %p99
        %p182 = pneg %p128
        %p183 = pneg %p125
        %s184 = sand.u32 %s115, 1
        %s185 = scalar_lea.sflag [#allocation5], %s184
        %s186 = sand.u32 %s115, 1
        %s187 = smul.addr %s186, 8
        %s188 = scalar_lea.vmem [#allocation4], %s187
        %p189 = scmp.lt.s32.totalorder %s18, 1
        %s190 = scalar_select %p189, %s18, 1
        %s191 = smul.addr %s190, 8
        %s192 = scalar_lea.vmem %s0, %s191
        %v193 = vld [vmem:[%s192] sm:$0xff]
        %v194 = vld [vmem:[%s1] sm:$0xff]
        %v195 = vld [vmem:[%s1 + $0x8] sm:$0xff]
        %v196 = vld [vmem:[%s1 + $0x10] sm:$0xff]
        %v197 = vld [vmem:[%s1 + $0x18] sm:$0xff]
        %v198 = vld [vmem:[%s1 + $0x20] sm:$0xff]
        %v199 = vld [vmem:[%s1 + $0x28] sm:$0xff]
        %v200 = vld [vmem:[%s1 + $0x30] sm:$0xff]
        %v201 = vld [vmem:[%s1 + $0x38] sm:$0xff]
        %v202 = vld [vmem:[%s1 + $0x40] sm:$0xff]
        %v203 = vld [vmem:[%s1 + $0x48] sm:$0xff]
        %v204 = vld [vmem:[%s1 + $0x50] sm:$0xff]
        %v205 = vld [vmem:[%s1 + $0x58] sm:$0xff]
        %v206 = vld [vmem:[%s1 + $0x60] sm:$0xff]
        %v207 = vld [vmem:[%s1 + $0x68] sm:$0xff]
        %v208 = vld [vmem:[%s1 + $0x70] sm:$0xff]
        %v209 = vld [vmem:[%s1 + $0x78] sm:$0xff]
        %v210 = vld [vmem:[%s1 + $0x80] sm:$0xff]
        %v211 = vld [vmem:[%s1 + $0x88] sm:$0xff]
        %v212 = vld [vmem:[%s1 + $0x90] sm:$0xff]
        %v213 = vld [vmem:[%s1 + $0x98] sm:$0xff]
        %v214 = vld [vmem:[%s1 + $0xa0] sm:$0xff]
        %v215 = vld [vmem:[%s1 + $0xa8] sm:$0xff]
        %v216 = vld [vmem:[%s1 + $0xb0] sm:$0xff]
        %v217 = vld [vmem:[%s1 + $0xb8] sm:$0xff]
        %v218 = vld [vmem:[%s1 + $0xc0] sm:$0xff]
        %v219 = vld [vmem:[%s1 + $0xc8] sm:$0xff]
        %v220 = vld [vmem:[%s1 + $0xd0] sm:$0xff]
        %v221 = vld [vmem:[%s1 + $0xd8] sm:$0xff]
        %v222 = vld [vmem:[%s1 + $0xe0] sm:$0xff]
        %v223 = vld [vmem:[%s1 + $0xe8] sm:$0xff]
        %v224 = vld [vmem:[%s1 + $0xf0] sm:$0xff]
        %v225 = vld [vmem:[%s1 + $0xf8] sm:$0xff]
        %v226 = vld [vmem:[%s1 + $0x100] sm:$0xff]
        %v227 = vld [vmem:[%s1 + $0x108] sm:$0xff]
        %v228 = vld [vmem:[%s1 + $0x110] sm:$0xff]
        %v229 = vld [vmem:[%s1 + $0x118] sm:$0xff]
        %v230 = vld [vmem:[%s1 + $0x120] sm:$0xff]
        %v231 = vld [vmem:[%s1 + $0x128] sm:$0xff]
        %v232 = vld [vmem:[%s1 + $0x130] sm:$0xff]
        %v233 = vld [vmem:[%s1 + $0x138] sm:$0xff]
        %v234 = vld [vmem:[%s1 + $0x140] sm:$0xff]
        %v235 = vld [vmem:[%s1 + $0x148] sm:$0xff]
        %v236 = vld [vmem:[%s1 + $0x150] sm:$0xff]
        %v237 = vld [vmem:[%s1 + $0x158] sm:$0xff]
        %v238 = vld [vmem:[%s1 + $0x160] sm:$0xff]
        %v239 = vld [vmem:[%s1 + $0x168] sm:$0xff]
        %v240 = vld [vmem:[%s1 + $0x170] sm:$0xff]
        %v241 = vld [vmem:[%s1 + $0x178] sm:$0xff]
        %v242 = vld [vmem:[%s1 + $0x180] sm:$0xff]
        %v243 = vld [vmem:[%s1 + $0x188] sm:$0xff]
        %v244 = vld [vmem:[%s1 + $0x190] sm:$0xff]
        %v245 = vld [vmem:[%s1 + $0x198] sm:$0xff]
        %v246 = vld [vmem:[%s1 + $0x1a0] sm:$0xff]
        %v247 = vld [vmem:[%s1 + $0x1a8] sm:$0xff]
        %v248 = vld [vmem:[%s1 + $0x1b0] sm:$0xff]
        %v249 = vld [vmem:[%s1 + $0x1b8] sm:$0xff]
        %v250 = vld [vmem:[%s1 + $0x1c0] sm:$0xff]
        %v251 = vld [vmem:[%s1 + $0x1c8] sm:$0xff]
        %v252 = vld [vmem:[%s1 + $0x1d0] sm:$0xff]
        %v253 = vld [vmem:[%s1 + $0x1d8] sm:$0xff]
        %v254 = vld [vmem:[%s1 + $0x1e0] sm:$0xff]
        %v255 = vld [vmem:[%s1 + $0x1e8] sm:$0xff]
        %v256 = vld [vmem:[%s1 + $0x1f0] sm:$0xff]
        %v257 = vld [vmem:[%s1 + $0x1f8] sm:$0xff]
        %v258 = vld [vmem:[%s1 + $0x200] sm:$0xff]
        %v259 = vld [vmem:[%s1 + $0x208] sm:$0xff]
        %v260 = vld [vmem:[%s1 + $0x210] sm:$0xff]
        %v261 = vld [vmem:[%s1 + $0x218] sm:$0xff]
        %v262 = vld [vmem:[%s1 + $0x220] sm:$0xff]
        %v263 = vld [vmem:[%s1 + $0x228] sm:$0xff]
        %v264 = vld [vmem:[%s1 + $0x230] sm:$0xff]
        %v265 = vld [vmem:[%s1 + $0x238] sm:$0xff]
        %v266 = vld [vmem:[%s1 + $0x240] sm:$0xff]
        %v267 = vld [vmem:[%s1 + $0x248] sm:$0xff]
        %v268 = vld [vmem:[%s1 + $0x250] sm:$0xff]
        %v269 = vld [vmem:[%s1 + $0x258] sm:$0xff]
        %v270 = vld [vmem:[%s1 + $0x260] sm:$0xff]
        %v271 = vld [vmem:[%s1 + $0x268] sm:$0xff]
        %v272 = vld [vmem:[%s1 + $0x270] sm:$0xff]
        %v273 = vld [vmem:[%s1 + $0x278] sm:$0xff]
        %v274 = vld [vmem:[%s1 + $0x280] sm:$0xff]
        %v275 = vld [vmem:[%s1 + $0x288] sm:$0xff]
        %v276 = vld [vmem:[%s1 + $0x290] sm:$0xff]
        %v277 = vld [vmem:[%s1 + $0x298] sm:$0xff]
        %v278 = vld [vmem:[%s1 + $0x2a0] sm:$0xff]
        %v279 = vld [vmem:[%s1 + $0x2a8] sm:$0xff]
        %v280 = vld [vmem:[%s1 + $0x2b0] sm:$0xff]
        %v281 = vld [vmem:[%s1 + $0x2b8] sm:$0xff]
        %v282 = vld [vmem:[%s1 + $0x2c0] sm:$0xff]
        %v283 = vld [vmem:[%s1 + $0x2c8] sm:$0xff]
        %v284 = vld [vmem:[%s1 + $0x2d0] sm:$0xff]
        %v285 = vld [vmem:[%s1 + $0x2d8] sm:$0xff]
        %v286 = vld [vmem:[%s1 + $0x2e0] sm:$0xff]
        %v287 = vld [vmem:[%s1 + $0x2e8] sm:$0xff]
        %v288 = vld [vmem:[%s1 + $0x2f0] sm:$0xff]
        %v289 = vld [vmem:[%s1 + $0x2f8] sm:$0xff]
        %vm290 = vcmask 261120
        %v292 = vsel %vm290, %v193, 0
        %294 = vmatprep.subr.mxu0 %v195
        %295 = vmatpush1.msra.mxu0 %v194
        %296 = vmatprep.subr.mxu0 %v219
        %297 = vmatpush1.msra.mxu0 %v218
        %298 = vmatprep.subr.mxu0 %v243
        %299 = vmatpush1.msra.mxu0 %v242
        %300 = vmatprep.subr.mxu0 %v267
        %301 = vmatpush1.msra.mxu0 %v266
        %302 = vmatprep.subr.mxu0 0.0
        %303 = vmatpush1.msra.mxu0 0.0
        %304 = vmatprep.subr.mxu0 0.0
        %305 = vmatpush1.msra.mxu0 0.0
        %306 = vmatprep.subr.mxu0 0.0
        %307 = vmatpush1.msra.mxu0 0.0
        %308 = vmatprep.subr.mxu0 0.0
        %309 = vmatpush1.msra.mxu0 0.0
        %310 = vmatprep.subr.mxu0 0.0
        %311 = vmatpush1.msra.mxu0 0.0
        %312 = vmatprep.subr.mxu0 0.0
        %313 = vmatpush1.msra.mxu0 0.0
        %314 = vmatprep.subr.mxu0 0.0
        %315 = vmatpush1.msra.mxu0 0.0
        %316 = vmatprep.subr.mxu0 0.0
        %317 = vmatpush1.msra.mxu0 0.0
        %318 = vmatprep.subr.mxu0 0.0
        %319 = vmatpush1.msra.mxu0 0.0
        %320 = vmatprep.subr.mxu0 0.0
        %321 = vmatpush1.msra.mxu0 0.0
        %322 = vmatprep.subr.mxu0 0.0
        %323 = vmatpush1.msra.mxu0 0.0
        %324 = vmatprep.subr.mxu0 0.0
        %325 = vmatpush1.msra.mxu0 0.0
        %326 = vmatprep.subr.mxu0 0.0
        %327 = vmatpush1.msra.mxu0 0.0
        %328 = vmatprep.subr.mxu0 0.0
        %329 = vmatpush1.msra.mxu0 0.0
        %330 = vmatprep.subr.mxu0 0.0
        %331 = vmatpush1.msra.mxu0 0.0
        %332 = vmatprep.subr.mxu0 0.0
        %333 = vmatpush1.msra.mxu0 0.0
        %334 = vmatprep.subr.mxu0 0.0
        %335 = vmatpush1.msra.mxu0 0.0
        %336 = vmatprep.subr.mxu0 0.0
        %337 = vmatpush1.msra.mxu0 0.0
        %338 = vmatprep.subr.mxu0 0.0
        %339 = vmatpush1.msra.mxu0 0.0
        %340 = vmatprep.subr.mxu0 0.0
        %341 = vmatpush1.msra.mxu0 0.0
        %342 = vmatprep.subr.mxu0 0.0
        %343 = vmatpush1.msra.mxu0 0.0
        %344 = vmatprep.subr.mxu0 0.0
        %345 = vmatpush1.msra.mxu0 0.0
        %346 = vmatprep.subr.mxu0 0.0
        %347 = vmatpush1.msra.mxu0 0.0
        %348 = vmatprep.subr.mxu0 0.0
        %349 = vmatpush1.msra.mxu0 0.0
        %350 = vmatprep.subr.mxu0 0.0
        %351 = vmatpush1.msra.mxu0 0.0
        %352 = vmatprep.subr.mxu0 0.0
        %353 = vmatpush1.msra.mxu0 0.0
        %354 = vmatprep.subr.mxu0 0.0
        %355 = vmatpush1.msra.mxu0 0.0
        %356 = vmatprep.subr.mxu0 0.0
        %357 = vmatpush1.msra.mxu0 0.0
        %358 = vmatprep.mubr.f32.mxu0 0.0
        %359 = vmatmul.mubr.f32.gmra.mrb[0].mxu0 %v292
        %v360 = vpop.f32.mrb[0].mxu0
        %v361 = vadd.f32 0.0, %v360
        %v362 = vpop.f32.mrb[0].mxu0
        %v363 = vadd.f32 0.0, %v362
        %364 = vdwg.mxu0
        %365 = vmatprep.subr.mxu0 %v197
        %366 = vmatpush1.msra.mxu0 %v196
        %367 = vmatprep.subr.mxu0 %v221
        %368 = vmatpush1.msra.mxu0 %v220
        %369 = vmatprep.subr.mxu0 %v245
        %370 = vmatpush1.msra.mxu0 %v244
        %371 = vmatprep.subr.mxu0 %v269
        %372 = vmatpush1.msra.mxu0 %v268
        %373 = vmatprep.subr.mxu0 0.0
        %374 = vmatpush1.msra.mxu0 0.0
        %375 = vmatprep.subr.mxu0 0.0
        %376 = vmatpush1.msra.mxu0 0.0
        %377 = vmatprep.subr.mxu0 0.0
        %378 = vmatpush1.msra.mxu0 0.0
        %379 = vmatprep.subr.mxu0 0.0
        %380 = vmatpush1.msra.mxu0 0.0
        %381 = vmatprep.subr.mxu0 0.0
        %382 = vmatpush1.msra.mxu0 0.0
        %383 = vmatprep.subr.mxu0 0.0
        %384 = vmatpush1.msra.mxu0 0.0
        %385 = vmatprep.subr.mxu0 0.0
        %386 = vmatpush1.msra.mxu0 0.0
        %387 = vmatprep.subr.mxu0 0.0
        %388 = vmatpush1.msra.mxu0 0.0
        %389 = vmatprep.subr.mxu0 0.0
        %390 = vmatpush1.msra.mxu0 0.0
        %391 = vmatprep.subr.mxu0 0.0
        %392 = vmatpush1.msra.mxu0 0.0
        %393 = vmatprep.subr.mxu0 0.0
        %394 = vmatpush1.msra.mxu0 0.0
        %395 = vmatprep.subr.mxu0 0.0
        %396 = vmatpush1.msra.mxu0 0.0
        %397 = vmatprep.subr.mxu0 0.0
        %398 = vmatpush1.msra.mxu0 0.0
        %399 = vmatprep.subr.mxu0 0.0
        %400 = vmatpush1.msra.mxu0 0.0
        %401 = vmatprep.subr.mxu0 0.0
        %402 = vmatpush1.msra.mxu0 0.0
        %403 = vmatprep.subr.mxu0 0.0
        %404 = vmatpush1.msra.mxu0 0.0
        %405 = vmatprep.subr.mxu0 0.0
        %406 = vmatpush1.msra.mxu0 0.0
        %407 = vmatprep.subr.mxu0 0.0
        %408 = vmatpush1.msra.mxu0 0.0
        %409 = vmatprep.subr.mxu0 0.0
        %410 = vmatpush1.msra.mxu0 0.0
        %411 = vmatprep.subr.mxu0 0.0
        %412 = vmatpush1.msra.mxu0 0.0
        %413 = vmatprep.subr.mxu0 0.0
        %414 = vmatpush1.msra.mxu0 0.0
        %415 = vmatprep.subr.mxu0 0.0
        %416 = vmatpush1.msra.mxu0 0.0
        %417 = vmatprep.subr.mxu0 0.0
        %418 = vmatpush1.msra.mxu0 0.0
        %419 = vmatprep.subr.mxu0 0.0
        %420 = vmatpush1.msra.mxu0 0.0
        %421 = vmatprep.subr.mxu0 0.0
        %422 = vmatpush1.msra.mxu0 0.0
        %423 = vmatprep.subr.mxu0 0.0
        %424 = vmatpush1.msra.mxu0 0.0
        %425 = vmatprep.subr.mxu0 0.0
        %426 = vmatpush1.msra.mxu0 0.0
        %427 = vmatprep.subr.mxu0 0.0
        %428 = vmatpush1.msra.mxu0 0.0
        %429 = vmatprep.mubr.f32.mxu0 0.0
        %430 = vmatmul.mubr.f32.gmra.mrb[0].mxu0 %v292
        %v431 = vpop.f32.mrb[0].mxu0
        %v432 = vadd.f32 0.0, %v431
        %v433 = vpop.f32.mrb[0].mxu0
        %v434 = vadd.f32 0.0, %v433
        %435 = vdwg.mxu0
        %436 = vmatprep.subr.mxu0 %v199
        %437 = vmatpush1.msra.mxu0 %v198
        %438 = vmatprep.subr.mxu0 %v223
        %439 = vmatpush1.msra.mxu0 %v222
        %440 = vmatprep.subr.mxu0 %v247
        %441 = vmatpush1.msra.mxu0 %v246
        %442 = vmatprep.subr.mxu0 %v271
        %443 = vmatpush1.msra.mxu0 %v270
        %444 = vmatprep.subr.mxu0 0.0
        %445 = vmatpush1.msra.mxu0 0.0
        %446 = vmatprep.subr.mxu0 0.0
        %447 = vmatpush1.msra.mxu0 0.0
        %448 = vmatprep.subr.mxu0 0.0
        %449 = vmatpush1.msra.mxu0 0.0
        %450 = vmatprep.subr.mxu0 0.0
        %451 = vmatpush1.msra.mxu0 0.0
        %452 = vmatprep.subr.mxu0 0.0
        %453 = vmatpush1.msra.mxu0 0.0
        %454 = vmatprep.subr.mxu0 0.0
        %455 = vmatpush1.msra.mxu0 0.0
        %456 = vmatprep.subr.mxu0 0.0
        %457 = vmatpush1.msra.mxu0 0.0
        %458 = vmatprep.subr.mxu0 0.0
        %459 = vmatpush1.msra.mxu0 0.0
        %460 = vmatprep.subr.mxu0 0.0
        %461 = vmatpush1.msra.mxu0 0.0
        %462 = vmatprep.subr.mxu0 0.0
        %463 = vmatpush1.msra.mxu0 0.0
        %464 = vmatprep.subr.mxu0 0.0
        %465 = vmatpush1.msra.mxu0 0.0
        %466 = vmatprep.subr.mxu0 0.0
        %467 = vmatpush1.msra.mxu0 0.0
        %468 = vmatprep.subr.mxu0 0.0
        %469 = vmatpush1.msra.mxu0 0.0
        %470 = vmatprep.subr.mxu0 0.0
        %471 = vmatpush1.msra.mxu0 0.0
        %472 = vmatprep.subr.mxu0 0.0
        %473 = vmatpush1.msra.mxu0 0.0
        %474 = vmatprep.subr.mxu0 0.0
        %475 = vmatpush1.msra.mxu0 0.0
        %476 = vmatprep.subr.mxu0 0.0
        %477 = vmatpush1.msra.mxu0 0.0
        %478 = vmatprep.subr.mxu0 0.0
        %479 = vmatpush1.msra.mxu0 0.0
        %480 = vmatprep.subr.mxu0 0.0
        %481 = vmatpush1.msra.mxu0 0.0
        %482 = vmatprep.subr.mxu0 0.0
        %483 = vmatpush1.msra.mxu0 0.0
        %484 = vmatprep.subr.mxu0 0.0
        %485 = vmatpush1.msra.mxu0 0.0
        %486 = vmatprep.subr.mxu0 0.0
        %487 = vmatpush1.msra.mxu0 0.0
        %488 = vmatprep.subr.mxu0 0.0
        %489 = vmatpush1.msra.mxu0 0.0
        %490 = vmatprep.subr.mxu0 0.0
        %491 = vmatpush1.msra.mxu0 0.0
        %492 = vmatprep.subr.mxu0 0.0
        %493 = vmatpush1.msra.mxu0 0.0
        %494 = vmatprep.subr.mxu0 0.0
        %495 = vmatpush1.msra.mxu0 0.0
        %496 = vmatprep.subr.mxu0 0.0
        %497 = vmatpush1.msra.mxu0 0.0
        %498 = vmatprep.subr.mxu0 0.0
        %499 = vmatpush1.msra.mxu0 0.0
        %500 = vmatprep.mubr.f32.mxu0 0.0
        %501 = vmatmul.mubr.f32.gmra.mrb[0].mxu0 %v292
        %v502 = vpop.f32.mrb[0].mxu0
        %v503 = vadd.f32 0.0, %v502
        %v504 = vpop.f32.mrb[0].mxu0
        %v505 = vadd.f32 0.0, %v504
        %506 = vdwg.mxu0
        %507 = vmatprep.subr.mxu0 %v201
        %508 = vmatpush1.msra.mxu0 %v200
        %509 = vmatprep.subr.mxu0 %v225
        %510 = vmatpush1.msra.mxu0 %v224
        %511 = vmatprep.subr.mxu0 %v249
        %512 = vmatpush1.msra.mxu0 %v248
        %513 = vmatprep.subr.mxu0 %v273
        %514 = vmatpush1.msra.mxu0 %v272
        %515 = vmatprep.subr.mxu0 0.0
        %516 = vmatpush1.msra.mxu0 0.0
        %517 = vmatprep.subr.mxu0 0.0
        %518 = vmatpush1.msra.mxu0 0.0
        %519 = vmatprep.subr.mxu0 0.0
        %520 = vmatpush1.msra.mxu0 0.0
        %521 = vmatprep.subr.mxu0 0.0
        %522 = vmatpush1.msra.mxu0 0.0
        %523 = vmatprep.subr.mxu0 0.0
        %524 = vmatpush1.msra.mxu0 0.0
        %525 = vmatprep.subr.mxu0 0.0
        %526 = vmatpush1.msra.mxu0 0.0
        %527 = vmatprep.subr.mxu0 0.0
        %528 = vmatpush1.msra.mxu0 0.0
        %529 = vmatprep.subr.mxu0 0.0
        %530 = vmatpush1.msra.mxu0 0.0
        %531 = vmatprep.subr.mxu0 0.0
        %532 = vmatpush1.msra.mxu0 0.0
        %533 = vmatprep.subr.mxu0 0.0
        %534 = vmatpush1.msra.mxu0 0.0
        %535 = vmatprep.subr.mxu0 0.0
        %536 = vmatpush1.msra.mxu0 0.0
        %537 = vmatprep.subr.mxu0 0.0
        %538 = vmatpush1.msra.mxu0 0.0
        %539 = vmatprep.subr.mxu0 0.0
        %540 = vmatpush1.msra.mxu0 0.0
        %541 = vmatprep.subr.mxu0 0.0
        %542 = vmatpush1.msra.mxu0 0.0
        %543 = vmatprep.subr.mxu0 0.0
        %544 = vmatpush1.msra.mxu0 0.0
        %545 = vmatprep.subr.mxu0 0.0
        %546 = vmatpush1.msra.mxu0 0.0
        %547 = vmatprep.subr.mxu0 0.0
        %548 = vmatpush1.msra.mxu0 0.0
        %549 = vmatprep.subr.mxu0 0.0
        %550 = vmatpush1.msra.mxu0 0.0
        %551 = vmatprep.subr.mxu0 0.0
        %552 = vmatpush1.msra.mxu0 0.0
        %553 = vmatprep.subr.mxu0 0.0
        %554 = vmatpush1.msra.mxu0 0.0
        %555 = vmatprep.subr.mxu0 0.0
        %556 = vmatpush1.msra.mxu0 0.0
        %557 = vmatprep.subr.mxu0 0.0
        %558 = vmatpush1.msra.mxu0 0.0
        %559 = vmatprep.subr.mxu0 0.0
        %560 = vmatpush1.msra.mxu0 0.0
        %561 = vmatprep.subr.mxu0 0.0
        %562 = vmatpush1.msra.mxu0 0.0
        %563 = vmatprep.subr.mxu0 0.0
        %564 = vmatpush1.msra.mxu0 0.0
        %565 = vmatprep.subr.mxu0 0.0
        %566 = vmatpush1.msra.mxu0 0.0
        %567 = vmatprep.subr.mxu0 0.0
        %568 = vmatpush1.msra.mxu0 0.0
        %569 = vmatprep.subr.mxu0 0.0
        %570 = vmatpush1.msra.mxu0 0.0
        %571 = vmatprep.mubr.f32.mxu0 0.0
        %572 = vmatmul.mubr.f32.gmra.mrb[0].mxu0 %v292
        %v573 = vpop.f32.mrb[0].mxu0
        %v574 = vadd.f32 0.0, %v573
        %v575 = vpop.f32.mrb[0].mxu0
        %v576 = vadd.f32 0.0, %v575
        %577 = vdwg.mxu0
        %578 = vmatprep.subr.mxu0 %v203
        %579 = vmatpush1.msra.mxu0 %v202
        %580 = vmatprep.subr.mxu0 %v227
        %581 = vmatpush1.msra.mxu0 %v226
        %582 = vmatprep.subr.mxu0 %v251
        %583 = vmatpush1.msra.mxu0 %v250
        %584 = vmatprep.subr.mxu0 %v275
        %585 = vmatpush1.msra.mxu0 %v274
        %586 = vmatprep.subr.mxu0 0.0
        %587 = vmatpush1.msra.mxu0 0.0
        %588 = vmatprep.subr.mxu0 0.0
        %589 = vmatpush1.msra.mxu0 0.0
        %590 = vmatprep.subr.mxu0 0.0
        %591 = vmatpush1.msra.mxu0 0.0
        %592 = vmatprep.subr.mxu0 0.0
        %593 = vmatpush1.msra.mxu0 0.0
        %594 = vmatprep.subr.mxu0 0.0
        %595 = vmatpush1.msra.mxu0 0.0
        %596 = vmatprep.subr.mxu0 0.0
        %597 = vmatpush1.msra.mxu0 0.0
        %598 = vmatprep.subr.mxu0 0.0
        %599 = vmatpush1.msra.mxu0 0.0
        %600 = vmatprep.subr.mxu0 0.0
        %601 = vmatpush1.msra.mxu0 0.0
        %602 = vmatprep.subr.mxu0 0.0
        %603 = vmatpush1.msra.mxu0 0.0
        %604 = vmatprep.subr.mxu0 0.0
        %605 = vmatpush1.msra.mxu0 0.0
        %606 = vmatprep.subr.mxu0 0.0
        %607 = vmatpush1.msra.mxu0 0.0
        %608 = vmatprep.subr.mxu0 0.0
        %609 = vmatpush1.msra.mxu0 0.0
        %610 = vmatprep.subr.mxu0 0.0
        %611 = vmatpush1.msra.mxu0 0.0
        %612 = vmatprep.subr.mxu0 0.0
        %613 = vmatpush1.msra.mxu0 0.0
        %614 = vmatprep.subr.mxu0 0.0
        %615 = vmatpush1.msra.mxu0 0.0
        %616 = vmatprep.subr.mxu0 0.0
        %617 = vmatpush1.msra.mxu0 0.0
        %618 = vmatprep.subr.mxu0 0.0
        %619 = vmatpush1.msra.mxu0 0.0
        %620 = vmatprep.subr.mxu0 0.0
        %621 = vmatpush1.msra.mxu0 0.0
        %622 = vmatprep.subr.mxu0 0.0
        %623 = vmatpush1.msra.mxu0 0.0
        %624 = vmatprep.subr.mxu0 0.0
        %625 = vmatpush1.msra.mxu0 0.0
        %626 = vmatprep.subr.mxu0 0.0
        %627 = vmatpush1.msra.mxu0 0.0
        %628 = vmatprep.subr.mxu0 0.0
        %629 = vmatpush1.msra.mxu0 0.0
        %630 = vmatprep.subr.mxu0 0.0
        %631 = vmatpush1.msra.mxu0 0.0
        %632 = vmatprep.subr.mxu0 0.0
        %633 = vmatpush1.msra.mxu0 0.0
        %634 = vmatprep.subr.mxu0 0.0
        %635 = vmatpush1.msra.mxu0 0.0
        %636 = vmatprep.subr.mxu0 0.0
        %637 = vmatpush1.msra.mxu0 0.0
        %638 = vmatprep.subr.mxu0 0.0
        %639 = vmatpush1.msra.mxu0 0.0
        %640 = vmatprep.subr.mxu0 0.0
        %641 = vmatpush1.msra.mxu0 0.0
        %642 = vmatprep.mubr.f32.mxu0 0.0
        %643 = vmatmul.mubr.f32.gmra.mrb[0].mxu0 %v292
        %v644 = vpop.f32.mrb[0].mxu0
        %v645 = vadd.f32 0.0, %v644
        %v646 = vpop.f32.mrb[0].mxu0
        %v647 = vadd.f32 0.0, %v646
        %648 = vdwg.mxu0
        %649 = vmatprep.subr.mxu0 %v205
        %650 = vmatpush1.msra.mxu0 %v204
        %651 = vmatprep.subr.mxu0 %v229
        %652 = vmatpush1.msra.mxu0 %v228
        %653 = vmatprep.subr.mxu0 %v253
        %654 = vmatpush1.msra.mxu0 %v252
        %655 = vmatprep.subr.mxu0 %v277
        %656 = vmatpush1.msra.mxu0 %v276
        %657 = vmatprep.subr.mxu0 0.0
        %658 = vmatpush1.msra.mxu0 0.0
        %659 = vmatprep.subr.mxu0 0.0
        %660 = vmatpush1.msra.mxu0 0.0
        %661 = vmatprep.subr.mxu0 0.0
        %662 = vmatpush1.msra.mxu0 0.0
        %663 = vmatprep.subr.mxu0 0.0
        %664 = vmatpush1.msra.mxu0 0.0
        %665 = vmatprep.subr.mxu0 0.0
        %666 = vmatpush1.msra.mxu0 0.0
        %667 = vmatprep.subr.mxu0 0.0
        %668 = vmatpush1.msra.mxu0 0.0
        %669 = vmatprep.subr.mxu0 0.0
        %670 = vmatpush1.msra.mxu0 0.0
        %671 = vmatprep.subr.mxu0 0.0
        %672 = vmatpush1.msra.mxu0 0.0
        %673 = vmatprep.subr.mxu0 0.0
        %674 = vmatpush1.msra.mxu0 0.0
        %675 = vmatprep.subr.mxu0 0.0
        %676 = vmatpush1.msra.mxu0 0.0
        %677 = vmatprep.subr.mxu0 0.0
        %678 = vmatpush1.msra.mxu0 0.0
        %679 = vmatprep.subr.mxu0 0.0
        %680 = vmatpush1.msra.mxu0 0.0
        %681 = vmatprep.subr.mxu0 0.0
        %682 = vmatpush1.msra.mxu0 0.0
        %683 = vmatprep.subr.mxu0 0.0
        %684 = vmatpush1.msra.mxu0 0.0
        %685 = vmatprep.subr.mxu0 0.0
        %686 = vmatpush1.msra.mxu0 0.0
        %687 = vmatprep.subr.mxu0 0.0
        %688 = vmatpush1.msra.mxu0 0.0
        %689 = vmatprep.subr.mxu0 0.0
        %690 = vmatpush1.msra.mxu0 0.0
        %691 = vmatprep.subr.mxu0 0.0
        %692 = vmatpush1.msra.mxu0 0.0
        %693 = vmatprep.subr.mxu0 0.0
        %694 = vmatpush1.msra.mxu0 0.0
        %695 = vmatprep.subr.mxu0 0.0
        %696 = vmatpush1.msra.mxu0 0.0
        %697 = vmatprep.subr.mxu0 0.0
        %698 = vmatpush1.msra.mxu0 0.0
        %699 = vmatprep.subr.mxu0 0.0
        %700 = vmatpush1.msra.mxu0 0.0
        %701 = vmatprep.subr.mxu0 0.0
        %702 = vmatpush1.msra.mxu0 0.0
        %703 = vmatprep.subr.mxu0 0.0
        %704 = vmatpush1.msra.mxu0 0.0
        %705 = vmatprep.subr.mxu0 0.0
        %706 = vmatpush1.msra.mxu0 0.0
        %707 = vmatprep.subr.mxu0 0.0
        %708 = vmatpush1.msra.mxu0 0.0
        %709 = vmatprep.subr.mxu0 0.0
        %710 = vmatpush1.msra.mxu0 0.0
        %711 = vmatprep.subr.mxu0 0.0
        %712 = vmatpush1.msra.mxu0 0.0
        %713 = vmatprep.mubr.f32.mxu0 0.0
        %714 = vmatmul.mubr.f32.gmra.mrb[0].mxu0 %v292
        %v715 = vpop.f32.mrb[0].mxu0
        %v716 = vadd.f32 0.0, %v715
        %v717 = vpop.f32.mrb[0].mxu0
        %v718 = vadd.f32 0.0, %v717
        %719 = vdwg.mxu0
        %720 = vmatprep.subr.mxu0 %v207
        %721 = vmatpush1.msra.mxu0 %v206
        %722 = vmatprep.subr.mxu0 %v231
        %723 = vmatpush1.msra.mxu0 %v230
        %724 = vmatprep.subr.mxu0 %v255
        %725 = vmatpush1.msra.mxu0 %v254
        %726 = vmatprep.subr.mxu0 %v279
        %727 = vmatpush1.msra.mxu0 %v278
        %728 = vmatprep.subr.mxu0 0.0
        %729 = vmatpush1.msra.mxu0 0.0
        %730 = vmatprep.subr.mxu0 0.0
        %731 = vmatpush1.msra.mxu0 0.0
        %732 = vmatprep.subr.mxu0 0.0
        %733 = vmatpush1.msra.mxu0 0.0
        %734 = vmatprep.subr.mxu0 0.0
        %735 = vmatpush1.msra.mxu0 0.0
        %736 = vmatprep.subr.mxu0 0.0
        %737 = vmatpush1.msra.mxu0 0.0
        %738 = vmatprep.subr.mxu0 0.0
        %739 = vmatpush1.msra.mxu0 0.0
        %740 = vmatprep.subr.mxu0 0.0
        %741 = vmatpush1.msra.mxu0 0.0
        %742 = vmatprep.subr.mxu0 0.0
        %743 = vmatpush1.msra.mxu0 0.0
        %744 = vmatprep.subr.mxu0 0.0
        %745 = vmatpush1.msra.mxu0 0.0
        %746 = vmatprep.subr.mxu0 0.0
        %747 = vmatpush1.msra.mxu0 0.0
        %748 = vmatprep.subr.mxu0 0.0
        %749 = vmatpush1.msra.mxu0 0.0
        %750 = vmatprep.subr.mxu0 0.0
        %751 = vmatpush1.msra.mxu0 0.0
        %752 = vmatprep.subr.mxu0 0.0
        %753 = vmatpush1.msra.mxu0 0.0
        %754 = vmatprep.subr.mxu0 0.0
        %755 = vmatpush1.msra.mxu0 0.0
        %756 = vmatprep.subr.mxu0 0.0
        %757 = vmatpush1.msra.mxu0 0.0
        %758 = vmatprep.subr.mxu0 0.0
        %759 = vmatpush1.msra.mxu0 0.0
        %760 = vmatprep.subr.mxu0 0.0
        %761 = vmatpush1.msra.mxu0 0.0
        %762 = vmatprep.subr.mxu0 0.0
        %763 = vmatpush1.msra.mxu0 0.0
        %764 = vmatprep.subr.mxu0 0.0
        %765 = vmatpush1.msra.mxu0 0.0
        %766 = vmatprep.subr.mxu0 0.0
        %767 = vmatpush1.msra.mxu0 0.0
        %768 = vmatprep.subr.mxu0 0.0
        %769 = vmatpush1.msra.mxu0 0.0
        %770 = vmatprep.subr.mxu0 0.0
        %771 = vmatpush1.msra.mxu0 0.0
        %772 = vmatprep.subr.mxu0 0.0
        %773 = vmatpush1.msra.mxu0 0.0
        %774 = vmatprep.subr.mxu0 0.0
        %775 = vmatpush1.msra.mxu0 0.0
        %776 = vmatprep.subr.mxu0 0.0
        %777 = vmatpush1.msra.mxu0 0.0
        %778 = vmatprep.subr.mxu0 0.0
        %779 = vmatpush1.msra.mxu0 0.0
        %780 = vmatprep.subr.mxu0 0.0
        %781 = vmatpush1.msra.mxu0 0.0
        %782 = vmatprep.subr.mxu0 0.0
        %783 = vmatpush1.msra.mxu0 0.0
        %784 = vmatprep.mubr.f32.mxu0 0.0
        %785 = vmatmul.mubr.f32.gmra.mrb[0].mxu0 %v292
        %v786 = vpop.f32.mrb[0].mxu0
        %v787 = vadd.f32 0.0, %v786
        %v788 = vpop.f32.mrb[0].mxu0
        %v789 = vadd.f32 0.0, %v788
        %790 = vdwg.mxu0
        %791 = vmatprep.subr.mxu0 %v209
        %792 = vmatpush1.msra.mxu0 %v208
        %793 = vmatprep.subr.mxu0 %v233
        %794 = vmatpush1.msra.mxu0 %v232
        %795 = vmatprep.subr.mxu0 %v257
        %796 = vmatpush1.msra.mxu0 %v256
        %797 = vmatprep.subr.mxu0 %v281
        %798 = vmatpush1.msra.mxu0 %v280
        %799 = vmatprep.subr.mxu0 0.0
        %800 = vmatpush1.msra.mxu0 0.0
        %801 = vmatprep.subr.mxu0 0.0
        %802 = vmatpush1.msra.mxu0 0.0
        %803 = vmatprep.subr.mxu0 0.0
        %804 = vmatpush1.msra.mxu0 0.0
        %805 = vmatprep.subr.mxu0 0.0
        %806 = vmatpush1.msra.mxu0 0.0
        %807 = vmatprep.subr.mxu0 0.0
        %808 = vmatpush1.msra.mxu0 0.0
        %809 = vmatprep.subr.mxu0 0.0
        %810 = vmatpush1.msra.mxu0 0.0
        %811 = vmatprep.subr.mxu0 0.0
        %812 = vmatpush1.msra.mxu0 0.0
        %813 = vmatprep.subr.mxu0 0.0
        %814 = vmatpush1.msra.mxu0 0.0
        %815 = vmatprep.subr.mxu0 0.0
        %816 = vmatpush1.msra.mxu0 0.0
        %817 = vmatprep.subr.mxu0 0.0
        %818 = vmatpush1.msra.mxu0 0.0
        %819 = vmatprep.subr.mxu0 0.0
        %820 = vmatpush1.msra.mxu0 0.0
        %821 = vmatprep.subr.mxu0 0.0
        %822 = vmatpush1.msra.mxu0 0.0
        %823 = vmatprep.subr.mxu0 0.0
        %824 = vmatpush1.msra.mxu0 0.0
        %825 = vmatprep.subr.mxu0 0.0
        %826 = vmatpush1.msra.mxu0 0.0
        %827 = vmatprep.subr.mxu0 0.0
        %828 = vmatpush1.msra.mxu0 0.0
        %829 = vmatprep.subr.mxu0 0.0
        %830 = vmatpush1.msra.mxu0 0.0
        %831 = vmatprep.subr.mxu0 0.0
        %832 = vmatpush1.msra.mxu0 0.0
        %833 = vmatprep.subr.mxu0 0.0
        %834 = vmatpush1.msra.mxu0 0.0
        %835 = vmatprep.subr.mxu0 0.0
        %836 = vmatpush1.msra.mxu0 0.0
        %837 = vmatprep.subr.mxu0 0.0
        %838 = vmatpush1.msra.mxu0 0.0
        %839 = vmatprep.subr.mxu0 0.0
        %840 = vmatpush1.msra.mxu0 0.0
        %841 = vmatprep.subr.mxu0 0.0
        %842 = vmatpush1.msra.mxu0 0.0
        %843 = vmatprep.subr.mxu0 0.0
        %844 = vmatpush1.msra.mxu0 0.0
        %845 = vmatprep.subr.mxu0 0.0
        %846 = vmatpush1.msra.mxu0 0.0
        %847 = vmatprep.subr.mxu0 0.0
        %848 = vmatpush1.msra.mxu0 0.0
        %849 = vmatprep.subr.mxu0 0.0
        %850 = vmatpush1.msra.mxu0 0.0
        %851 = vmatprep.subr.mxu0 0.0
        %852 = vmatpush1.msra.mxu0 0.0
        %853 = vmatprep.subr.mxu0 0.0
        %854 = vmatpush1.msra.mxu0 0.0
        %855 = vmatprep.mubr.f32.mxu0 0.0
        %856 = vmatmul.mubr.f32.gmra.mrb[0].mxu0 %v292
        %v857 = vpop.f32.mrb[0].mxu0
        %v858 = vadd.f32 0.0, %v857
        %v859 = vpop.f32.mrb[0].mxu0
        %v860 = vadd.f32 0.0, %v859
        %861 = vdwg.mxu0
        %862 = vmatprep.subr.mxu0 %v211
        %863 = vmatpush1.msra.mxu0 %v210
        %864 = vmatprep.subr.mxu0 %v235
        %865 = vmatpush1.msra.mxu0 %v234
        %866 = vmatprep.subr.mxu0 %v259
        %867 = vmatpush1.msra.mxu0 %v258
        %868 = vmatprep.subr.mxu0 %v283
        %869 = vmatpush1.msra.mxu0 %v282
        %870 = vmatprep.subr.mxu0 0.0
        %871 = vmatpush1.msra.mxu0 0.0
        %872 = vmatprep.subr.mxu0 0.0
        %873 = vmatpush1.msra.mxu0 0.0
        %874 = vmatprep.subr.mxu0 0.0
        %875 = vmatpush1.msra.mxu0 0.0
        %876 = vmatprep.subr.mxu0 0.0
        %877 = vmatpush1.msra.mxu0 0.0
        %878 = vmatprep.subr.mxu0 0.0
        %879 = vmatpush1.msra.mxu0 0.0
        %880 = vmatprep.subr.mxu0 0.0
        %881 = vmatpush1.msra.mxu0 0.0
        %882 = vmatprep.subr.mxu0 0.0
        %883 = vmatpush1.msra.mxu0 0.0
        %884 = vmatprep.subr.mxu0 0.0
        %885 = vmatpush1.msra.mxu0 0.0
        %886 = vmatprep.subr.mxu0 0.0
        %887 = vmatpush1.msra.mxu0 0.0
        %888 = vmatprep.subr.mxu0 0.0
        %889 = vmatpush1.msra.mxu0 0.0
        %890 = vmatprep.subr.mxu0 0.0
        %891 = vmatpush1.msra.mxu0 0.0
        %892 = vmatprep.subr.mxu0 0.0
        %893 = vmatpush1.msra.mxu0 0.0
        %894 = vmatprep.subr.mxu0 0.0
        %895 = vmatpush1.msra.mxu0 0.0
        %896 = vmatprep.subr.mxu0 0.0
        %897 = vmatpush1.msra.mxu0 0.0
        %898 = vmatprep.subr.mxu0 0.0
        %899 = vmatpush1.msra.mxu0 0.0
        %900 = vmatprep.subr.mxu0 0.0
        %901 = vmatpush1.msra.mxu0 0.0
        %902 = vmatprep.subr.mxu0 0.0
        %903 = vmatpush1.msra.mxu0 0.0
        %904 = vmatprep.subr.mxu0 0.0
        %905 = vmatpush1.msra.mxu0 0.0
        %906 = vmatprep.subr.mxu0 0.0
        %907 = vmatpush1.msra.mxu0 0.0
        %908 = vmatprep.subr.mxu0 0.0
        %909 = vmatpush1.msra.mxu0 0.0
        %910 = vmatprep.subr.mxu0 0.0
        %911 = vmatpush1.msra.mxu0 0.0
        %912 = vmatprep.subr.mxu0 0.0
        %913 = vmatpush1.msra.mxu0 0.0
        %914 = vmatprep.subr.mxu0 0.0
        %915 = vmatpush1.msra.mxu0 0.0
        %916 = vmatprep.subr.mxu0 0.0
        %917 = vmatpush1.msra.mxu0 0.0
        %918 = vmatprep.subr.mxu0 0.0
        %919 = vmatpush1.msra.mxu0 0.0
        %920 = vmatprep.subr.mxu0 0.0
        %921 = vmatpush1.msra.mxu0 0.0
        %922 = vmatprep.subr.mxu0 0.0
        %923 = vmatpush1.msra.mxu0 0.0
        %924 = vmatprep.subr.mxu0 0.0
        %925 = vmatpush1.msra.mxu0 0.0
        %926 = vmatprep.mubr.f32.mxu0 0.0
        %927 = vmatmul.mubr.f32.gmra.mrb[0].mxu0 %v292
        %v928 = vpop.f32.mrb[0].mxu0
        %v929 = vadd.f32 0.0, %v928
        %v930 = vpop.f32.mrb[0].mxu0
        %v931 = vadd.f32 0.0, %v930
        %932 = vdwg.mxu0
        %933 = vmatprep.subr.mxu0 %v213
        %934 = vmatpush1.msra.mxu0 %v212
        %935 = vmatprep.subr.mxu0 %v237
        %936 = vmatpush1.msra.mxu0 %v236
        %937 = vmatprep.subr.mxu0 %v261
        %938 = vmatpush1.msra.mxu0 %v260
        %939 = vmatprep.subr.mxu0 %v285
        %940 = vmatpush1.msra.mxu0 %v284
        %941 = vmatprep.subr.mxu0 0.0
        %942 = vmatpush1.msra.mxu0 0.0
        %943 = vmatprep.subr.mxu0 0.0
        %944 = vmatpush1.msra.mxu0 0.0
        %945 = vmatprep.subr.mxu0 0.0
        %946 = vmatpush1.msra.mxu0 0.0
        %947 = vmatprep.subr.mxu0 0.0
        %948 = vmatpush1.msra.mxu0 0.0
        %949 = vmatprep.subr.mxu0 0.0
        %950 = vmatpush1.msra.mxu0 0.0
        %951 = vmatprep.subr.mxu0 0.0
        %952 = vmatpush1.msra.mxu0 0.0
        %953 = vmatprep.subr.mxu0 0.0
        %954 = vmatpush1.msra.mxu0 0.0
        %955 = vmatprep.subr.mxu0 0.0
        %956 = vmatpush1.msra.mxu0 0.0
        %957 = vmatprep.subr.mxu0 0.0
        %958 = vmatpush1.msra.mxu0 0.0
        %959 = vmatprep.subr.mxu0 0.0
        %960 = vmatpush1.msra.mxu0 0.0
        %961 = vmatprep.subr.mxu0 0.0
        %962 = vmatpush1.msra.mxu0 0.0
        %963 = vmatprep.subr.mxu0 0.0
        %964 = vmatpush1.msra.mxu0 0.0
        %965 = vmatprep.subr.mxu0 0.0
        %966 = vmatpush1.msra.mxu0 0.0
        %967 = vmatprep.subr.mxu0 0.0
        %968 = vmatpush1.msra.mxu0 0.0
        %969 = vmatprep.subr.mxu0 0.0
        %970 = vmatpush1.msra.mxu0 0.0
        %971 = vmatprep.subr.mxu0 0.0
        %972 = vmatpush1.msra.mxu0 0.0
        %973 = vmatprep.subr.mxu0 0.0
        %974 = vmatpush1.msra.mxu0 0.0
        %975 = vmatprep.subr.mxu0 0.0
        %976 = vmatpush1.msra.mxu0 0.0
        %977 = vmatprep.subr.mxu0 0.0
        %978 = vmatpush1.msra.mxu0 0.0
        %979 = vmatprep.subr.mxu0 0.0
        %980 = vmatpush1.msra.mxu0 0.0
        %981 = vmatprep.subr.mxu0 0.0
        %982 = vmatpush1.msra.mxu0 0.0
        %983 = vmatprep.subr.mxu0 0.0
        %984 = vmatpush1.msra.mxu0 0.0
        %985 = vmatprep.subr.mxu0 0.0
        %986 = vmatpush1.msra.mxu0 0.0
        %987 = vmatprep.subr.mxu0 0.0
        %988 = vmatpush1.msra.mxu0 0.0
        %989 = vmatprep.subr.mxu0 0.0
        %990 = vmatpush1.msra.mxu0 0.0
        %991 = vmatprep.subr.mxu0 0.0
        %992 = vmatpush1.msra.mxu0 0.0
        %993 = vmatprep.subr.mxu0 0.0
        %994 = vmatpush1.msra.mxu0 0.0
        %995 = vmatprep.subr.mxu0 0.0
        %996 = vmatpush1.msra.mxu0 0.0
        %997 = vmatprep.mubr.f32.mxu0 0.0
        %998 = vmatmul.mubr.f32.gmra.mrb[0].mxu0 %v292
        %v999 = vpop.f32.mrb[0].mxu0
        %v1000 = vadd.f32 0.0, %v999
        %v1001 = vpop.f32.mrb[0].mxu0
        %v1002 = vadd.f32 0.0, %v1001
        %1003 = vdwg.mxu0
        %1004 = vmatprep.subr.mxu0 %v215
        %1005 = vmatpush1.msra.mxu0 %v214
        %1006 = vmatprep.subr.mxu0 %v239
        %1007 = vmatpush1.msra.mxu0 %v238
        %1008 = vmatprep.subr.mxu0 %v263
        %1009 = vmatpush1.msra.mxu0 %v262
        %1010 = vmatprep.subr.mxu0 %v287
        %1011 = vmatpush1.msra.mxu0 %v286
        %1012 = vmatprep.subr.mxu0 0.0
        %1013 = vmatpush1.msra.mxu0 0.0
        %1014 = vmatprep.subr.mxu0 0.0
        %1015 = vmatpush1.msra.mxu0 0.0
        %1016 = vmatprep.subr.mxu0 0.0
        %1017 = vmatpush1.msra.mxu0 0.0
        %1018 = vmatprep.subr.mxu0 0.0
        %1019 = vmatpush1.msra.mxu0 0.0
        %1020 = vmatprep.subr.mxu0 0.0
        %1021 = vmatpush1.msra.mxu0 0.0
        %1022 = vmatprep.subr.mxu0 0.0
        %1023 = vmatpush1.msra.mxu0 0.0
        %1024 = vmatprep.subr.mxu0 0.0
        %1025 = vmatpush1.msra.mxu0 0.0
        %1026 = vmatprep.subr.mxu0 0.0
        %1027 = vmatpush1.msra.mxu0 0.0
        %1028 = vmatprep.subr.mxu0 0.0
        %1029 = vmatpush1.msra.mxu0 0.0
        %1030 = vmatprep.subr.mxu0 0.0
        %1031 = vmatpush1.msra.mxu0 0.0
        %1032 = vmatprep.subr.mxu0 0.0
        %1033 = vmatpush1.msra.mxu0 0.0
        %1034 = vmatprep.subr.mxu0 0.0
        %1035 = vmatpush1.msra.mxu0 0.0
        %1036 = vmatprep.subr.mxu0 0.0
        %1037 = vmatpush1.msra.mxu0 0.0
        %1038 = vmatprep.subr.mxu0 0.0
        %1039 = vmatpush1.msra.mxu0 0.0
        %1040 = vmatprep.subr.mxu0 0.0
        %1041 = vmatpush1.msra.mxu0 0.0
        %1042 = vmatprep.subr.mxu0 0.0
        %1043 = vmatpush1.msra.mxu0 0.0
        %1044 = vmatprep.subr.mxu0 0.0
        %1045 = vmatpush1.msra.mxu0 0.0
        %1046 = vmatprep.subr.mxu0 0.0
        %1047 = vmatpush1.msra.mxu0 0.0
        %1048 = vmatprep.subr.mxu0 0.0
        %1049 = vmatpush1.msra.mxu0 0.0
        %1050 = vmatprep.subr.mxu0 0.0
        %1051 = vmatpush1.msra.mxu0 0.0
        %1052 = vmatprep.subr.mxu0 0.0
        %1053 = vmatpush1.msra.mxu0 0.0
        %1054 = vmatprep.subr.mxu0 0.0
        %1055 = vmatpush1.msra.mxu0 0.0
        %1056 = vmatprep.subr.mxu0 0.0
        %1057 = vmatpush1.msra.mxu0 0.0
        %1058 = vmatprep.subr.mxu0 0.0
        %1059 = vmatpush1.msra.mxu0 0.0
        %1060 = vmatprep.subr.mxu0 0.0
        %1061 = vmatpush1.msra.mxu0 0.0
        %1062 = vmatprep.subr.mxu0 0.0
        %1063 = vmatpush1.msra.mxu0 0.0
        %1064 = vmatprep.subr.mxu0 0.0
        %1065 = vmatpush1.msra.mxu0 0.0
        %1066 = vmatprep.subr.mxu0 0.0
        %1067 = vmatpush1.msra.mxu0 0.0
        %1068 = vmatprep.mubr.f32.mxu0 0.0
        %1069 = vmatmul.mubr.f32.gmra.mrb[0].mxu0 %v292
        %v1070 = vpop.f32.mrb[0].mxu0
        %v1071 = vadd.f32 0.0, %v1070
        %v1072 = vpop.f32.mrb[0].mxu0
        %v1073 = vadd.f32 0.0, %v1072
        %1074 = vdwg.mxu0
        %1075 = vmatprep.subr.mxu0 %v217
        %1076 = vmatpush1.msra.mxu0 %v216
        %1077 = vmatprep.subr.mxu0 %v241
        %1078 = vmatpush1.msra.mxu0 %v240
        %1079 = vmatprep.subr.mxu0 %v265
        %1080 = vmatpush1.msra.mxu0 %v264
        %1081 = vmatprep.subr.mxu0 %v289
        %1082 = vmatpush1.msra.mxu0 %v288
        %1083 = vmatprep.subr.mxu0 0.0
        %1084 = vmatpush1.msra.mxu0 0.0
        %1085 = vmatprep.subr.mxu0 0.0
        %1086 = vmatpush1.msra.mxu0 0.0
        %1087 = vmatprep.subr.mxu0 0.0
        %1088 = vmatpush1.msra.mxu0 0.0
        %1089 = vmatprep.subr.mxu0 0.0
        %1090 = vmatpush1.msra.mxu0 0.0
        %1091 = vmatprep.subr.mxu0 0.0
        %1092 = vmatpush1.msra.mxu0 0.0
        %1093 = vmatprep.subr.mxu0 0.0
        %1094 = vmatpush1.msra.mxu0 0.0
        %1095 = vmatprep.subr.mxu0 0.0
        %1096 = vmatpush1.msra.mxu0 0.0
        %1097 = vmatprep.subr.mxu0 0.0
        %1098 = vmatpush1.msra.mxu0 0.0
        %1099 = vmatprep.subr.mxu0 0.0
        %1100 = vmatpush1.msra.mxu0 0.0
        %1101 = vmatprep.subr.mxu0 0.0
        %1102 = vmatpush1.msra.mxu0 0.0
        %1103 = vmatprep.subr.mxu0 0.0
        %1104 = vmatpush1.msra.mxu0 0.0
        %1105 = vmatprep.subr.mxu0 0.0
        %1106 = vmatpush1.msra.mxu0 0.0
        %1107 = vmatprep.subr.mxu0 0.0
        %1108 = vmatpush1.msra.mxu0 0.0
        %1109 = vmatprep.subr.mxu0 0.0
        %1110 = vmatpush1.msra.mxu0 0.0
        %1111 = vmatprep.subr.mxu0 0.0
        %1112 = vmatpush1.msra.mxu0 0.0
        %1113 = vmatprep.subr.mxu0 0.0
        %1114 = vmatpush1.msra.mxu0 0.0
        %1115 = vmatprep.subr.mxu0 0.0
        %1116 = vmatpush1.msra.mxu0 0.0
        %1117 = vmatprep.subr.mxu0 0.0
        %1118 = vmatpush1.msra.mxu0 0.0
        %1119 = vmatprep.subr.mxu0 0.0
        %1120 = vmatpush1.msra.mxu0 0.0
        %1121 = vmatprep.subr.mxu0 0.0
        %1122 = vmatpush1.msra.mxu0 0.0
        %1123 = vmatprep.subr.mxu0 0.0
        %1124 = vmatpush1.msra.mxu0 0.0
        %1125 = vmatprep.subr.mxu0 0.0
        %1126 = vmatpush1.msra.mxu0 0.0
        %1127 = vmatprep.subr.mxu0 0.0
        %1128 = vmatpush1.msra.mxu0 0.0
        %1129 = vmatprep.subr.mxu0 0.0
        %1130 = vmatpush1.msra.mxu0 0.0
        %1131 = vmatprep.subr.mxu0 0.0
        %1132 = vmatpush1.msra.mxu0 0.0
        %1133 = vmatprep.subr.mxu0 0.0
        %1134 = vmatpush1.msra.mxu0 0.0
        %1135 = vmatprep.subr.mxu0 0.0
        %1136 = vmatpush1.msra.mxu0 0.0
        %1137 = vmatprep.subr.mxu0 0.0
        %1138 = vmatpush1.msra.mxu0 0.0
        %1139 = vmatprep.mubr.f32.mxu0 0.0
        %1140 = vmatmul.mubr.f32.gmra.mrb[0].mxu0 %v292
        %v1141 = vpop.f32.mrb[0].mxu0
        %v1142 = vadd.f32 0.0, %v1141
        %v1143 = vpop.f32.mrb[0].mxu0
        %v1144 = vadd.f32 0.0, %v1143
        %1145 = vdwg.mxu0
        %1146 = vst [vmem:[#allocation2] sm:$0xff] %v361
        %1147 = vst [vmem:[#allocation2 + $0x8] sm:$0xff] %v363
        %1148 = vst [vmem:[#allocation2 + $0x10] sm:$0xff] %v432
        %1149 = vst [vmem:[#allocation2 + $0x18] sm:$0xff] %v434
        %1150 = vst [vmem:[#allocation2 + $0x20] sm:$0xff] %v503
        %1151 = vst [vmem:[#allocation2 + $0x28] sm:$0xff] %v505
        %1152 = vst [vmem:[#allocation2 + $0x30] sm:$0xff] %v574
        %1153 = vst [vmem:[#allocation2 + $0x38] sm:$0xff] %v576
        %1154 = vst [vmem:[#allocation2 + $0x40] sm:$0xff] %v645
        %1155 = vst [vmem:[#allocation2 + $0x48] sm:$0xff] %v647
        %1156 = vst [vmem:[#allocation2 + $0x50] sm:$0xff] %v716
        %1157 = vst [vmem:[#allocation2 + $0x58] sm:$0xff] %v718
        %1158 = vst [vmem:[#allocation2 + $0x60] sm:$0xff] %v787
        %1159 = vst [vmem:[#allocation2 + $0x68] sm:$0xff] %v789
        %1160 = vst [vmem:[#allocation2 + $0x70] sm:$0xff] %v858
        %1161 = vst [vmem:[#allocation2 + $0x78] sm:$0xff] %v860
        %1162 = vst [vmem:[#allocation2 + $0x80] sm:$0xff] %v929
        %1163 = vst [vmem:[#allocation2 + $0x88] sm:$0xff] %v931
        %1164 = vst [vmem:[#allocation2 + $0x90] sm:$0xff] %v1000
        %1165 = vst [vmem:[#allocation2 + $0x98] sm:$0xff] %v1002
        %1166 = vst [vmem:[#allocation2 + $0xa0] sm:$0xff] %v1071
        %1167 = vst [vmem:[#allocation2 + $0xa8] sm:$0xff] %v1073
        %1168 = vst [vmem:[#allocation2 + $0xb0] sm:$0xff] %v1142
        %1169 = vst [vmem:[#allocation2 + $0xb8] sm:$0xff] %v1144
        %v1170 = vld [vmem:[#allocation2] sm:$0xff]
        %v1171 = vld [vmem:[#allocation2 + $0x40] sm:$0xff]
        %v1172 = vld [vmem:[#allocation2 + $0x80] sm:$0xff]
        %1173 = vmatprep.subr.mxu0 0.0
        %1174 = vmatpush1.xpose.msra.mxu0 %v1171
        %1175 = vmatprep.subr.mxu0 0.0
        %1176 = vmatpush1.xpose.msra.mxu0 0.0
        %1177 = vmatprep.subr.mxu0 0.0
        %1178 = vmatpush1.xpose.msra.mxu0 0.0
        %1179 = vmatprep.subr.mxu0 0.0
        %1180 = vmatpush1.xpose.msra.mxu0 0.0
        %1181 = vmatprep.subr.mxu0 0.0
        %1182 = vmatpush1.xpose.msra.mxu0 0.0
        %1183 = vmatprep.subr.mxu0 0.0
        %1184 = vmatpush1.xpose.msra.mxu0 0.0
        %1185 = vmatprep.subr.mxu0 0.0
        %1186 = vmatpush1.xpose.msra.mxu0 0.0
        %1187 = vmatprep.subr.mxu0 0.0
        %1188 = vmatpush1.xpose.msra.mxu0 0.0
        %1189 = vmatprep.subr.mxu0 0.0
        %1190 = vmatpush1.xpose.msra.mxu0 0.0
        %1191 = vmatprep.subr.mxu0 0.0
        %1192 = vmatpush1.xpose.msra.mxu0 0.0
        %1193 = vmatprep.subr.mxu0 0.0
        %1194 = vmatpush1.xpose.msra.mxu0 0.0
        %1195 = vmatprep.subr.mxu0 0.0
        %1196 = vmatpush1.xpose.msra.mxu0 0.0
        %1197 = vmatprep.subr.mxu0 0.0
        %1198 = vmatpush1.xpose.msra.mxu0 0.0
        %1199 = vmatprep.subr.mxu0 0.0
        %1200 = vmatpush1.xpose.msra.mxu0 0.0
        %1201 = vmatprep.subr.mxu0 0.0
        %1202 = vmatpush1.xpose.msra.mxu0 0.0
        %1203 = vmatprep.subr.mxu0 0.0
        %1204 = vmatpush1.xpose.msra.mxu0 0.0
        %1205 = vmatprep.subr.mxu0 0.0
        %1206 = vmatpush1.xpose.msra.mxu0 0.0
        %1207 = vmatprep.subr.mxu0 0.0
        %1208 = vmatpush1.xpose.msra.mxu0 0.0
        %1209 = vmatprep.subr.mxu0 0.0
        %1210 = vmatpush1.xpose.msra.mxu0 0.0
        %1211 = vmatprep.subr.mxu0 0.0
        %1212 = vmatpush1.xpose.msra.mxu0 0.0
        %1213 = vmatprep.subr.mxu0 0.0
        %1214 = vmatpush1.xpose.msra.mxu0 0.0
        %1215 = vmatprep.subr.mxu0 0.0
        %1216 = vmatpush1.xpose.msra.mxu0 0.0
        %1217 = vmatprep.subr.mxu0 0.0
        %1218 = vmatpush1.xpose.msra.mxu0 0.0
        %1219 = vmatprep.subr.mxu0 0.0
        %1220 = vmatpush1.xpose.msra.mxu0 0.0
        %1221 = vmatprep.subr.mxu0 0.0
        %1222 = vmatpush1.xpose.msra.mxu0 0.0
        %1223 = vmatprep.subr.mxu0 0.0
        %1224 = vmatpush1.xpose.msra.mxu0 0.0
        %1225 = vmatprep.subr.mxu0 0.0
        %1226 = vmatpush1.xpose.msra.mxu0 0.0
        %1227 = vmatprep.subr.mxu0 0.0
        %1228 = vmatpush1.xpose.msra.mxu0 0.0
        %1229 = vmatprep.subr.mxu0 0.0
        %1230 = vmatpush1.xpose.msra.mxu0 0.0
        %1231 = vmatprep.subr.mxu0 0.0
        %1232 = vmatpush1.xpose.msra.mxu0 0.0
        %1233 = vmatprep.subr.mxu0 0.0
        %1234 = vmatpush1.xpose.msra.mxu0 0.0
        %1235 = vmatprep.subr.mxu0 0.0
        %1236 = vmatpush1.xpose.msra.mxu0 0.0
        %1237 = vmatprep.mubr.f32.mxu0 0.0
        %1238 = vmatmul.mubr.f32.gmra.mrb[0].mxu0 %v1170
        %v1239 = vpop.f32.mrb[0].mxu0
        %v1240 = vadd.f32 0.0, %v1239
        %v1241 = vpop.f32.mrb[0].mxu0
        %1242 = vdwg.mxu0
        %vm1243 = vcmask 64512
        %v1244 = vsel %vm1243, %v1240, -inf
        %1245 = vmax.xlane.f32.xlu0 %v1244
        %v1246 = vpop.xlane.xlu0 %1245
        %v1247 = vsub.f32 %v1240, %v1246
        %v1248 = vmul.f32 %v1247, 1.442695
        %v1249 = vpow.pop %v1248
        %v1250 = vsel %vm1243, %v1249, 0.0
        %1251 = vadd.xlane.f32.xlu0 %v1250
        %v1252 = vpop.xlane.xlu0 %1251
        %v1253 = vrcp.pop %v1252
        %v1255 = vsel %vm1243, %v1249, 0
        %1257 = vmatprep.subr.mxu0 0.0
        %1258 = vmatpush1.msra.mxu0 %v1172
        %1259 = vmatprep.subr.mxu0 0.0
        %1260 = vmatpush1.msra.mxu0 0.0
        %1261 = vmatprep.subr.mxu0 0.0
        %1262 = vmatpush1.msra.mxu0 0.0
        %1263 = vmatprep.subr.mxu0 0.0
        %1264 = vmatpush1.msra.mxu0 0.0
        %1265 = vmatprep.subr.mxu0 0.0
        %1266 = vmatpush1.msra.mxu0 0.0
        %1267 = vmatprep.subr.mxu0 0.0
        %1268 = vmatpush1.msra.mxu0 0.0
        %1269 = vmatprep.subr.mxu0 0.0
        %1270 = vmatpush1.msra.mxu0 0.0
        %1271 = vmatprep.subr.mxu0 0.0
        %1272 = vmatpush1.msra.mxu0 0.0
        %1273 = vmatprep.subr.mxu0 0.0
        %1274 = vmatpush1.msra.mxu0 0.0
        %1275 = vmatprep.subr.mxu0 0.0
        %1276 = vmatpush1.msra.mxu0 0.0
        %1277 = vmatprep.subr.mxu0 0.0
        %1278 = vmatpush1.msra.mxu0 0.0
        %1279 = vmatprep.subr.mxu0 0.0
        %1280 = vmatpush1.msra.mxu0 0.0
        %1281 = vmatprep.subr.mxu0 0.0
        %1282 = vmatpush1.msra.mxu0 0.0
        %1283 = vmatprep.subr.mxu0 0.0
        %1284 = vmatpush1.msra.mxu0 0.0
        %1285 = vmatprep.subr.mxu0 0.0
        %1286 = vmatpush1.msra.mxu0 0.0
        %1287 = vmatprep.subr.mxu0 0.0
        %1288 = vmatpush1.msra.mxu0 0.0
        %1289 = vmatprep.subr.mxu0 0.0
        %1290 = vmatpush1.msra.mxu0 0.0
        %1291 = vmatprep.subr.mxu0 0.0
        %1292 = vmatpush1.msra.mxu0 0.0
        %1293 = vmatprep.subr.mxu0 0.0
        %1294 = vmatpush1.msra.mxu0 0.0
        %1295 = vmatprep.subr.mxu0 0.0
        %1296 = vmatpush1.msra.mxu0 0.0
        %1297 = vmatprep.subr.mxu0 0.0
        %1298 = vmatpush1.msra.mxu0 0.0
        %1299 = vmatprep.subr.mxu0 0.0
        %1300 = vmatpush1.msra.mxu0 0.0
        %1301 = vmatprep.subr.mxu0 0.0
        %1302 = vmatpush1.msra.mxu0 0.0
        %1303 = vmatprep.subr.mxu0 0.0
        %1304 = vmatpush1.msra.mxu0 0.0
        %1305 = vmatprep.subr.mxu0 0.0
        %1306 = vmatpush1.msra.mxu0 0.0
        %1307 = vmatprep.subr.mxu0 0.0
        %1308 = vmatpush1.msra.mxu0 0.0
        %1309 = vmatprep.subr.mxu0 0.0
        %1310 = vmatpush1.msra.mxu0 0.0
        %1311 = vmatprep.subr.mxu0 0.0
        %1312 = vmatpush1.msra.mxu0 0.0
        %1313 = vmatprep.subr.mxu0 0.0
        %1314 = vmatpush1.msra.mxu0 0.0
        %1315 = vmatprep.subr.mxu0 0.0
        %1316 = vmatpush1.msra.mxu0 0.0
        %1317 = vmatprep.subr.mxu0 0.0
        %1318 = vmatpush1.msra.mxu0 0.0
        %1319 = vmatprep.subr.mxu0 0.0
        %1320 = vmatpush1.msra.mxu0 0.0
        %1321 = vmatprep.mubr.f32.mxu0 0.0
        %1322 = vmatmul.mubr.f32.gmra.mrb[0].mxu0 %v1255
        %v1323 = vpop.f32.mrb[0].mxu0
        %v1324 = vadd.f32 0.0, %v1323
        %v1325 = vpop.f32.mrb[0].mxu0
        %1326 = vdwg.mxu0
        %v1327 = vmul.f32 %v1324, %v1253
        %1328 = vst [vmem:[#allocation3] sm:$0xff] %v1327
        %v1329 = vld [vmem:[#allocation2 + $0x8] sm:$0xff]
        %v1330 = vld [vmem:[#allocation2 + $0x48] sm:$0xff]
        %v1331 = vld [vmem:[#allocation2 + $0x88] sm:$0xff]
        %1332 = vmatprep.subr.mxu0 0.0
        %1333 = vmatpush1.xpose.msra.mxu0 %v1330
        %1334 = vmatprep.subr.mxu0 0.0
        %1335 = vmatpush1.xpose.msra.mxu0 0.0
        %1336 = vmatprep.subr.mxu0 0.0
        %1337 = vmatpush1.xpose.msra.mxu0 0.0
        %1338 = vmatprep.subr.mxu0 0.0
        %1339 = vmatpush1.xpose.msra.mxu0 0.0
        %1340 = vmatprep.subr.mxu0 0.0
        %1341 = vmatpush1.xpose.msra.mxu0 0.0
        %1342 = vmatprep.subr.mxu0 0.0
        %1343 = vmatpush1.xpose.msra.mxu0 0.0
        %1344 = vmatprep.subr.mxu0 0.0
        %1345 = vmatpush1.xpose.msra.mxu0 0.0
        %1346 = vmatprep.subr.mxu0 0.0
        %1347 = vmatpush1.xpose.msra.mxu0 0.0
        %1348 = vmatprep.subr.mxu0 0.0
        %1349 = vmatpush1.xpose.msra.mxu0 0.0
        %1350 = vmatprep.subr.mxu0 0.0
        %1351 = vmatpush1.xpose.msra.mxu0 0.0
        %1352 = vmatprep.subr.mxu0 0.0
        %1353 = vmatpush1.xpose.msra.mxu0 0.0
        %1354 = vmatprep.subr.mxu0 0.0
        %1355 = vmatpush1.xpose.msra.mxu0 0.0
        %1356 = vmatprep.subr.mxu0 0.0
        %1357 = vmatpush1.xpose.msra.mxu0 0.0
        %1358 = vmatprep.subr.mxu0 0.0
        %1359 = vmatpush1.xpose.msra.mxu0 0.0
        %1360 = vmatprep.subr.mxu0 0.0
        %1361 = vmatpush1.xpose.msra.mxu0 0.0
        %1362 = vmatprep.subr.mxu0 0.0
        %1363 = vmatpush1.xpose.msra.mxu0 0.0
        %1364 = vmatprep.subr.mxu0 0.0
        %1365 = vmatpush1.xpose.msra.mxu0 0.0
        %1366 = vmatprep.subr.mxu0 0.0
        %1367 = vmatpush1.xpose.msra.mxu0 0.0
        %1368 = vmatprep.subr.mxu0 0.0
        %1369 = vmatpush1.xpose.msra.mxu0 0.0
        %1370 = vmatprep.subr.mxu0 0.0
        %1371 = vmatpush1.xpose.msra.mxu0 0.0
        %1372 = vmatprep.subr.mxu0 0.0
        %1373 = vmatpush1.xpose.msra.mxu0 0.0
        %1374 = vmatprep.subr.mxu0 0.0
        %1375 = vmatpush1.xpose.msra.mxu0 0.0
        %1376 = vmatprep.subr.mxu0 0.0
        %1377 = vmatpush1.xpose.msra.mxu0 0.0
        %1378 = vmatprep.subr.mxu0 0.0
        %1379 = vmatpush1.xpose.msra.mxu0 0.0
        %1380 = vmatprep.subr.mxu0 0.0
        %1381 = vmatpush1.xpose.msra.mxu0 0.0
        %1382 = vmatprep.subr.mxu0 0.0
        %1383 = vmatpush1.xpose.msra.mxu0 0.0
        %1384 = vmatprep.subr.mxu0 0.0
        %1385 = vmatpush1.xpose.msra.mxu0 0.0
        %1386 = vmatprep.subr.mxu0 0.0
        %1387 = vmatpush1.xpose.msra.mxu0 0.0
        %1388 = vmatprep.subr.mxu0 0.0
        %1389 = vmatpush1.xpose.msra.mxu0 0.0
        %1390 = vmatprep.subr.mxu0 0.0
        %1391 = vmatpush1.xpose.msra.mxu0 0.0
        %1392 = vmatprep.subr.mxu0 0.0
        %1393 = vmatpush1.xpose.msra.mxu0 0.0
        %1394 = vmatprep.subr.mxu0 0.0
        %1395 = vmatpush1.xpose.msra.mxu0 0.0
        %1396 = vmatprep.mubr.f32.mxu0 0.0
        %1397 = vmatmul.mubr.f32.gmra.mrb[0].mxu0 %v1329
        %v1398 = vpop.f32.mrb[0].mxu0
        %v1399 = vadd.f32 0.0, %v1398
        %v1400 = vpop.f32.mrb[0].mxu0
        %1401 = vdwg.mxu0
        %v1402 = vsel %vm1243, %v1399, -inf
        %1403 = vmax.xlane.f32.xlu0 %v1402
        %v1404 = vpop.xlane.xlu0 %1403
        %v1405 = vsub.f32 %v1399, %v1404
        %v1406 = vmul.f32 %v1405, 1.442695
        %v1407 = vpow.pop %v1406
        %v1408 = vsel %vm1243, %v1407, 0.0
        %1409 = vadd.xlane.f32.xlu0 %v1408
        %v1410 = vpop.xlane.xlu0 %1409
        %v1411 = vrcp.pop %v1410
        %v1413 = vsel %vm1243, %v1407, 0
        %1415 = vmatprep.subr.mxu0 0.0
        %1416 = vmatpush1.msra.mxu0 %v1331
        %1417 = vmatprep.subr.mxu0 0.0
        %1418 = vmatpush1.msra.mxu0 0.0
        %1419 = vmatprep.subr.mxu0 0.0
        %1420 = vmatpush1.msra.mxu0 0.0
        %1421 = vmatprep.subr.mxu0 0.0
        %1422 = vmatpush1.msra.mxu0 0.0
        %1423 = vmatprep.subr.mxu0 0.0
        %1424 = vmatpush1.msra.mxu0 0.0
        %1425 = vmatprep.subr.mxu0 0.0
        %1426 = vmatpush1.msra.mxu0 0.0
        %1427 = vmatprep.subr.mxu0 0.0
        %1428 = vmatpush1.msra.mxu0 0.0
        %1429 = vmatprep.subr.mxu0 0.0
        %1430 = vmatpush1.msra.mxu0 0.0
        %1431 = vmatprep.subr.mxu0 0.0
        %1432 = vmatpush1.msra.mxu0 0.0
        %1433 = vmatprep.subr.mxu0 0.0
        %1434 = vmatpush1.msra.mxu0 0.0
        %1435 = vmatprep.subr.mxu0 0.0
        %1436 = vmatpush1.msra.mxu0 0.0
        %1437 = vmatprep.subr.mxu0 0.0
        %1438 = vmatpush1.msra.mxu0 0.0
        %1439 = vmatprep.subr.mxu0 0.0
        %1440 = vmatpush1.msra.mxu0 0.0
        %1441 = vmatprep.subr.mxu0 0.0
        %1442 = vmatpush1.msra.mxu0 0.0
        %1443 = vmatprep.subr.mxu0 0.0
        %1444 = vmatpush1.msra.mxu0 0.0
        %1445 = vmatprep.subr.mxu0 0.0
        %1446 = vmatpush1.msra.mxu0 0.0
        %1447 = vmatprep.subr.mxu0 0.0
        %1448 = vmatpush1.msra.mxu0 0.0
        %1449 = vmatprep.subr.mxu0 0.0
        %1450 = vmatpush1.msra.mxu0 0.0
        %1451 = vmatprep.subr.mxu0 0.0
        %1452 = vmatpush1.msra.mxu0 0.0
        %1453 = vmatprep.subr.mxu0 0.0
        %1454 = vmatpush1.msra.mxu0 0.0
        %1455 = vmatprep.subr.mxu0 0.0
        %1456 = vmatpush1.msra.mxu0 0.0
        %1457 = vmatprep.subr.mxu0 0.0
        %1458 = vmatpush1.msra.mxu0 0.0
        %1459 = vmatprep.subr.mxu0 0.0
        %1460 = vmatpush1.msra.mxu0 0.0
        %1461 = vmatprep.subr.mxu0 0.0
        %1462 = vmatpush1.msra.mxu0 0.0
        %1463 = vmatprep.subr.mxu0 0.0
        %1464 = vmatpush1.msra.mxu0 0.0
        %1465 = vmatprep.subr.mxu0 0.0
        %1466 = vmatpush1.msra.mxu0 0.0
        %1467 = vmatprep.subr.mxu0 0.0
        %1468 = vmatpush1.msra.mxu0 0.0
        %1469 = vmatprep.subr.mxu0 0.0
        %1470 = vmatpush1.msra.mxu0 0.0
        %1471 = vmatprep.subr.mxu0 0.0
        %1472 = vmatpush1.msra.mxu0 0.0
        %1473 = vmatprep.subr.mxu0 0.0
        %1474 = vmatpush1.msra.mxu0 0.0
        %1475 = vmatprep.subr.mxu0 0.0
        %1476 = vmatpush1.msra.mxu0 0.0
        %1477 = vmatprep.subr.mxu0 0.0
        %1478 = vmatpush1.msra.mxu0 0.0
        %1479 = vmatprep.mubr.f32.mxu0 0.0
        %1480 = vmatmul.mubr.f32.gmra.mrb[0].mxu0 %v1413
        %v1481 = vpop.f32.mrb[0].mxu0
        %v1482 = vadd.f32 0.0, %v1481
        %v1483 = vpop.f32.mrb[0].mxu0
        %1484 = vdwg.mxu0
        %v1485 = vmul.f32 %v1482, %v1411
        %1486 = vst [vmem:[#allocation3 + $0x8] sm:$0xff] %v1485
        %v1487 = vld [vmem:[#allocation2 + $0x10] sm:$0xff]
        %v1488 = vld [vmem:[#allocation2 + $0x50] sm:$0xff]
        %v1489 = vld [vmem:[#allocation2 + $0x90] sm:$0xff]
        %1490 = vmatprep.subr.mxu0 0.0
        %1491 = vmatpush1.xpose.msra.mxu0 %v1488
        %1492 = vmatprep.subr.mxu0 0.0
        %1493 = vmatpush1.xpose.msra.mxu0 0.0
        %1494 = vmatprep.subr.mxu0 0.0
        %1495 = vmatpush1.xpose.msra.mxu0 0.0
        %1496 = vmatprep.subr.mxu0 0.0
        %1497 = vmatpush1.xpose.msra.mxu0 0.0
        %1498 = vmatprep.subr.mxu0 0.0
        %1499 = vmatpush1.xpose.msra.mxu0 0.0
        %1500 = vmatprep.subr.mxu0 0.0
        %1501 = vmatpush1.xpose.msra.mxu0 0.0
        %1502 = vmatprep.subr.mxu0 0.0
        %1503 = vmatpush1.xpose.msra.mxu0 0.0
        %1504 = vmatprep.subr.mxu0 0.0
        %1505 = vmatpush1.xpose.msra.mxu0 0.0
        %1506 = vmatprep.subr.mxu0 0.0
        %1507 = vmatpush1.xpose.msra.mxu0 0.0
        %1508 = vmatprep.subr.mxu0 0.0
        %1509 = vmatpush1.xpose.msra.mxu0 0.0
        %1510 = vmatprep.subr.mxu0 0.0
        %1511 = vmatpush1.xpose.msra.mxu0 0.0
        %1512 = vmatprep.subr.mxu0 0.0
        %1513 = vmatpush1.xpose.msra.mxu0 0.0
        %1514 = vmatprep.subr.mxu0 0.0
        %1515 = vmatpush1.xpose.msra.mxu0 0.0
        %1516 = vmatprep.subr.mxu0 0.0
        %1517 = vmatpush1.xpose.msra.mxu0 0.0
        %1518 = vmatprep.subr.mxu0 0.0
        %1519 = vmatpush1.xpose.msra.mxu0 0.0
        %1520 = vmatprep.subr.mxu0 0.0
        %1521 = vmatpush1.xpose.msra.mxu0 0.0
        %1522 = vmatprep.subr.mxu0 0.0
        %1523 = vmatpush1.xpose.msra.mxu0 0.0
        %1524 = vmatprep.subr.mxu0 0.0
        %1525 = vmatpush1.xpose.msra.mxu0 0.0
        %1526 = vmatprep.subr.mxu0 0.0
        %1527 = vmatpush1.xpose.msra.mxu0 0.0
        %1528 = vmatprep.subr.mxu0 0.0
        %1529 = vmatpush1.xpose.msra.mxu0 0.0
        %1530 = vmatprep.subr.mxu0 0.0
        %1531 = vmatpush1.xpose.msra.mxu0 0.0
        %1532 = vmatprep.subr.mxu0 0.0
        %1533 = vmatpush1.xpose.msra.mxu0 0.0
        %1534 = vmatprep.subr.mxu0 0.0
        %1535 = vmatpush1.xpose.msra.mxu0 0.0
        %1536 = vmatprep.subr.mxu0 0.0
        %1537 = vmatpush1.xpose.msra.mxu0 0.0
        %1538 = vmatprep.subr.mxu0 0.0
        %1539 = vmatpush1.xpose.msra.mxu0 0.0
        %1540 = vmatprep.subr.mxu0 0.0
        %1541 = vmatpush1.xpose.msra.mxu0 0.0
        %1542 = vmatprep.subr.mxu0 0.0
        %1543 = vmatpush1.xpose.msra.mxu0 0.0
        %1544 = vmatprep.subr.mxu0 0.0
        %1545 = vmatpush1.xpose.msra.mxu0 0.0
        %1546 = vmatprep.subr.mxu0 0.0
        %1547 = vmatpush1.xpose.msra.mxu0 0.0
        %1548 = vmatprep.subr.mxu0 0.0
        %1549 = vmatpush1.xpose.msra.mxu0 0.0
        %1550 = vmatprep.subr.mxu0 0.0
        %1551 = vmatpush1.xpose.msra.mxu0 0.0
        %1552 = vmatprep.subr.mxu0 0.0
        %1553 = vmatpush1.xpose.msra.mxu0 0.0
        %1554 = vmatprep.mubr.f32.mxu0 0.0
        %1555 = vmatmul.mubr.f32.gmra.mrb[0].mxu0 %v1487
        %v1556 = vpop.f32.mrb[0].mxu0
        %v1557 = vadd.f32 0.0, %v1556
        %v1558 = vpop.f32.mrb[0].mxu0
        %1559 = vdwg.mxu0
        %v1560 = vsel %vm1243, %v1557, -inf
        %1561 = vmax.xlane.f32.xlu0 %v1560
        %v1562 = vpop.xlane.xlu0 %1561
        %v1563 = vsub.f32 %v1557, %v1562
        %v1564 = vmul.f32 %v1563, 1.442695
        %v1565 = vpow.pop %v1564
        %v1566 = vsel %vm1243, %v1565, 0.0
        %1567 = vadd.xlane.f32.xlu0 %v1566
        %v1568 = vpop.xlane.xlu0 %1567
        %v1569 = vrcp.pop %v1568
        %v1571 = vsel %vm1243, %v1565, 0
        %1573 = vmatprep.subr.mxu0 0.0
        %1574 = vmatpush1.msra.mxu0 %v1489
        %1575 = vmatprep.subr.mxu0 0.0
        %1576 = vmatpush1.msra.mxu0 0.0
        %1577 = vmatprep.subr.mxu0 0.0
        %1578 = vmatpush1.msra.mxu0 0.0
        %1579 = vmatprep.subr.mxu0 0.0
        %1580 = vmatpush1.msra.mxu0 0.0
        %1581 = vmatprep.subr.mxu0 0.0
        %1582 = vmatpush1.msra.mxu0 0.0
        %1583 = vmatprep.subr.mxu0 0.0
        %1584 = vmatpush1.msra.mxu0 0.0
        %1585 = vmatprep.subr.mxu0 0.0
        %1586 = vmatpush1.msra.mxu0 0.0
        %1587 = vmatprep.subr.mxu0 0.0
        %1588 = vmatpush1.msra.mxu0 0.0
        %1589 = vmatprep.subr.mxu0 0.0
        %1590 = vmatpush1.msra.mxu0 0.0
        %1591 = vmatprep.subr.mxu0 0.0
        %1592 = vmatpush1.msra.mxu0 0.0
        %1593 = vmatprep.subr.mxu0 0.0
        %1594 = vmatpush1.msra.mxu0 0.0
        %1595 = vmatprep.subr.mxu0 0.0
        %1596 = vmatpush1.msra.mxu0 0.0
        %1597 = vmatprep.subr.mxu0 0.0
        %1598 = vmatpush1.msra.mxu0 0.0
        %1599 = vmatprep.subr.mxu0 0.0
        %1600 = vmatpush1.msra.mxu0 0.0
        %1601 = vmatprep.subr.mxu0 0.0
        %1602 = vmatpush1.msra.mxu0 0.0
        %1603 = vmatprep.subr.mxu0 0.0
        %1604 = vmatpush1.msra.mxu0 0.0
        %1605 = vmatprep.subr.mxu0 0.0
        %1606 = vmatpush1.msra.mxu0 0.0
        %1607 = vmatprep.subr.mxu0 0.0
        %1608 = vmatpush1.msra.mxu0 0.0
        %1609 = vmatprep.subr.mxu0 0.0
        %1610 = vmatpush1.msra.mxu0 0.0
        %1611 = vmatprep.subr.mxu0 0.0
        %1612 = vmatpush1.msra.mxu0 0.0
        %1613 = vmatprep.subr.mxu0 0.0
        %1614 = vmatpush1.msra.mxu0 0.0
        %1615 = vmatprep.subr.mxu0 0.0
        %1616 = vmatpush1.msra.mxu0 0.0
        %1617 = vmatprep.subr.mxu0 0.0
        %1618 = vmatpush1.msra.mxu0 0.0
        %1619 = vmatprep.subr.mxu0 0.0
        %1620 = vmatpush1.msra.mxu0 0.0
        %1621 = vmatprep.subr.mxu0 0.0
        %1622 = vmatpush1.msra.mxu0 0.0
        %1623 = vmatprep.subr.mxu0 0.0
        %1624 = vmatpush1.msra.mxu0 0.0
        %1625 = vmatprep.subr.mxu0 0.0
        %1626 = vmatpush1.msra.mxu0 0.0
        %1627 = vmatprep.subr.mxu0 0.0
        %1628 = vmatpush1.msra.mxu0 0.0
        %1629 = vmatprep.subr.mxu0 0.0
        %1630 = vmatpush1.msra.mxu0 0.0
        %1631 = vmatprep.subr.mxu0 0.0
        %1632 = vmatpush1.msra.mxu0 0.0
        %1633 = vmatprep.subr.mxu0 0.0
        %1634 = vmatpush1.msra.mxu0 0.0
        %1635 = vmatprep.subr.mxu0 0.0
        %1636 = vmatpush1.msra.mxu0 0.0
        %1637 = vmatprep.mubr.f32.mxu0 0.0
        %1638 = vmatmul.mubr.f32.gmra.mrb[0].mxu0 %v1571
        %v1639 = vpop.f32.mrb[0].mxu0
        %v1640 = vadd.f32 0.0, %v1639
        %v1641 = vpop.f32.mrb[0].mxu0
        %1642 = vdwg.mxu0
        %v1643 = vmul.f32 %v1640, %v1569
        %1644 = vst [vmem:[#allocation3 + $0x10] sm:$0xff] %v1643
        %v1645 = vld [vmem:[#allocation2 + $0x18] sm:$0xff]
        %v1646 = vld [vmem:[#allocation2 + $0x58] sm:$0xff]
        %v1647 = vld [vmem:[#allocation2 + $0x98] sm:$0xff]
        %1648 = vmatprep.subr.mxu0 0.0
        %1649 = vmatpush1.xpose.msra.mxu0 %v1646
        %1650 = vmatprep.subr.mxu0 0.0
        %1651 = vmatpush1.xpose.msra.mxu0 0.0
        %1652 = vmatprep.subr.mxu0 0.0
        %1653 = vmatpush1.xpose.msra.mxu0 0.0
        %1654 = vmatprep.subr.mxu0 0.0
        %1655 = vmatpush1.xpose.msra.mxu0 0.0
        %1656 = vmatprep.subr.mxu0 0.0
        %1657 = vmatpush1.xpose.msra.mxu0 0.0
        %1658 = vmatprep.subr.mxu0 0.0
        %1659 = vmatpush1.xpose.msra.mxu0 0.0
        %1660 = vmatprep.subr.mxu0 0.0
        %1661 = vmatpush1.xpose.msra.mxu0 0.0
        %1662 = vmatprep.subr.mxu0 0.0
        %1663 = vmatpush1.xpose.msra.mxu0 0.0
        %1664 = vmatprep.subr.mxu0 0.0
        %1665 = vmatpush1.xpose.msra.mxu0 0.0
        %1666 = vmatprep.subr.mxu0 0.0
        %1667 = vmatpush1.xpose.msra.mxu0 0.0
        %1668 = vmatprep.subr.mxu0 0.0
        %1669 = vmatpush1.xpose.msra.mxu0 0.0
        %1670 = vmatprep.subr.mxu0 0.0
        %1671 = vmatpush1.xpose.msra.mxu0 0.0
        %1672 = vmatprep.subr.mxu0 0.0
        %1673 = vmatpush1.xpose.msra.mxu0 0.0
        %1674 = vmatprep.subr.mxu0 0.0
        %1675 = vmatpush1.xpose.msra.mxu0 0.0
        %1676 = vmatprep.subr.mxu0 0.0
        %1677 = vmatpush1.xpose.msra.mxu0 0.0
        %1678 = vmatprep.subr.mxu0 0.0
        %1679 = vmatpush1.xpose.msra.mxu0 0.0
        %1680 = vmatprep.subr.mxu0 0.0
        %1681 = vmatpush1.xpose.msra.mxu0 0.0
        %1682 = vmatprep.subr.mxu0 0.0
        %1683 = vmatpush1.xpose.msra.mxu0 0.0
        %1684 = vmatprep.subr.mxu0 0.0
        %1685 = vmatpush1.xpose.msra.mxu0 0.0
        %1686 = vmatprep.subr.mxu0 0.0
        %1687 = vmatpush1.xpose.msra.mxu0 0.0
        %1688 = vmatprep.subr.mxu0 0.0
        %1689 = vmatpush1.xpose.msra.mxu0 0.0
        %1690 = vmatprep.subr.mxu0 0.0
        %1691 = vmatpush1.xpose.msra.mxu0 0.0
        %1692 = vmatprep.subr.mxu0 0.0
        %1693 = vmatpush1.xpose.msra.mxu0 0.0
        %1694 = vmatprep.subr.mxu0 0.0
        %1695 = vmatpush1.xpose.msra.mxu0 0.0
        %1696 = vmatprep.subr.mxu0 0.0
        %1697 = vmatpush1.xpose.msra.mxu0 0.0
        %1698 = vmatprep.subr.mxu0 0.0
        %1699 = vmatpush1.xpose.msra.mxu0 0.0
        %1700 = vmatprep.subr.mxu0 0.0
        %1701 = vmatpush1.xpose.msra.mxu0 0.0
        %1702 = vmatprep.subr.mxu0 0.0
        %1703 = vmatpush1.xpose.msra.mxu0 0.0
        %1704 = vmatprep.subr.mxu0 0.0
        %1705 = vmatpush1.xpose.msra.mxu0 0.0
        %1706 = vmatprep.subr.mxu0 0.0
        %1707 = vmatpush1.xpose.msra.mxu0 0.0
        %1708 = vmatprep.subr.mxu0 0.0
        %1709 = vmatpush1.xpose.msra.mxu0 0.0
        %1710 = vmatprep.subr.mxu0 0.0
        %1711 = vmatpush1.xpose.msra.mxu0 0.0
        %1712 = vmatprep.mubr.f32.mxu0 0.0
        %1713 = vmatmul.mubr.f32.gmra.mrb[0].mxu0 %v1645
        %v1714 = vpop.f32.mrb[0].mxu0
        %v1715 = vadd.f32 0.0, %v1714
        %v1716 = vpop.f32.mrb[0].mxu0
        %1717 = vdwg.mxu0
        %v1718 = vsel %vm1243, %v1715, -inf
        %1719 = vmax.xlane.f32.xlu0 %v1718
        %v1720 = vpop.xlane.xlu0 %1719
        %v1721 = vsub.f32 %v1715, %v1720
        %v1722 = vmul.f32 %v1721, 1.442695
        %v1723 = vpow.pop %v1722
        %v1724 = vsel %vm1243, %v1723, 0.0
        %1725 = vadd.xlane.f32.xlu0 %v1724
        %v1726 = vpop.xlane.xlu0 %1725
        %v1727 = vrcp.pop %v1726
        %v1729 = vsel %vm1243, %v1723, 0
        %1731 = vmatprep.subr.mxu0 0.0
        %1732 = vmatpush1.msra.mxu0 %v1647
        %1733 = vmatprep.subr.mxu0 0.0
        %1734 = vmatpush1.msra.mxu0 0.0
        %1735 = vmatprep.subr.mxu0 0.0
        %1736 = vmatpush1.msra.mxu0 0.0
        %1737 = vmatprep.subr.mxu0 0.0
        %1738 = vmatpush1.msra.mxu0 0.0
        %1739 = vmatprep.subr.mxu0 0.0
        %1740 = vmatpush1.msra.mxu0 0.0
        %1741 = vmatprep.subr.mxu0 0.0
        %1742 = vmatpush1.msra.mxu0 0.0
        %1743 = vmatprep.subr.mxu0 0.0
        %1744 = vmatpush1.msra.mxu0 0.0
        %1745 = vmatprep.subr.mxu0 0.0
        %1746 = vmatpush1.msra.mxu0 0.0
        %1747 = vmatprep.subr.mxu0 0.0
        %1748 = vmatpush1.msra.mxu0 0.0
        %1749 = vmatprep.subr.mxu0 0.0
        %1750 = vmatpush1.msra.mxu0 0.0
        %1751 = vmatprep.subr.mxu0 0.0
        %1752 = vmatpush1.msra.mxu0 0.0
        %1753 = vmatprep.subr.mxu0 0.0
        %1754 = vmatpush1.msra.mxu0 0.0
        %1755 = vmatprep.subr.mxu0 0.0
        %1756 = vmatpush1.msra.mxu0 0.0
        %1757 = vmatprep.subr.mxu0 0.0
        %1758 = vmatpush1.msra.mxu0 0.0
        %1759 = vmatprep.subr.mxu0 0.0
        %1760 = vmatpush1.msra.mxu0 0.0
        %1761 = vmatprep.subr.mxu0 0.0
        %1762 = vmatpush1.msra.mxu0 0.0
        %1763 = vmatprep.subr.mxu0 0.0
        %1764 = vmatpush1.msra.mxu0 0.0
        %1765 = vmatprep.subr.mxu0 0.0
        %1766 = vmatpush1.msra.mxu0 0.0
        %1767 = vmatprep.subr.mxu0 0.0
        %1768 = vmatpush1.msra.mxu0 0.0
        %1769 = vmatprep.subr.mxu0 0.0
        %1770 = vmatpush1.msra.mxu0 0.0
        %1771 = vmatprep.subr.mxu0 0.0
        %1772 = vmatpush1.msra.mxu0 0.0
        %1773 = vmatprep.subr.mxu0 0.0
        %1774 = vmatpush1.msra.mxu0 0.0
        %1775 = vmatprep.subr.mxu0 0.0
        %1776 = vmatpush1.msra.mxu0 0.0
        %1777 = vmatprep.subr.mxu0 0.0
        %1778 = vmatpush1.msra.mxu0 0.0
        %1779 = vmatprep.subr.mxu0 0.0
        %1780 = vmatpush1.msra.mxu0 0.0
        %1781 = vmatprep.subr.mxu0 0.0
        %1782 = vmatpush1.msra.mxu0 0.0
        %1783 = vmatprep.subr.mxu0 0.0
        %1784 = vmatpush1.msra.mxu0 0.0
        %1785 = vmatprep.subr.mxu0 0.0
        %1786 = vmatpush1.msra.mxu0 0.0
        %1787 = vmatprep.subr.mxu0 0.0
        %1788 = vmatpush1.msra.mxu0 0.0
        %1789 = vmatprep.subr.mxu0 0.0
        %1790 = vmatpush1.msra.mxu0 0.0
        %1791 = vmatprep.subr.mxu0 0.0
        %1792 = vmatpush1.msra.mxu0 0.0
        %1793 = vmatprep.subr.mxu0 0.0
        %1794 = vmatpush1.msra.mxu0 0.0
        %1795 = vmatprep.mubr.f32.mxu0 0.0
        %1796 = vmatmul.mubr.f32.gmra.mrb[0].mxu0 %v1729
        %v1797 = vpop.f32.mrb[0].mxu0
        %v1798 = vadd.f32 0.0, %v1797
        %v1799 = vpop.f32.mrb[0].mxu0
        %1800 = vdwg.mxu0
        %v1801 = vmul.f32 %v1798, %v1727
        %1802 = vst [vmem:[#allocation3 + $0x18] sm:$0xff] %v1801
        %v1803 = vld [vmem:[#allocation2 + $0x20] sm:$0xff]
        %v1804 = vld [vmem:[#allocation2 + $0x60] sm:$0xff]
        %v1805 = vld [vmem:[#allocation2 + $0xa0] sm:$0xff]
        %1806 = vmatprep.subr.mxu0 0.0
        %1807 = vmatpush1.xpose.msra.mxu0 %v1804
        %1808 = vmatprep.subr.mxu0 0.0
        %1809 = vmatpush1.xpose.msra.mxu0 0.0
        %1810 = vmatprep.subr.mxu0 0.0
        %1811 = vmatpush1.xpose.msra.mxu0 0.0
        %1812 = vmatprep.subr.mxu0 0.0
        %1813 = vmatpush1.xpose.msra.mxu0 0.0
        %1814 = vmatprep.subr.mxu0 0.0
        %1815 = vmatpush1.xpose.msra.mxu0 0.0
        %1816 = vmatprep.subr.mxu0 0.0
        %1817 = vmatpush1.xpose.msra.mxu0 0.0
        %1818 = vmatprep.subr.mxu0 0.0
        %1819 = vmatpush1.xpose.msra.mxu0 0.0
        %1820 = vmatprep.subr.mxu0 0.0
        %1821 = vmatpush1.xpose.msra.mxu0 0.0
        %1822 = vmatprep.subr.mxu0 0.0
        %1823 = vmatpush1.xpose.msra.mxu0 0.0
        %1824 = vmatprep.subr.mxu0 0.0
        %1825 = vmatpush1.xpose.msra.mxu0 0.0
        %1826 = vmatprep.subr.mxu0 0.0
        %1827 = vmatpush1.xpose.msra.mxu0 0.0
        %1828 = vmatprep.subr.mxu0 0.0
        %1829 = vmatpush1.xpose.msra.mxu0 0.0
        %1830 = vmatprep.subr.mxu0 0.0
        %1831 = vmatpush1.xpose.msra.mxu0 0.0
        %1832 = vmatprep.subr.mxu0 0.0
        %1833 = vmatpush1.xpose.msra.mxu0 0.0
        %1834 = vmatprep.subr.mxu0 0.0
        %1835 = vmatpush1.xpose.msra.mxu0 0.0
        %1836 = vmatprep.subr.mxu0 0.0
        %1837 = vmatpush1.xpose.msra.mxu0 0.0
        %1838 = vmatprep.subr.mxu0 0.0
        %1839 = vmatpush1.xpose.msra.mxu0 0.0
        %1840 = vmatprep.subr.mxu0 0.0
        %1841 = vmatpush1.xpose.msra.mxu0 0.0
        %1842 = vmatprep.subr.mxu0 0.0
        %1843 = vmatpush1.xpose.msra.mxu0 0.0
        %1844 = vmatprep.subr.mxu0 0.0
        %1845 = vmatpush1.xpose.msra.mxu0 0.0
        %1846 = vmatprep.subr.mxu0 0.0
        %1847 = vmatpush1.xpose.msra.mxu0 0.0
        %1848 = vmatprep.subr.mxu0 0.0
        %1849 = vmatpush1.xpose.msra.mxu0 0.0
        %1850 = vmatprep.subr.mxu0 0.0
        %1851 = vmatpush1.xpose.msra.mxu0 0.0
        %1852 = vmatprep.subr.mxu0 0.0
        %1853 = vmatpush1.xpose.msra.mxu0 0.0
        %1854 = vmatprep.subr.mxu0 0.0
        %1855 = vmatpush1.xpose.msra.mxu0 0.0
        %1856 = vmatprep.subr.mxu0 0.0
        %1857 = vmatpush1.xpose.msra.mxu0 0.0
        %1858 = vmatprep.subr.mxu0 0.0
        %1859 = vmatpush1.xpose.msra.mxu0 0.0
        %1860 = vmatprep.subr.mxu0 0.0
        %1861 = vmatpush1.xpose.msra.mxu0 0.0
        %1862 = vmatprep.subr.mxu0 0.0
        %1863 = vmatpush1.xpose.msra.mxu0 0.0
        %1864 = vmatprep.subr.mxu0 0.0
        %1865 = vmatpush1.xpose.msra.mxu0 0.0
        %1866 = vmatprep.subr.mxu0 0.0
        %1867 = vmatpush1.xpose.msra.mxu0 0.0
        %1868 = vmatprep.subr.mxu0 0.0
        %1869 = vmatpush1.xpose.msra.mxu0 0.0
        %1870 = vmatprep.mubr.f32.mxu0 0.0
        %1871 = vmatmul.mubr.f32.gmra.mrb[0].mxu0 %v1803
        %v1872 = vpop.f32.mrb[0].mxu0
        %v1873 = vadd.f32 0.0, %v1872
        %v1874 = vpop.f32.mrb[0].mxu0
        %1875 = vdwg.mxu0
        %v1876 = vsel %vm1243, %v1873, -inf
        %1877 = vmax.xlane.f32.xlu0 %v1876
        %v1878 = vpop.xlane.xlu0 %1877
        %v1879 = vsub.f32 %v1873, %v1878
        %v1880 = vmul.f32 %v1879, 1.442695
        %v1881 = vpow.pop %v1880
        %v1882 = vsel %vm1243, %v1881, 0.0
        %1883 = vadd.xlane.f32.xlu0 %v1882
        %v1884 = vpop.xlane.xlu0 %1883
        %v1885 = vrcp.pop %v1884
        %v1887 = vsel %vm1243, %v1881, 0
        %1889 = vmatprep.subr.mxu0 0.0
        %1890 = vmatpush1.msra.mxu0 %v1805
        %1891 = vmatprep.subr.mxu0 0.0
        %1892 = vmatpush1.msra.mxu0 0.0
        %1893 = vmatprep.subr.mxu0 0.0
        %1894 = vmatpush1.msra.mxu0 0.0
        %1895 = vmatprep.subr.mxu0 0.0
        %1896 = vmatpush1.msra.mxu0 0.0
        %1897 = vmatprep.subr.mxu0 0.0
        %1898 = vmatpush1.msra.mxu0 0.0
        %1899 = vmatprep.subr.mxu0 0.0
        %1900 = vmatpush1.msra.mxu0 0.0
        %1901 = vmatprep.subr.mxu0 0.0
        %1902 = vmatpush1.msra.mxu0 0.0
        %1903 = vmatprep.subr.mxu0 0.0
        %1904 = vmatpush1.msra.mxu0 0.0
        %1905 = vmatprep.subr.mxu0 0.0
        %1906 = vmatpush1.msra.mxu0 0.0
        %1907 = vmatprep.subr.mxu0 0.0
        %1908 = vmatpush1.msra.mxu0 0.0
        %1909 = vmatprep.subr.mxu0 0.0
        %1910 = vmatpush1.msra.mxu0 0.0
        %1911 = vmatprep.subr.mxu0 0.0
        %1912 = vmatpush1.msra.mxu0 0.0
        %1913 = vmatprep.subr.mxu0 0.0
        %1914 = vmatpush1.msra.mxu0 0.0
        %1915 = vmatprep.subr.mxu0 0.0
        %1916 = vmatpush1.msra.mxu0 0.0
        %1917 = vmatprep.subr.mxu0 0.0
        %1918 = vmatpush1.msra.mxu0 0.0
        %1919 = vmatprep.subr.mxu0 0.0
        %1920 = vmatpush1.msra.mxu0 0.0
        %1921 = vmatprep.subr.mxu0 0.0
        %1922 = vmatpush1.msra.mxu0 0.0
        %1923 = vmatprep.subr.mxu0 0.0
        %1924 = vmatpush1.msra.mxu0 0.0
        %1925 = vmatprep.subr.mxu0 0.0
        %1926 = vmatpush1.msra.mxu0 0.0
        %1927 = vmatprep.subr.mxu0 0.0
        %1928 = vmatpush1.msra.mxu0 0.0
        %1929 = vmatprep.subr.mxu0 0.0
        %1930 = vmatpush1.msra.mxu0 0.0
        %1931 = vmatprep.subr.mxu0 0.0
        %1932 = vmatpush1.msra.mxu0 0.0
        %1933 = vmatprep.subr.mxu0 0.0
        %1934 = vmatpush1.msra.mxu0 0.0
        %1935 = vmatprep.subr.mxu0 0.0
        %1936 = vmatpush1.msra.mxu0 0.0
        %1937 = vmatprep.subr.mxu0 0.0
        %1938 = vmatpush1.msra.mxu0 0.0
        %1939 = vmatprep.subr.mxu0 0.0
        %1940 = vmatpush1.msra.mxu0 0.0
        %1941 = vmatprep.subr.mxu0 0.0
        %1942 = vmatpush1.msra.mxu0 0.0
        %1943 = vmatprep.subr.mxu0 0.0
        %1944 = vmatpush1.msra.mxu0 0.0
        %1945 = vmatprep.subr.mxu0 0.0
        %1946 = vmatpush1.msra.mxu0 0.0
        %1947 = vmatprep.subr.mxu0 0.0
        %1948 = vmatpush1.msra.mxu0 0.0
        %1949 = vmatprep.subr.mxu0 0.0
        %1950 = vmatpush1.msra.mxu0 0.0
        %1951 = vmatprep.subr.mxu0 0.0
        %1952 = vmatpush1.msra.mxu0 0.0
        %1953 = vmatprep.mubr.f32.mxu0 0.0
        %1954 = vmatmul.mubr.f32.gmra.mrb[0].mxu0 %v1887
        %v1955 = vpop.f32.mrb[0].mxu0
        %v1956 = vadd.f32 0.0, %v1955
        %v1957 = vpop.f32.mrb[0].mxu0
        %1958 = vdwg.mxu0
        %v1959 = vmul.f32 %v1956, %v1885
        %1960 = vst [vmem:[#allocation3 + $0x20] sm:$0xff] %v1959
        %v1961 = vld [vmem:[#allocation2 + $0x28] sm:$0xff]
        %v1962 = vld [vmem:[#allocation2 + $0x68] sm:$0xff]
        %v1963 = vld [vmem:[#allocation2 + $0xa8] sm:$0xff]
        %1964 = vmatprep.subr.mxu0 0.0
        %1965 = vmatpush1.xpose.msra.mxu0 %v1962
        %1966 = vmatprep.subr.mxu0 0.0
        %1967 = vmatpush1.xpose.msra.mxu0 0.0
        %1968 = vmatprep.subr.mxu0 0.0
        %1969 = vmatpush1.xpose.msra.mxu0 0.0
        %1970 = vmatprep.subr.mxu0 0.0
        %1971 = vmatpush1.xpose.msra.mxu0 0.0
        %1972 = vmatprep.subr.mxu0 0.0
        %1973 = vmatpush1.xpose.msra.mxu0 0.0
        %1974 = vmatprep.subr.mxu0 0.0
        %1975 = vmatpush1.xpose.msra.mxu0 0.0
        %1976 = vmatprep.subr.mxu0 0.0
        %1977 = vmatpush1.xpose.msra.mxu0 0.0
        %1978 = vmatprep.subr.mxu0 0.0
        %1979 = vmatpush1.xpose.msra.mxu0 0.0
        %1980 = vmatprep.subr.mxu0 0.0
        %1981 = vmatpush1.xpose.msra.mxu0 0.0
        %1982 = vmatprep.subr.mxu0 0.0
        %1983 = vmatpush1.xpose.msra.mxu0 0.0
        %1984 = vmatprep.subr.mxu0 0.0
        %1985 = vmatpush1.xpose.msra.mxu0 0.0
        %1986 = vmatprep.subr.mxu0 0.0
        %1987 = vmatpush1.xpose.msra.mxu0 0.0
        %1988 = vmatprep.subr.mxu0 0.0
        %1989 = vmatpush1.xpose.msra.mxu0 0.0
        %1990 = vmatprep.subr.mxu0 0.0
        %1991 = vmatpush1.xpose.msra.mxu0 0.0
        %1992 = vmatprep.subr.mxu0 0.0
        %1993 = vmatpush1.xpose.msra.mxu0 0.0
        %1994 = vmatprep.subr.mxu0 0.0
        %1995 = vmatpush1.xpose.msra.mxu0 0.0
        %1996 = vmatprep.subr.mxu0 0.0
        %1997 = vmatpush1.xpose.msra.mxu0 0.0
        %1998 = vmatprep.subr.mxu0 0.0
        %1999 = vmatpush1.xpose.msra.mxu0 0.0
        %2000 = vmatprep.subr.mxu0 0.0
        %2001 = vmatpush1.xpose.msra.mxu0 0.0
        %2002 = vmatprep.subr.mxu0 0.0
        %2003 = vmatpush1.xpose.msra.mxu0 0.0
        %2004 = vmatprep.subr.mxu0 0.0
        %2005 = vmatpush1.xpose.msra.mxu0 0.0
        %2006 = vmatprep.subr.mxu0 0.0
        %2007 = vmatpush1.xpose.msra.mxu0 0.0
        %2008 = vmatprep.subr.mxu0 0.0
        %2009 = vmatpush1.xpose.msra.mxu0 0.0
        %2010 = vmatprep.subr.mxu0 0.0
        %2011 = vmatpush1.xpose.msra.mxu0 0.0
        %2012 = vmatprep.subr.mxu0 0.0
        %2013 = vmatpush1.xpose.msra.mxu0 0.0
        %2014 = vmatprep.subr.mxu0 0.0
        %2015 = vmatpush1.xpose.msra.mxu0 0.0
        %2016 = vmatprep.subr.mxu0 0.0
        %2017 = vmatpush1.xpose.msra.mxu0 0.0
        %2018 = vmatprep.subr.mxu0 0.0
        %2019 = vmatpush1.xpose.msra.mxu0 0.0
        %2020 = vmatprep.subr.mxu0 0.0
        %2021 = vmatpush1.xpose.msra.mxu0 0.0
        %2022 = vmatprep.subr.mxu0 0.0
        %2023 = vmatpush1.xpose.msra.mxu0 0.0
        %2024 = vmatprep.subr.mxu0 0.0
        %2025 = vmatpush1.xpose.msra.mxu0 0.0
        %2026 = vmatprep.subr.mxu0 0.0
        %2027 = vmatpush1.xpose.msra.mxu0 0.0
        %2028 = vmatprep.mubr.f32.mxu0 0.0
        %2029 = vmatmul.mubr.f32.gmra.mrb[0].mxu0 %v1961
        %v2030 = vpop.f32.mrb[0].mxu0
        %v2031 = vadd.f32 0.0, %v2030
        %v2032 = vpop.f32.mrb[0].mxu0
        %2033 = vdwg.mxu0
        %v2034 = vsel %vm1243, %v2031, -inf
        %2035 = vmax.xlane.f32.xlu0 %v2034
        %v2036 = vpop.xlane.xlu0 %2035
        %v2037 = vsub.f32 %v2031, %v2036
        %v2038 = vmul.f32 %v2037, 1.442695
        %v2039 = vpow.pop %v2038
        %v2040 = vsel %vm1243, %v2039, 0.0
        %2041 = vadd.xlane.f32.xlu0 %v2040
        %v2042 = vpop.xlane.xlu0 %2041
        %v2043 = vrcp.pop %v2042
        %v2045 = vsel %vm1243, %v2039, 0
        %2047 = vmatprep.subr.mxu0 0.0
        %2048 = vmatpush1.msra.mxu0 %v1963
        %2049 = vmatprep.subr.mxu0 0.0
        %2050 = vmatpush1.msra.mxu0 0.0
        %2051 = vmatprep.subr.mxu0 0.0
        %2052 = vmatpush1.msra.mxu0 0.0
        %2053 = vmatprep.subr.mxu0 0.0
        %2054 = vmatpush1.msra.mxu0 0.0
        %2055 = vmatprep.subr.mxu0 0.0
        %2056 = vmatpush1.msra.mxu0 0.0
        %2057 = vmatprep.subr.mxu0 0.0
        %2058 = vmatpush1.msra.mxu0 0.0
        %2059 = vmatprep.subr.mxu0 0.0
        %2060 = vmatpush1.msra.mxu0 0.0
        %2061 = vmatprep.subr.mxu0 0.0
        %2062 = vmatpush1.msra.mxu0 0.0
        %2063 = vmatprep.subr.mxu0 0.0
        %2064 = vmatpush1.msra.mxu0 0.0
        %2065 = vmatprep.subr.mxu0 0.0
        %2066 = vmatpush1.msra.mxu0 0.0
        %2067 = vmatprep.subr.mxu0 0.0
        %2068 = vmatpush1.msra.mxu0 0.0
        %2069 = vmatprep.subr.mxu0 0.0
        %2070 = vmatpush1.msra.mxu0 0.0
        %2071 = vmatprep.subr.mxu0 0.0
        %2072 = vmatpush1.msra.mxu0 0.0
        %2073 = vmatprep.subr.mxu0 0.0
        %2074 = vmatpush1.msra.mxu0 0.0
        %2075 = vmatprep.subr.mxu0 0.0
        %2076 = vmatpush1.msra.mxu0 0.0
        %2077 = vmatprep.subr.mxu0 0.0
        %2078 = vmatpush1.msra.mxu0 0.0
        %2079 = vmatprep.subr.mxu0 0.0
        %2080 = vmatpush1.msra.mxu0 0.0
        %2081 = vmatprep.subr.mxu0 0.0
        %2082 = vmatpush1.msra.mxu0 0.0
        %2083 = vmatprep.subr.mxu0 0.0
        %2084 = vmatpush1.msra.mxu0 0.0
        %2085 = vmatprep.subr.mxu0 0.0
        %2086 = vmatpush1.msra.mxu0 0.0
        %2087 = vmatprep.subr.mxu0 0.0
        %2088 = vmatpush1.msra.mxu0 0.0
        %2089 = vmatprep.subr.mxu0 0.0
        %2090 = vmatpush1.msra.mxu0 0.0
        %2091 = vmatprep.subr.mxu0 0.0
        %2092 = vmatpush1.msra.mxu0 0.0
        %2093 = vmatprep.subr.mxu0 0.0
        %2094 = vmatpush1.msra.mxu0 0.0
        %2095 = vmatprep.subr.mxu0 0.0
        %2096 = vmatpush1.msra.mxu0 0.0
        %2097 = vmatprep.subr.mxu0 0.0
        %2098 = vmatpush1.msra.mxu0 0.0
        %2099 = vmatprep.subr.mxu0 0.0
        %2100 = vmatpush1.msra.mxu0 0.0
        %2101 = vmatprep.subr.mxu0 0.0
        %2102 = vmatpush1.msra.mxu0 0.0
        %2103 = vmatprep.subr.mxu0 0.0
        %2104 = vmatpush1.msra.mxu0 0.0
        %2105 = vmatprep.subr.mxu0 0.0
        %2106 = vmatpush1.msra.mxu0 0.0
        %2107 = vmatprep.subr.mxu0 0.0
        %2108 = vmatpush1.msra.mxu0 0.0
        %2109 = vmatprep.subr.mxu0 0.0
        %2110 = vmatpush1.msra.mxu0 0.0
        %2111 = vmatprep.mubr.f32.mxu0 0.0
        %2112 = vmatmul.mubr.f32.gmra.mrb[0].mxu0 %v2045
        %v2113 = vpop.f32.mrb[0].mxu0
        %v2114 = vadd.f32 0.0, %v2113
        %v2115 = vpop.f32.mrb[0].mxu0
        %2116 = vdwg.mxu0
        %v2117 = vmul.f32 %v2114, %v2043
        %2118 = vst [vmem:[#allocation3 + $0x28] sm:$0xff] %v2117
        %v2119 = vld [vmem:[#allocation2 + $0x30] sm:$0xff]
        %v2120 = vld [vmem:[#allocation2 + $0x70] sm:$0xff]
        %v2121 = vld [vmem:[#allocation2 + $0xb0] sm:$0xff]
        %2122 = vmatprep.subr.mxu0 0.0
        %2123 = vmatpush1.xpose.msra.mxu0 %v2120
        %2124 = vmatprep.subr.mxu0 0.0
        %2125 = vmatpush1.xpose.msra.mxu0 0.0
        %2126 = vmatprep.subr.mxu0 0.0
        %2127 = vmatpush1.xpose.msra.mxu0 0.0
        %2128 = vmatprep.subr.mxu0 0.0
        %2129 = vmatpush1.xpose.msra.mxu0 0.0
        %2130 = vmatprep.subr.mxu0 0.0
        %2131 = vmatpush1.xpose.msra.mxu0 0.0
        %2132 = vmatprep.subr.mxu0 0.0
        %2133 = vmatpush1.xpose.msra.mxu0 0.0
        %2134 = vmatprep.subr.mxu0 0.0
        %2135 = vmatpush1.xpose.msra.mxu0 0.0
        %2136 = vmatprep.subr.mxu0 0.0
        %2137 = vmatpush1.xpose.msra.mxu0 0.0
        %2138 = vmatprep.subr.mxu0 0.0
        %2139 = vmatpush1.xpose.msra.mxu0 0.0
        %2140 = vmatprep.subr.mxu0 0.0
        %2141 = vmatpush1.xpose.msra.mxu0 0.0
        %2142 = vmatprep.subr.mxu0 0.0
        %2143 = vmatpush1.xpose.msra.mxu0 0.0
        %2144 = vmatprep.subr.mxu0 0.0
        %2145 = vmatpush1.xpose.msra.mxu0 0.0
        %2146 = vmatprep.subr.mxu0 0.0
        %2147 = vmatpush1.xpose.msra.mxu0 0.0
        %2148 = vmatprep.subr.mxu0 0.0
        %2149 = vmatpush1.xpose.msra.mxu0 0.0
        %2150 = vmatprep.subr.mxu0 0.0
        %2151 = vmatpush1.xpose.msra.mxu0 0.0
        %2152 = vmatprep.subr.mxu0 0.0
        %2153 = vmatpush1.xpose.msra.mxu0 0.0
        %2154 = vmatprep.subr.mxu0 0.0
        %2155 = vmatpush1.xpose.msra.mxu0 0.0
        %2156 = vmatprep.subr.mxu0 0.0
        %2157 = vmatpush1.xpose.msra.mxu0 0.0
        %2158 = vmatprep.subr.mxu0 0.0
        %2159 = vmatpush1.xpose.msra.mxu0 0.0
        %2160 = vmatprep.subr.mxu0 0.0
        %2161 = vmatpush1.xpose.msra.mxu0 0.0
        %2162 = vmatprep.subr.mxu0 0.0
        %2163 = vmatpush1.xpose.msra.mxu0 0.0
        %2164 = vmatprep.subr.mxu0 0.0
        %2165 = vmatpush1.xpose.msra.mxu0 0.0
        %2166 = vmatprep.subr.mxu0 0.0
        %2167 = vmatpush1.xpose.msra.mxu0 0.0
        %2168 = vmatprep.subr.mxu0 0.0
        %2169 = vmatpush1.xpose.msra.mxu0 0.0
        %2170 = vmatprep.subr.mxu0 0.0
        %2171 = vmatpush1.xpose.msra.mxu0 0.0
        %2172 = vmatprep.subr.mxu0 0.0
        %2173 = vmatpush1.xpose.msra.mxu0 0.0
        %2174 = vmatprep.subr.mxu0 0.0
        %2175 = vmatpush1.xpose.msra.mxu0 0.0
        %2176 = vmatprep.subr.mxu0 0.0
        %2177 = vmatpush1.xpose.msra.mxu0 0.0
        %2178 = vmatprep.subr.mxu0 0.0
        %2179 = vmatpush1.xpose.msra.mxu0 0.0
        %2180 = vmatprep.subr.mxu0 0.0
        %2181 = vmatpush1.xpose.msra.mxu0 0.0
        %2182 = vmatprep.subr.mxu0 0.0
        %2183 = vmatpush1.xpose.msra.mxu0 0.0
        %2184 = vmatprep.subr.mxu0 0.0
        %2185 = vmatpush1.xpose.msra.mxu0 0.0
        %2186 = vmatprep.mubr.f32.mxu0 0.0
        %2187 = vmatmul.mubr.f32.gmra.mrb[0].mxu0 %v2119
        %v2188 = vpop.f32.mrb[0].mxu0
        %v2189 = vadd.f32 0.0, %v2188
        %v2190 = vpop.f32.mrb[0].mxu0
        %2191 = vdwg.mxu0
        %v2192 = vsel %vm1243, %v2189, -inf
        %2193 = vmax.xlane.f32.xlu0 %v2192
        %v2194 = vpop.xlane.xlu0 %2193
        %v2195 = vsub.f32 %v2189, %v2194
        %v2196 = vmul.f32 %v2195, 1.442695
        %v2197 = vpow.pop %v2196
        %v2198 = vsel %vm1243, %v2197, 0.0
        %2199 = vadd.xlane.f32.xlu0 %v2198
        %v2200 = vpop.xlane.xlu0 %2199
        %v2201 = vrcp.pop %v2200
        %v2203 = vsel %vm1243, %v2197, 0
        %2205 = vmatprep.subr.mxu0 0.0
        %2206 = vmatpush1.msra.mxu0 %v2121
        %2207 = vmatprep.subr.mxu0 0.0
        %2208 = vmatpush1.msra.mxu0 0.0
        %2209 = vmatprep.subr.mxu0 0.0
        %2210 = vmatpush1.msra.mxu0 0.0
        %2211 = vmatprep.subr.mxu0 0.0
        %2212 = vmatpush1.msra.mxu0 0.0
        %2213 = vmatprep.subr.mxu0 0.0
        %2214 = vmatpush1.msra.mxu0 0.0
        %2215 = vmatprep.subr.mxu0 0.0
        %2216 = vmatpush1.msra.mxu0 0.0
        %2217 = vmatprep.subr.mxu0 0.0
        %2218 = vmatpush1.msra.mxu0 0.0
        %2219 = vmatprep.subr.mxu0 0.0
        %2220 = vmatpush1.msra.mxu0 0.0
        %2221 = vmatprep.subr.mxu0 0.0
        %2222 = vmatpush1.msra.mxu0 0.0
        %2223 = vmatprep.subr.mxu0 0.0
        %2224 = vmatpush1.msra.mxu0 0.0
        %2225 = vmatprep.subr.mxu0 0.0
        %2226 = vmatpush1.msra.mxu0 0.0
        %2227 = vmatprep.subr.mxu0 0.0
        %2228 = vmatpush1.msra.mxu0 0.0
        %2229 = vmatprep.subr.mxu0 0.0
        %2230 = vmatpush1.msra.mxu0 0.0
        %2231 = vmatprep.subr.mxu0 0.0
        %2232 = vmatpush1.msra.mxu0 0.0
        %2233 = vmatprep.subr.mxu0 0.0
        %2234 = vmatpush1.msra.mxu0 0.0
        %2235 = vmatprep.subr.mxu0 0.0
        %2236 = vmatpush1.msra.mxu0 0.0
        %2237 = vmatprep.subr.mxu0 0.0
        %2238 = vmatpush1.msra.mxu0 0.0
        %2239 = vmatprep.subr.mxu0 0.0
        %2240 = vmatpush1.msra.mxu0 0.0
        %2241 = vmatprep.subr.mxu0 0.0
        %2242 = vmatpush1.msra.mxu0 0.0
        %2243 = vmatprep.subr.mxu0 0.0
        %2244 = vmatpush1.msra.mxu0 0.0
        %2245 = vmatprep.subr.mxu0 0.0
        %2246 = vmatpush1.msra.mxu0 0.0
        %2247 = vmatprep.subr.mxu0 0.0
        %2248 = vmatpush1.msra.mxu0 0.0
        %2249 = vmatprep.subr.mxu0 0.0
        %2250 = vmatpush1.msra.mxu0 0.0
        %2251 = vmatprep.subr.mxu0 0.0
        %2252 = vmatpush1.msra.mxu0 0.0
        %2253 = vmatprep.subr.mxu0 0.0
        %2254 = vmatpush1.msra.mxu0 0.0
        %2255 = vmatprep.subr.mxu0 0.0
        %2256 = vmatpush1.msra.mxu0 0.0
        %2257 = vmatprep.subr.mxu0 0.0
        %2258 = vmatpush1.msra.mxu0 0.0
        %2259 = vmatprep.subr.mxu0 0.0
        %2260 = vmatpush1.msra.mxu0 0.0
        %2261 = vmatprep.subr.mxu0 0.0
        %2262 = vmatpush1.msra.mxu0 0.0
        %2263 = vmatprep.subr.mxu0 0.0
        %2264 = vmatpush1.msra.mxu0 0.0
        %2265 = vmatprep.subr.mxu0 0.0
        %2266 = vmatpush1.msra.mxu0 0.0
        %2267 = vmatprep.subr.mxu0 0.0
        %2268 = vmatpush1.msra.mxu0 0.0
        %2269 = vmatprep.mubr.f32.mxu0 0.0
        %2270 = vmatmul.mubr.f32.gmra.mrb[0].mxu0 %v2203
        %v2271 = vpop.f32.mrb[0].mxu0
        %v2272 = vadd.f32 0.0, %v2271
        %v2273 = vpop.f32.mrb[0].mxu0
        %2274 = vdwg.mxu0
        %v2275 = vmul.f32 %v2272, %v2201
        %2276 = vst [vmem:[#allocation3 + $0x30] sm:$0xff] %v2275
        %v2277 = vld [vmem:[#allocation2 + $0x38] sm:$0xff]
        %v2278 = vld [vmem:[#allocation2 + $0x78] sm:$0xff]
        %v2279 = vld [vmem:[#allocation2 + $0xb8] sm:$0xff]
        %2280 = vmatprep.subr.mxu0 0.0
        %2281 = vmatpush1.xpose.msra.mxu0 %v2278
        %2282 = vmatprep.subr.mxu0 0.0
        %2283 = vmatpush1.xpose.msra.mxu0 0.0
        %2284 = vmatprep.subr.mxu0 0.0
        %2285 = vmatpush1.xpose.msra.mxu0 0.0
        %2286 = vmatprep.subr.mxu0 0.0
        %2287 = vmatpush1.xpose.msra.mxu0 0.0
        %2288 = vmatprep.subr.mxu0 0.0
        %2289 = vmatpush1.xpose.msra.mxu0 0.0
        %2290 = vmatprep.subr.mxu0 0.0
        %2291 = vmatpush1.xpose.msra.mxu0 0.0
        %2292 = vmatprep.subr.mxu0 0.0
        %2293 = vmatpush1.xpose.msra.mxu0 0.0
        %2294 = vmatprep.subr.mxu0 0.0
        %2295 = vmatpush1.xpose.msra.mxu0 0.0
        %2296 = vmatprep.subr.mxu0 0.0
        %2297 = vmatpush1.xpose.msra.mxu0 0.0
        %2298 = vmatprep.subr.mxu0 0.0
        %2299 = vmatpush1.xpose.msra.mxu0 0.0
        %2300 = vmatprep.subr.mxu0 0.0
        %2301 = vmatpush1.xpose.msra.mxu0 0.0
        %2302 = vmatprep.subr.mxu0 0.0
        %2303 = vmatpush1.xpose.msra.mxu0 0.0
        %2304 = vmatprep.subr.mxu0 0.0
        %2305 = vmatpush1.xpose.msra.mxu0 0.0
        %2306 = vmatprep.subr.mxu0 0.0
        %2307 = vmatpush1.xpose.msra.mxu0 0.0
        %2308 = vmatprep.subr.mxu0 0.0
        %2309 = vmatpush1.xpose.msra.mxu0 0.0
        %2310 = vmatprep.subr.mxu0 0.0
        %2311 = vmatpush1.xpose.msra.mxu0 0.0
        %2312 = vmatprep.subr.mxu0 0.0
        %2313 = vmatpush1.xpose.msra.mxu0 0.0
        %2314 = vmatprep.subr.mxu0 0.0
        %2315 = vmatpush1.xpose.msra.mxu0 0.0
        %2316 = vmatprep.subr.mxu0 0.0
        %2317 = vmatpush1.xpose.msra.mxu0 0.0
        %2318 = vmatprep.subr.mxu0 0.0
        %2319 = vmatpush1.xpose.msra.mxu0 0.0
        %2320 = vmatprep.subr.mxu0 0.0
        %2321 = vmatpush1.xpose.msra.mxu0 0.0
        %2322 = vmatprep.subr.mxu0 0.0
        %2323 = vmatpush1.xpose.msra.mxu0 0.0
        %2324 = vmatprep.subr.mxu0 0.0
        %2325 = vmatpush1.xpose.msra.mxu0 0.0
        %2326 = vmatprep.subr.mxu0 0.0
        %2327 = vmatpush1.xpose.msra.mxu0 0.0
        %2328 = vmatprep.subr.mxu0 0.0
        %2329 = vmatpush1.xpose.msra.mxu0 0.0
        %2330 = vmatprep.subr.mxu0 0.0
        %2331 = vmatpush1.xpose.msra.mxu0 0.0
        %2332 = vmatprep.subr.mxu0 0.0
        %2333 = vmatpush1.xpose.msra.mxu0 0.0
        %2334 = vmatprep.subr.mxu0 0.0
        %2335 = vmatpush1.xpose.msra.mxu0 0.0
        %2336 = vmatprep.subr.mxu0 0.0
        %2337 = vmatpush1.xpose.msra.mxu0 0.0
        %2338 = vmatprep.subr.mxu0 0.0
        %2339 = vmatpush1.xpose.msra.mxu0 0.0
        %2340 = vmatprep.subr.mxu0 0.0
        %2341 = vmatpush1.xpose.msra.mxu0 0.0
        %2342 = vmatprep.subr.mxu0 0.0
        %2343 = vmatpush1.xpose.msra.mxu0 0.0
        %2344 = vmatprep.mubr.f32.mxu0 0.0
        %2345 = vmatmul.mubr.f32.gmra.mrb[0].mxu0 %v2277
        %v2346 = vpop.f32.mrb[0].mxu0
        %v2347 = vadd.f32 0.0, %v2346
        %v2348 = vpop.f32.mrb[0].mxu0
        %2349 = vdwg.mxu0
        %v2350 = vsel %vm1243, %v2347, -inf
        %2351 = vmax.xlane.f32.xlu0 %v2350
        %v2352 = vpop.xlane.xlu0 %2351
        %v2353 = vsub.f32 %v2347, %v2352
        %v2354 = vmul.f32 %v2353, 1.442695
        %v2355 = vpow.pop %v2354
        %v2356 = vsel %vm1243, %v2355, 0.0
        %2357 = vadd.xlane.f32.xlu0 %v2356
        %v2358 = vpop.xlane.xlu0 %2357
        %v2359 = vrcp.pop %v2358
        %v2361 = vsel %vm1243, %v2355, 0
        %2363 = vmatprep.subr.mxu0 0.0
        %2364 = vmatpush1.msra.mxu0 %v2279
        %2365 = vmatprep.subr.mxu0 0.0
        %2366 = vmatpush1.msra.mxu0 0.0
        %2367 = vmatprep.subr.mxu0 0.0
        %2368 = vmatpush1.msra.mxu0 0.0
        %2369 = vmatprep.subr.mxu0 0.0
        %2370 = vmatpush1.msra.mxu0 0.0
        %2371 = vmatprep.subr.mxu0 0.0
        %2372 = vmatpush1.msra.mxu0 0.0
        %2373 = vmatprep.subr.mxu0 0.0
        %2374 = vmatpush1.msra.mxu0 0.0
        %2375 = vmatprep.subr.mxu0 0.0
        %2376 = vmatpush1.msra.mxu0 0.0
        %2377 = vmatprep.subr.mxu0 0.0
        %2378 = vmatpush1.msra.mxu0 0.0
        %2379 = vmatprep.subr.mxu0 0.0
        %2380 = vmatpush1.msra.mxu0 0.0
        %2381 = vmatprep.subr.mxu0 0.0
        %2382 = vmatpush1.msra.mxu0 0.0
        %2383 = vmatprep.subr.mxu0 0.0
        %2384 = vmatpush1.msra.mxu0 0.0
        %2385 = vmatprep.subr.mxu0 0.0
        %2386 = vmatpush1.msra.mxu0 0.0
        %2387 = vmatprep.subr.mxu0 0.0
        %2388 = vmatpush1.msra.mxu0 0.0
        %2389 = vmatprep.subr.mxu0 0.0
        %2390 = vmatpush1.msra.mxu0 0.0
        %2391 = vmatprep.subr.mxu0 0.0
        %2392 = vmatpush1.msra.mxu0 0.0
        %2393 = vmatprep.subr.mxu0 0.0
        %2394 = vmatpush1.msra.mxu0 0.0
        %2395 = vmatprep.subr.mxu0 0.0
        %2396 = vmatpush1.msra.mxu0 0.0
        %2397 = vmatprep.subr.mxu0 0.0
        %2398 = vmatpush1.msra.mxu0 0.0
        %2399 = vmatprep.subr.mxu0 0.0
        %2400 = vmatpush1.msra.mxu0 0.0
        %2401 = vmatprep.subr.mxu0 0.0
        %2402 = vmatpush1.msra.mxu0 0.0
        %2403 = vmatprep.subr.mxu0 0.0
        %2404 = vmatpush1.msra.mxu0 0.0
        %2405 = vmatprep.subr.mxu0 0.0
        %2406 = vmatpush1.msra.mxu0 0.0
        %2407 = vmatprep.subr.mxu0 0.0
        %2408 = vmatpush1.msra.mxu0 0.0
        %2409 = vmatprep.subr.mxu0 0.0
        %2410 = vmatpush1.msra.mxu0 0.0
        %2411 = vmatprep.subr.mxu0 0.0
        %2412 = vmatpush1.msra.mxu0 0.0
        %2413 = vmatprep.subr.mxu0 0.0
        %2414 = vmatpush1.msra.mxu0 0.0
        %2415 = vmatprep.subr.mxu0 0.0
        %2416 = vmatpush1.msra.mxu0 0.0
        %2417 = vmatprep.subr.mxu0 0.0
        %2418 = vmatpush1.msra.mxu0 0.0
        %2419 = vmatprep.subr.mxu0 0.0
        %2420 = vmatpush1.msra.mxu0 0.0
        %2421 = vmatprep.subr.mxu0 0.0
        %2422 = vmatpush1.msra.mxu0 0.0
        %2423 = vmatprep.subr.mxu0 0.0
        %2424 = vmatpush1.msra.mxu0 0.0
        %2425 = vmatprep.subr.mxu0 0.0
        %2426 = vmatpush1.msra.mxu0 0.0
        %2427 = vmatprep.mubr.f32.mxu0 0.0
        %2428 = vmatmul.mubr.f32.gmra.mrb[0].mxu0 %v2361
        %v2429 = vpop.f32.mrb[0].mxu0
        %v2430 = vadd.f32 0.0, %v2429
        %v2431 = vpop.f32.mrb[0].mxu0
        %2432 = vdwg.mxu0
        %v2433 = vmul.f32 %v2430, %v2359
        %2434 = vst [vmem:[#allocation3 + $0x38] sm:$0xff] %v2433
        %v2435 = vld [vmem:[#allocation3] sm:$0xff]
        %v2436 = vld [vmem:[#allocation3 + $0x8] sm:$0xff]
        %v2437 = vld [vmem:[#allocation3 + $0x10] sm:$0xff]
        %v2438 = vld [vmem:[#allocation3 + $0x18] sm:$0xff]
        %v2439 = vld [vmem:[#allocation3 + $0x20] sm:$0xff]
        %v2440 = vld [vmem:[#allocation3 + $0x28] sm:$0xff]
        %v2441 = vld [vmem:[#allocation3 + $0x30] sm:$0xff]
        %v2442 = vld [vmem:[#allocation3 + $0x38] sm:$0xff]
        %v2443 = vld [vmem:[%s2] sm:$0xff]
        %v2444 = vld [vmem:[%s2 + $0x8] sm:$0xff]
        %v2445 = vld [vmem:[%s2 + $0x10] sm:$0xff]
        %v2446 = vld [vmem:[%s2 + $0x18] sm:$0xff]
        %v2447 = vld [vmem:[%s2 + $0x20] sm:$0xff]
        %v2448 = vld [vmem:[%s2 + $0x28] sm:$0xff]
        %v2449 = vld [vmem:[%s2 + $0x30] sm:$0xff]
        %v2450 = vld [vmem:[%s2 + $0x38] sm:$0xff]
        %v2451 = vld [vmem:[%s2 + $0x40] sm:$0xff]
        %v2452 = vld [vmem:[%s2 + $0x48] sm:$0xff]
        %v2453 = vld [vmem:[%s2 + $0x50] sm:$0xff]
        %v2454 = vld [vmem:[%s2 + $0x58] sm:$0xff]
        %v2455 = vld [vmem:[%s2 + $0x60] sm:$0xff]
        %v2456 = vld [vmem:[%s2 + $0x68] sm:$0xff]
        %v2457 = vld [vmem:[%s2 + $0x70] sm:$0xff]
        %v2458 = vld [vmem:[%s2 + $0x78] sm:$0xff]
        %v2459 = vld [vmem:[%s2 + $0x80] sm:$0xff]
        %v2460 = vld [vmem:[%s2 + $0x88] sm:$0xff]
        %v2461 = vld [vmem:[%s2 + $0x90] sm:$0xff]
        %v2462 = vld [vmem:[%s2 + $0x98] sm:$0xff]
        %v2463 = vld [vmem:[%s2 + $0xa0] sm:$0xff]
        %v2464 = vld [vmem:[%s2 + $0xa8] sm:$0xff]
        %v2465 = vld [vmem:[%s2 + $0xb0] sm:$0xff]
        %v2466 = vld [vmem:[%s2 + $0xb8] sm:$0xff]
        %v2467 = vld [vmem:[%s2 + $0xc0] sm:$0xff]
        %v2468 = vld [vmem:[%s2 + $0xc8] sm:$0xff]
        %v2469 = vld [vmem:[%s2 + $0xd0] sm:$0xff]
        %v2470 = vld [vmem:[%s2 + $0xd8] sm:$0xff]
        %v2471 = vld [vmem:[%s2 + $0xe0] sm:$0xff]
        %v2472 = vld [vmem:[%s2 + $0xe8] sm:$0xff]
        %v2473 = vld [vmem:[%s2 + $0xf0] sm:$0xff]
        %v2474 = vld [vmem:[%s2 + $0xf8] sm:$0xff]
        %v2475 = vld [vmem:[%s2 + $0x100] sm:$0xff]
        %v2476 = vld [vmem:[%s2 + $0x108] sm:$0xff]
        %v2477 = vld [vmem:[%s2 + $0x110] sm:$0xff]
        %v2478 = vld [vmem:[%s2 + $0x118] sm:$0xff]
        %v2479 = vld [vmem:[%s2 + $0x120] sm:$0xff]
        %v2480 = vld [vmem:[%s2 + $0x128] sm:$0xff]
        %v2481 = vld [vmem:[%s2 + $0x130] sm:$0xff]
        %v2482 = vld [vmem:[%s2 + $0x138] sm:$0xff]
        %v2483 = vld [vmem:[%s2 + $0x140] sm:$0xff]
        %v2484 = vld [vmem:[%s2 + $0x148] sm:$0xff]
        %v2485 = vld [vmem:[%s2 + $0x150] sm:$0xff]
        %v2486 = vld [vmem:[%s2 + $0x158] sm:$0xff]
        %v2487 = vld [vmem:[%s2 + $0x160] sm:$0xff]
        %v2488 = vld [vmem:[%s2 + $0x168] sm:$0xff]
        %v2489 = vld [vmem:[%s2 + $0x170] sm:$0xff]
        %v2490 = vld [vmem:[%s2 + $0x178] sm:$0xff]
        %v2491 = vld [vmem:[%s2 + $0x180] sm:$0xff]
        %v2492 = vld [vmem:[%s2 + $0x188] sm:$0xff]
        %v2493 = vld [vmem:[%s2 + $0x190] sm:$0xff]
        %v2494 = vld [vmem:[%s2 + $0x198] sm:$0xff]
        %v2495 = vld [vmem:[%s2 + $0x1a0] sm:$0xff]
        %v2496 = vld [vmem:[%s2 + $0x1a8] sm:$0xff]
        %v2497 = vld [vmem:[%s2 + $0x1b0] sm:$0xff]
        %v2498 = vld [vmem:[%s2 + $0x1b8] sm:$0xff]
        %v2499 = vld [vmem:[%s2 + $0x1c0] sm:$0xff]
        %v2500 = vld [vmem:[%s2 + $0x1c8] sm:$0xff]
        %v2501 = vld [vmem:[%s2 + $0x1d0] sm:$0xff]
        %v2502 = vld [vmem:[%s2 + $0x1d8] sm:$0xff]
        %v2503 = vld [vmem:[%s2 + $0x1e0] sm:$0xff]
        %v2504 = vld [vmem:[%s2 + $0x1e8] sm:$0xff]
        %v2505 = vld [vmem:[%s2 + $0x1f0] sm:$0xff]
        %v2506 = vld [vmem:[%s2 + $0x1f8] sm:$0xff]
        %v2507 = vld [vmem:[%s2 + $0x200] sm:$0xff]
        %v2508 = vld [vmem:[%s2 + $0x208] sm:$0xff]
        %v2509 = vld [vmem:[%s2 + $0x210] sm:$0xff]
        %v2510 = vld [vmem:[%s2 + $0x218] sm:$0xff]
        %v2511 = vld [vmem:[%s2 + $0x220] sm:$0xff]
        %v2512 = vld [vmem:[%s2 + $0x228] sm:$0xff]
        %v2513 = vld [vmem:[%s2 + $0x230] sm:$0xff]
        %v2514 = vld [vmem:[%s2 + $0x238] sm:$0xff]
        %v2515 = vld [vmem:[%s2 + $0x240] sm:$0xff]
        %v2516 = vld [vmem:[%s2 + $0x248] sm:$0xff]
        %v2517 = vld [vmem:[%s2 + $0x250] sm:$0xff]
        %v2518 = vld [vmem:[%s2 + $0x258] sm:$0xff]
        %v2519 = vld [vmem:[%s2 + $0x260] sm:$0xff]
        %v2520 = vld [vmem:[%s2 + $0x268] sm:$0xff]
        %v2521 = vld [vmem:[%s2 + $0x270] sm:$0xff]
        %v2522 = vld [vmem:[%s2 + $0x278] sm:$0xff]
        %v2523 = vld [vmem:[%s2 + $0x280] sm:$0xff]
        %v2524 = vld [vmem:[%s2 + $0x288] sm:$0xff]
        %v2525 = vld [vmem:[%s2 + $0x290] sm:$0xff]
        %v2526 = vld [vmem:[%s2 + $0x298] sm:$0xff]
        %v2527 = vld [vmem:[%s2 + $0x2a0] sm:$0xff]
        %v2528 = vld [vmem:[%s2 + $0x2a8] sm:$0xff]
        %v2529 = vld [vmem:[%s2 + $0x2b0] sm:$0xff]
        %v2530 = vld [vmem:[%s2 + $0x2b8] sm:$0xff]
        %v2531 = vld [vmem:[%s2 + $0x2c0] sm:$0xff]
        %v2532 = vld [vmem:[%s2 + $0x2c8] sm:$0xff]
        %v2533 = vld [vmem:[%s2 + $0x2d0] sm:$0xff]
        %v2534 = vld [vmem:[%s2 + $0x2d8] sm:$0xff]
        %v2535 = vld [vmem:[%s2 + $0x2e0] sm:$0xff]
        %v2536 = vld [vmem:[%s2 + $0x2e8] sm:$0xff]
        %v2537 = vld [vmem:[%s2 + $0x2f0] sm:$0xff]
        %v2538 = vld [vmem:[%s2 + $0x2f8] sm:$0xff]
        %v2539 = vld [vmem:[%s2 + $0x300] sm:$0xff]
        %v2540 = vld [vmem:[%s2 + $0x308] sm:$0xff]
        %v2541 = vld [vmem:[%s2 + $0x310] sm:$0xff]
        %v2542 = vld [vmem:[%s2 + $0x318] sm:$0xff]
        %v2543 = vld [vmem:[%s2 + $0x320] sm:$0xff]
        %v2544 = vld [vmem:[%s2 + $0x328] sm:$0xff]
        %v2545 = vld [vmem:[%s2 + $0x330] sm:$0xff]
        %v2546 = vld [vmem:[%s2 + $0x338] sm:$0xff]
        %v2547 = vld [vmem:[%s2 + $0x340] sm:$0xff]
        %v2548 = vld [vmem:[%s2 + $0x348] sm:$0xff]
        %v2549 = vld [vmem:[%s2 + $0x350] sm:$0xff]
        %v2550 = vld [vmem:[%s2 + $0x358] sm:$0xff]
        %v2551 = vld [vmem:[%s2 + $0x360] sm:$0xff]
        %v2552 = vld [vmem:[%s2 + $0x368] sm:$0xff]
        %v2553 = vld [vmem:[%s2 + $0x370] sm:$0xff]
        %v2554 = vld [vmem:[%s2 + $0x378] sm:$0xff]
        %v2555 = vld [vmem:[%s2 + $0x380] sm:$0xff]
        %v2556 = vld [vmem:[%s2 + $0x388] sm:$0xff]
        %v2557 = vld [vmem:[%s2 + $0x390] sm:$0xff]
        %v2558 = vld [vmem:[%s2 + $0x398] sm:$0xff]
        %v2559 = vld [vmem:[%s2 + $0x3a0] sm:$0xff]
        %v2560 = vld [vmem:[%s2 + $0x3a8] sm:$0xff]
        %v2561 = vld [vmem:[%s2 + $0x3b0] sm:$0xff]
        %v2562 = vld [vmem:[%s2 + $0x3b8] sm:$0xff]
        %v2563 = vld [vmem:[%s2 + $0x3c0] sm:$0xff]
        %v2564 = vld [vmem:[%s2 + $0x3c8] sm:$0xff]
        %v2565 = vld [vmem:[%s2 + $0x3d0] sm:$0xff]
        %v2566 = vld [vmem:[%s2 + $0x3d8] sm:$0xff]
        %v2567 = vld [vmem:[%s2 + $0x3e0] sm:$0xff]
        %v2568 = vld [vmem:[%s2 + $0x3e8] sm:$0xff]
        %v2569 = vld [vmem:[%s2 + $0x3f0] sm:$0xff]
        %v2570 = vld [vmem:[%s2 + $0x3f8] sm:$0xff]
        %v2571 = vld [vmem:[%s3] sm:$0x1]
        %v2573 = vlaneseq
        %v2574 = vshrl.u32 %v2573, 7
        %v2575 = vsub.s32 0, %v2574
        %v2576 = vrot.slane %v2571, %v2575
        %2578 = vmatprep.subr.mxu0 0.0
        %2579 = vmatpush1.msra.mxu0 %v2443
        %2580 = vmatprep.subr.mxu0 0.0
        %2581 = vmatpush1.msra.mxu0 %v2444
        %2582 = vmatprep.subr.mxu0 0.0
        %2583 = vmatpush1.msra.mxu0 %v2445
        %2584 = vmatprep.subr.mxu0 0.0
        %2585 = vmatpush1.msra.mxu0 %v2446
        %2586 = vmatprep.subr.mxu0 0.0
        %2587 = vmatpush1.msra.mxu0 %v2447
        %2588 = vmatprep.subr.mxu0 0.0
        %2589 = vmatpush1.msra.mxu0 %v2448
        %2590 = vmatprep.subr.mxu0 0.0
        %2591 = vmatpush1.msra.mxu0 %v2449
        %2592 = vmatprep.subr.mxu0 0.0
        %2593 = vmatpush1.msra.mxu0 %v2450
        %2594 = vmatprep.subr.mxu0 0.0
        %2595 = vmatpush1.msra.mxu0 %v2451
        %2596 = vmatprep.subr.mxu0 0.0
        %2597 = vmatpush1.msra.mxu0 %v2452
        %2598 = vmatprep.subr.mxu0 0.0
        %2599 = vmatpush1.msra.mxu0 %v2453
        %2600 = vmatprep.subr.mxu0 0.0
        %2601 = vmatpush1.msra.mxu0 %v2454
        %2602 = vmatprep.subr.mxu0 0.0
        %2603 = vmatpush1.msra.mxu0 %v2455
        %2604 = vmatprep.subr.mxu0 0.0
        %2605 = vmatpush1.msra.mxu0 %v2456
        %2606 = vmatprep.subr.mxu0 0.0
        %2607 = vmatpush1.msra.mxu0 %v2457
        %2608 = vmatprep.subr.mxu0 0.0
        %2609 = vmatpush1.msra.mxu0 %v2458
        %2610 = vmatprep.subr.mxu0 0.0
        %2611 = vmatpush1.msra.mxu0 %v2459
        %2612 = vmatprep.subr.mxu0 0.0
        %2613 = vmatpush1.msra.mxu0 %v2460
        %2614 = vmatprep.subr.mxu0 0.0
        %2615 = vmatpush1.msra.mxu0 %v2461
        %2616 = vmatprep.subr.mxu0 0.0
        %2617 = vmatpush1.msra.mxu0 %v2462
        %2618 = vmatprep.subr.mxu0 0.0
        %2619 = vmatpush1.msra.mxu0 %v2463
        %2620 = vmatprep.subr.mxu0 0.0
        %2621 = vmatpush1.msra.mxu0 %v2464
        %2622 = vmatprep.subr.mxu0 0.0
        %2623 = vmatpush1.msra.mxu0 %v2465
        %2624 = vmatprep.subr.mxu0 0.0
        %2625 = vmatpush1.msra.mxu0 %v2466
        %2626 = vmatprep.subr.mxu0 0.0
        %2627 = vmatpush1.msra.mxu0 %v2467
        %2628 = vmatprep.subr.mxu0 0.0
        %2629 = vmatpush1.msra.mxu0 %v2468
        %2630 = vmatprep.subr.mxu0 0.0
        %2631 = vmatpush1.msra.mxu0 %v2469
        %2632 = vmatprep.subr.mxu0 0.0
        %2633 = vmatpush1.msra.mxu0 %v2470
        %2634 = vmatprep.subr.mxu0 0.0
        %2635 = vmatpush1.msra.mxu0 %v2471
        %2636 = vmatprep.subr.mxu0 0.0
        %2637 = vmatpush1.msra.mxu0 %v2472
        %2638 = vmatprep.subr.mxu0 0.0
        %2639 = vmatpush1.msra.mxu0 %v2473
        %2640 = vmatprep.subr.mxu0 0.0
        %2641 = vmatpush1.msra.mxu0 %v2474
        %2642 = vmatprep.mubr.f32.mxu0 %v2436
        %2643 = vmatmul.mubr.f32.gmra.mrb[0].mxu0 %v2435
        %v2644 = vpop.f32.mrb[0].mxu0
        %v2645 = vadd.f32 %v2576, %v2644
        %v2646 = vpop.f32.mrb[0].mxu0
        %2647 = vdwg.mxu0
        %2648 = vmatprep.subr.mxu0 0.0
        %2649 = vmatpush1.msra.mxu0 %v2475
        %2650 = vmatprep.subr.mxu0 0.0
        %2651 = vmatpush1.msra.mxu0 %v2476
        %2652 = vmatprep.subr.mxu0 0.0
        %2653 = vmatpush1.msra.mxu0 %v2477
        %2654 = vmatprep.subr.mxu0 0.0
        %2655 = vmatpush1.msra.mxu0 %v2478
        %2656 = vmatprep.subr.mxu0 0.0
        %2657 = vmatpush1.msra.mxu0 %v2479
        %2658 = vmatprep.subr.mxu0 0.0
        %2659 = vmatpush1.msra.mxu0 %v2480
        %2660 = vmatprep.subr.mxu0 0.0
        %2661 = vmatpush1.msra.mxu0 %v2481
        %2662 = vmatprep.subr.mxu0 0.0
        %2663 = vmatpush1.msra.mxu0 %v2482
        %2664 = vmatprep.subr.mxu0 0.0
        %2665 = vmatpush1.msra.mxu0 %v2483
        %2666 = vmatprep.subr.mxu0 0.0
        %2667 = vmatpush1.msra.mxu0 %v2484
        %2668 = vmatprep.subr.mxu0 0.0
        %2669 = vmatpush1.msra.mxu0 %v2485
        %2670 = vmatprep.subr.mxu0 0.0
        %2671 = vmatpush1.msra.mxu0 %v2486
        %2672 = vmatprep.subr.mxu0 0.0
        %2673 = vmatpush1.msra.mxu0 %v2487
        %2674 = vmatprep.subr.mxu0 0.0
        %2675 = vmatpush1.msra.mxu0 %v2488
        %2676 = vmatprep.subr.mxu0 0.0
        %2677 = vmatpush1.msra.mxu0 %v2489
        %2678 = vmatprep.subr.mxu0 0.0
        %2679 = vmatpush1.msra.mxu0 %v2490
        %2680 = vmatprep.subr.mxu0 0.0
        %2681 = vmatpush1.msra.mxu0 %v2491
        %2682 = vmatprep.subr.mxu0 0.0
        %2683 = vmatpush1.msra.mxu0 %v2492
        %2684 = vmatprep.subr.mxu0 0.0
        %2685 = vmatpush1.msra.mxu0 %v2493
        %2686 = vmatprep.subr.mxu0 0.0
        %2687 = vmatpush1.msra.mxu0 %v2494
        %2688 = vmatprep.subr.mxu0 0.0
        %2689 = vmatpush1.msra.mxu0 %v2495
        %2690 = vmatprep.subr.mxu0 0.0
        %2691 = vmatpush1.msra.mxu0 %v2496
        %2692 = vmatprep.subr.mxu0 0.0
        %2693 = vmatpush1.msra.mxu0 %v2497
        %2694 = vmatprep.subr.mxu0 0.0
        %2695 = vmatpush1.msra.mxu0 %v2498
        %2696 = vmatprep.subr.mxu0 0.0
        %2697 = vmatpush1.msra.mxu0 %v2499
        %2698 = vmatprep.subr.mxu0 0.0
        %2699 = vmatpush1.msra.mxu0 %v2500
        %2700 = vmatprep.subr.mxu0 0.0
        %2701 = vmatpush1.msra.mxu0 %v2501
        %2702 = vmatprep.subr.mxu0 0.0
        %2703 = vmatpush1.msra.mxu0 %v2502
        %2704 = vmatprep.subr.mxu0 0.0
        %2705 = vmatpush1.msra.mxu0 %v2503
        %2706 = vmatprep.subr.mxu0 0.0
        %2707 = vmatpush1.msra.mxu0 %v2504
        %2708 = vmatprep.subr.mxu0 0.0
        %2709 = vmatpush1.msra.mxu0 %v2505
        %2710 = vmatprep.subr.mxu0 0.0
        %2711 = vmatpush1.msra.mxu0 %v2506
        %2712 = vmatprep.mubr.f32.mxu0 %v2438
        %2713 = vmatmul.mubr.f32.gmra.mrb[0].mxu0 %v2437
        %v2714 = vpop.f32.mrb[0].mxu0
        %v2715 = vadd.f32 %v2645, %v2714
        %v2716 = vpop.f32.mrb[0].mxu0
        %2717 = vdwg.mxu0
        %2718 = vmatprep.subr.mxu0 0.0
        %2719 = vmatpush1.msra.mxu0 %v2507
        %2720 = vmatprep.subr.mxu0 0.0
        %2721 = vmatpush1.msra.mxu0 %v2508
        %2722 = vmatprep.subr.mxu0 0.0
        %2723 = vmatpush1.msra.mxu0 %v2509
        %2724 = vmatprep.subr.mxu0 0.0
        %2725 = vmatpush1.msra.mxu0 %v2510
        %2726 = vmatprep.subr.mxu0 0.0
        %2727 = vmatpush1.msra.mxu0 %v2511
        %2728 = vmatprep.subr.mxu0 0.0
        %2729 = vmatpush1.msra.mxu0 %v2512
        %2730 = vmatprep.subr.mxu0 0.0
        %2731 = vmatpush1.msra.mxu0 %v2513
        %2732 = vmatprep.subr.mxu0 0.0
        %2733 = vmatpush1.msra.mxu0 %v2514
        %2734 = vmatprep.subr.mxu0 0.0
        %2735 = vmatpush1.msra.mxu0 %v2515
        %2736 = vmatprep.subr.mxu0 0.0
        %2737 = vmatpush1.msra.mxu0 %v2516
        %2738 = vmatprep.subr.mxu0 0.0
        %2739 = vmatpush1.msra.mxu0 %v2517
        %2740 = vmatprep.subr.mxu0 0.0
        %2741 = vmatpush1.msra.mxu0 %v2518
        %2742 = vmatprep.subr.mxu0 0.0
        %2743 = vmatpush1.msra.mxu0 %v2519
        %2744 = vmatprep.subr.mxu0 0.0
        %2745 = vmatpush1.msra.mxu0 %v2520
        %2746 = vmatprep.subr.mxu0 0.0
        %2747 = vmatpush1.msra.mxu0 %v2521
        %2748 = vmatprep.subr.mxu0 0.0
        %2749 = vmatpush1.msra.mxu0 %v2522
        %2750 = vmatprep.subr.mxu0 0.0
        %2751 = vmatpush1.msra.mxu0 %v2523
        %2752 = vmatprep.subr.mxu0 0.0
        %2753 = vmatpush1.msra.mxu0 %v2524
        %2754 = vmatprep.subr.mxu0 0.0
        %2755 = vmatpush1.msra.mxu0 %v2525
        %2756 = vmatprep.subr.mxu0 0.0
        %2757 = vmatpush1.msra.mxu0 %v2526
        %2758 = vmatprep.subr.mxu0 0.0
        %2759 = vmatpush1.msra.mxu0 %v2527
        %2760 = vmatprep.subr.mxu0 0.0
        %2761 = vmatpush1.msra.mxu0 %v2528
        %2762 = vmatprep.subr.mxu0 0.0
        %2763 = vmatpush1.msra.mxu0 %v2529
        %2764 = vmatprep.subr.mxu0 0.0
        %2765 = vmatpush1.msra.mxu0 %v2530
        %2766 = vmatprep.subr.mxu0 0.0
        %2767 = vmatpush1.msra.mxu0 %v2531
        %2768 = vmatprep.subr.mxu0 0.0
        %2769 = vmatpush1.msra.mxu0 %v2532
        %2770 = vmatprep.subr.mxu0 0.0
        %2771 = vmatpush1.msra.mxu0 %v2533
        %2772 = vmatprep.subr.mxu0 0.0
        %2773 = vmatpush1.msra.mxu0 %v2534
        %2774 = vmatprep.subr.mxu0 0.0
        %2775 = vmatpush1.msra.mxu0 %v2535
        %2776 = vmatprep.subr.mxu0 0.0
        %2777 = vmatpush1.msra.mxu0 %v2536
        %2778 = vmatprep.subr.mxu0 0.0
        %2779 = vmatpush1.msra.mxu0 %v2537
        %2780 = vmatprep.subr.mxu0 0.0
        %2781 = vmatpush1.msra.mxu0 %v2538
        %2782 = vmatprep.mubr.f32.mxu0 %v2440
        %2783 = vmatmul.mubr.f32.gmra.mrb[0].mxu0 %v2439
        %v2784 = vpop.f32.mrb[0].mxu0
        %v2785 = vadd.f32 %v2715, %v2784
        %v2786 = vpop.f32.mrb[0].mxu0
        %2787 = vdwg.mxu0
        %2788 = vmatprep.subr.mxu0 0.0
        %2789 = vmatpush1.msra.mxu0 %v2539
        %2790 = vmatprep.subr.mxu0 0.0
        %2791 = vmatpush1.msra.mxu0 %v2540
        %2792 = vmatprep.subr.mxu0 0.0
        %2793 = vmatpush1.msra.mxu0 %v2541
        %2794 = vmatprep.subr.mxu0 0.0
        %2795 = vmatpush1.msra.mxu0 %v2542
        %2796 = vmatprep.subr.mxu0 0.0
        %2797 = vmatpush1.msra.mxu0 %v2543
        %2798 = vmatprep.subr.mxu0 0.0
        %2799 = vmatpush1.msra.mxu0 %v2544
        %2800 = vmatprep.subr.mxu0 0.0
        %2801 = vmatpush1.msra.mxu0 %v2545
        %2802 = vmatprep.subr.mxu0 0.0
        %2803 = vmatpush1.msra.mxu0 %v2546
        %2804 = vmatprep.subr.mxu0 0.0
        %2805 = vmatpush1.msra.mxu0 %v2547
        %2806 = vmatprep.subr.mxu0 0.0
        %2807 = vmatpush1.msra.mxu0 %v2548
        %2808 = vmatprep.subr.mxu0 0.0
        %2809 = vmatpush1.msra.mxu0 %v2549
        %2810 = vmatprep.subr.mxu0 0.0
        %2811 = vmatpush1.msra.mxu0 %v2550
        %2812 = vmatprep.subr.mxu0 0.0
        %2813 = vmatpush1.msra.mxu0 %v2551
        %2814 = vmatprep.subr.mxu0 0.0
        %2815 = vmatpush1.msra.mxu0 %v2552
        %2816 = vmatprep.subr.mxu0 0.0
        %2817 = vmatpush1.msra.mxu0 %v2553
        %2818 = vmatprep.subr.mxu0 0.0
        %2819 = vmatpush1.msra.mxu0 %v2554
        %2820 = vmatprep.subr.mxu0 0.0
        %2821 = vmatpush1.msra.mxu0 %v2555
        %2822 = vmatprep.subr.mxu0 0.0
        %2823 = vmatpush1.msra.mxu0 %v2556
        %2824 = vmatprep.subr.mxu0 0.0
        %2825 = vmatpush1.msra.mxu0 %v2557
        %2826 = vmatprep.subr.mxu0 0.0
        %2827 = vmatpush1.msra.mxu0 %v2558
        %2828 = vmatprep.subr.mxu0 0.0
        %2829 = vmatpush1.msra.mxu0 %v2559
        %2830 = vmatprep.subr.mxu0 0.0
        %2831 = vmatpush1.msra.mxu0 %v2560
        %2832 = vmatprep.subr.mxu0 0.0
        %2833 = vmatpush1.msra.mxu0 %v2561
        %2834 = vmatprep.subr.mxu0 0.0
        %2835 = vmatpush1.msra.mxu0 %v2562
        %2836 = vmatprep.subr.mxu0 0.0
        %2837 = vmatpush1.msra.mxu0 %v2563
        %2838 = vmatprep.subr.mxu0 0.0
        %2839 = vmatpush1.msra.mxu0 %v2564
        %2840 = vmatprep.subr.mxu0 0.0
        %2841 = vmatpush1.msra.mxu0 %v2565
        %2842 = vmatprep.subr.mxu0 0.0
        %2843 = vmatpush1.msra.mxu0 %v2566
        %2844 = vmatprep.subr.mxu0 0.0
        %2845 = vmatpush1.msra.mxu0 %v2567
        %2846 = vmatprep.subr.mxu0 0.0
        %2847 = vmatpush1.msra.mxu0 %v2568
        %2848 = vmatprep.subr.mxu0 0.0
        %2849 = vmatpush1.msra.mxu0 %v2569
        %2850 = vmatprep.subr.mxu0 0.0
        %2851 = vmatpush1.msra.mxu0 %v2570
        %2852 = vmatprep.mubr.f32.mxu0 %v2442
        %2853 = vmatmul.mubr.f32.gmra.mrb[0].mxu0 %v2441
        %v2854 = vpop.f32.mrb[0].mxu0
        %v2855 = vadd.f32 %v2785, %v2854
        %v2856 = vpop.f32.mrb[0].mxu0
        %2857 = vdwg.mxu0
        %2858 = vst.msk [vmem:[%s188] sm:$0xff] %vm290, %v2855
        %s2859 = sand.u32 %s115, 1
        %s2860 = scalar_lea.sflag [#allocation5], %s2859
        %s2861 = sand.u32 %s115, 1
        %s2862 = smul.addr %s2861, 8
        %s2863 = scalar_lea.vmem [#allocation4], %s2862
        // Predicated region
        $region37: #{tpu_custom_call.1} parent=35 // pred_check
          %p2864 = pneg %p125
        $region38: #{tpu_custom_call.1} parent=35 // pred_check_branch
          %2866 = sbr.rel (%p2864) target = $region40
        $region39: #{tpu_custom_call.1} parent=35 // pred_region
          %s2868 = ssub.s32 128, 128
          %2869 = vsyncadd %s2860, %s2868
          %s2870 = smul.addr %s18, 128
          %s2871 = scalar_lea.hbm %s4, %s2870
          %s2873 = sshll.u32 %s2863, 4
          %s2874 = int_to_ptr.vmem [resolvable:$true] %s2873
          %2876 = dma.vmem_to_hbm [thread:$0]  %s2874, 128, %s2871, %s2860
        $region40: #{tpu_custom_call.1} parent=35 // pred_fallthru
          _
      $region36: #{tpu_custom_call.1} parent=5 // pred_fallthru
        _
      %p2877 = scmp.le.s32.totalorder 2, %s13
      // Predicated region
      $region41: #{tpu_custom_call.1} parent=5 // pred_check
        %p2878 = pneg %p2877
      $region42: #{tpu_custom_call.1} parent=5 // pred_check_branch
        %2880 = sbr.rel (%p2878) target = $region44
      $region43: #{tpu_custom_call.1} parent=5 // pred_region
        %s2881 = ssub.s32 %s13, 2
        // Predicated region
        $region45: #{tpu_custom_call.1} parent=43 // pred_check
          %p2882 = pneg %p131
        $region46: #{tpu_custom_call.1} parent=43 // pred_check_branch
          %2884 = sbr.rel (%p2882) target = $region48
        $region47: #{tpu_custom_call.1} parent=43 // pred_region
          %s2885 = sand.u32 %s116, 1
          %s2886 = scalar_lea.sflag [#allocation5], %s2885
          %s2887 = sand.u32 %s116, 1
          %s2888 = smul.addr %s2887, 8
          %s2889 = scalar_lea.vmem [#allocation4], %s2888
          %2890 = dma.done %s2886, 128
        $region48: #{tpu_custom_call.1} parent=43 // pred_fallthru
          _
      $region44: #{tpu_custom_call.1} parent=5 // pred_fallthru
        _
    $region6: #{tpu_custom_call.1} parent=1 // loop_footer
      %s17 = sadd.s32 1, %s13
    $region7: #{tpu_custom_call.1} parent=1 // loop_footer_branch
      %12 = sbr.rel target = $region3
    $region8: #{tpu_custom_call.1} parent=1 // loop_exit
      _
    %2891 = vsyncpa [#allocation5], 1
    %s2892 = scalar_lea.sflag [#allocation5], 1
    %2893 = vsyncpa %s2892, 1

</llo_original>
